<compile_context>
chip_gen: v7x
topology: tpu7x:2x2x1
jax: 0.10.0
libtpu: 0.0.40
codegen_flags: <defaults>
</compile_context>

<pallas_src>
import functools

import jax
import jax.numpy as jnp
from jax.experimental import pallas as pl
from jax.experimental.pallas import tpu as pltpu

BN_EPS = 1e-5
# Tnet channel widths (PointNet): k -> 64 -> 128 -> 1024 --pool--> 512 -> 256 -> k*k
C1, C2, C3, C4, C5 = 64, 128, 1024, 512, 256


def _bn_relu(y, gamma, beta):
    """Training-mode BatchNorm1d (biased batch stats over the row axis) + ReLU."""
    mean = jnp.mean(y, axis=0, keepdims=True)
    var = jnp.mean(jnp.square(y - mean), axis=0, keepdims=True)
    y_hat = (y - mean) * jax.lax.rsqrt(var + BN_EPS)      # rsqrt -> EUP slot
    return jnp.maximum(y_hat * gamma + beta, 0.0)


def tnet_kernel(x_ref,
                w1_ref, g1_ref, be1_ref,
                w2_ref, g2_ref, be2_ref,
                w3_ref, g3_ref, be3_ref,
                w4_ref, g4_ref, be4_ref,
                w5_ref, g5_ref, be5_ref,
                w6_ref, b6_ref, eye_ref,
                o_ref, pooled_ref,
                *, batch, num_points):
    # ---- point MLP: (B*L, k) -> (B*L, 1024). Conv biases dropped: training-mode
    #      BN's mean subtraction cancels a per-channel constant exactly.
    h = x_ref[...]
    h = _bn_relu(jnp.dot(h, w1_ref[...], preferred_element_type=jnp.float32),
                 g1_ref[...], be1_ref[...])
    h = _bn_relu(jnp.dot(h, w2_ref[...], preferred_element_type=jnp.float32),
                 g2_ref[...], be2_ref[...])
    h = _bn_relu(jnp.dot(h, w3_ref[...], preferred_element_type=jnp.float32),
                 g3_ref[...], be3_ref[...])

    # ---- MaxPool1d over the points of each cloud. Rows are batch-major and
    #      num_points is a multiple of 8, so every per-batch block is
    #      sublane-tile aligned (static slices -> no relayout). Result kept in
    #      a VMEM scratch and never round-trips through HBM.
    for b in range(batch):                                 # static unroll
        blk = h[b * num_points:(b + 1) * num_points, :]
        pooled_ref[pl.ds(b, 1), :] = jnp.max(blk, axis=0, keepdims=True)
    p = pooled_ref[...]                                    # (B, 1024)

    # ---- linear head: 1024 -> 512 -> 256 (biases dropped again), fc3 keeps its
    #      bias, then add the flattened identity.
    p = _bn_relu(jnp.dot(p, w4_ref[...], preferred_element_type=jnp.float32),
                 g4_ref[...], be4_ref[...])
    p = _bn_relu(jnp.dot(p, w5_ref[...], preferred_element_type=jnp.float32),
                 g5_ref[...], be5_ref[...])
    out = (jnp.dot(p, w6_ref[...], preferred_element_type=jnp.float32)
           + b6_ref[...] + eye_ref[...])
    o_ref[...] = out.astype(o_ref.dtype)


def tnet_forward(x, params):
    """x: [B, k, num_points] (PyTorch Conv1d layout). Returns [B, k, k]."""
    B, k, L = x.shape
    assert L % 8 == 0, "num_points must be a multiple of 8 (sublane-aligned pooling)"

    # Flatten batch*points into the matmul M dimension (batch-major rows).
    # This is layout plumbing in the wrapper; the kernel sees a dense 2-D slab.
    x_rows = jnp.transpose(x, (0, 2, 1)).reshape(B * L, k)

    kernel = functools.partial(tnet_kernel, batch=B, num_points=L)
    vmem = pl.BlockSpec(memory_space=pltpu.MemorySpace.VMEM)

    out_flat = pl.pallas_call(
        kernel,
        out_shape=jax.ShapeDtypeStruct((B, k * k), jnp.float32),
        in_specs=[vmem] * 19,
        out_specs=vmem,
        scratch_shapes=[pltpu.VMEM((B, C3), jnp.float32)],   # pooled features
    )(x_rows,
      params["w1"], params["g1"], params["be1"],
      params["w2"], params["g2"], params["be2"],
      params["w3"], params["g3"], params["be3"],
      params["w4"], params["g4"], params["be4"],
      params["w5"], params["g5"], params["be5"],
      params["w6"], params["b6"], params["eye"])

    return out_flat.reshape(B, k, k)


def init_tnet_params(key, k=3):
    """Synthetic deterministic parameters. Weights are stored pre-transposed
    ([in_ch, out_ch]) once, so the hot path never emits a transpose."""
    dims = [(k, C1), (C1, C2), (C2, C3), (C3, C4), (C4, C5)]
    keys = jax.random.split(key, 4 * len(dims) + 2)
    p = {}
    ki = 0
    for idx, (fin, fout) in enumerate(dims, start=1):
        p[f"w{idx}"] = (jax.random.normal(keys[ki], (fin, fout), jnp.float32)
                        / jnp.sqrt(fin)); ki += 1
        # conv/linear bias: consumed only by the pure-JAX reference; the kernel
        # drops it because training-mode BN cancels it exactly.
        p[f"cb{idx}"] = 0.1 * jax.random.normal(keys[ki], (1, fout), jnp.float32); ki += 1
        p[f"g{idx}"] = 1.0 + 0.1 * jax.random.normal(keys[ki], (1, fout), jnp.float32); ki += 1
        p[f"be{idx}"] = 0.1 * jax.random.normal(keys[ki], (1, fout), jnp.float32); ki += 1
    p["w6"] = (jax.random.normal(keys[ki], (C5, k * k), jnp.float32)
               / jnp.sqrt(C5)); ki += 1
    p["b6"] = 0.1 * jax.random.normal(keys[ki], (1, k * k), jnp.float32); ki += 1
    p["eye"] = jnp.eye(k, dtype=jnp.float32).reshape(1, k * k)
    return p


def reference_tnet(x, params):
    """Pure-JAX reference with full module semantics (biases included)."""
    B, k, L = x.shape
    h = jnp.transpose(x, (0, 2, 1)).reshape(B * L, k)

    def lin_bn_relu(h, w, b, g, be):
        y = h @ w + b
        mean = jnp.mean(y, axis=0, keepdims=True)
        var = jnp.mean((y - mean) ** 2, axis=0, keepdims=True)
        y = (y - mean) / jnp.sqrt(var + BN_EPS) * g + be
        return jnp.maximum(y, 0.0)

    h = lin_bn_relu(h, params["w1"], params["cb1"], params["g1"], params["be1"])
    h = lin_bn_relu(h, params["w2"], params["cb2"], params["g2"], params["be2"])
    h = lin_bn_relu(h, params["w3"], params["cb3"], params["g3"], params["be3"])
    pooled = jnp.max(h.reshape(B, L, -1), axis=1)          # MaxPool1d over points
    h = lin_bn_relu(pooled, params["w4"], params["cb4"], params["g4"], params["be4"])
    h = lin_bn_relu(h, params["w5"], params["cb5"], params["g5"], params["be5"])
    out = h @ params["w6"] + params["b6"]
    return out.reshape(B, k, k) + jnp.eye(k, dtype=jnp.float32)[None]


if __name__ == "__main__":
    B, K, N_POINTS = 2, 3, 16

    key = jax.random.PRNGKey(0)
    kx, kp = jax.random.split(key)
    x = jax.random.normal(kx, (B, K, N_POINTS), dtype=jnp.float32)
    params = init_tnet_params(kp, k=K)

    out = tnet_forward(x, params)
    out = jax.block_until_ready(out)

    ref = reference_tnet(x, params)
    assert out.shape == (B, K, K)
    assert jnp.allclose(out, ref, atol=2e-3, rtol=2e-3), "mismatch vs pure-JAX reference"

    print("KERNEL_OK")
</pallas_src>

<mosaic_0001>
module attributes {stable_mosaic.version = 11 : i64} {
  func.func @tnet_kernel(%arg0: memref<32x3xf32, #tpu.memory_space<vmem>>, %arg1: memref<3x64xf32, #tpu.memory_space<vmem>>, %arg2: memref<1x64xf32, #tpu.memory_space<vmem>>, %arg3: memref<1x64xf32, #tpu.memory_space<vmem>>, %arg4: memref<64x128xf32, #tpu.memory_space<vmem>>, %arg5: memref<1x128xf32, #tpu.memory_space<vmem>>, %arg6: memref<1x128xf32, #tpu.memory_space<vmem>>, %arg7: memref<128x1024xf32, #tpu.memory_space<vmem>>, %arg8: memref<1x1024xf32, #tpu.memory_space<vmem>>, %arg9: memref<1x1024xf32, #tpu.memory_space<vmem>>, %arg10: memref<1024x512xf32, #tpu.memory_space<vmem>>, %arg11: memref<1x512xf32, #tpu.memory_space<vmem>>, %arg12: memref<1x512xf32, #tpu.memory_space<vmem>>, %arg13: memref<512x256xf32, #tpu.memory_space<vmem>>, %arg14: memref<1x256xf32, #tpu.memory_space<vmem>>, %arg15: memref<1x256xf32, #tpu.memory_space<vmem>>, %arg16: memref<256x9xf32, #tpu.memory_space<vmem>>, %arg17: memref<1x9xf32, #tpu.memory_space<vmem>>, %arg18: memref<1x9xf32, #tpu.memory_space<vmem>>, %arg19: memref<2x9xf32, #tpu.memory_space<vmem>>, %arg20: memref<2x1024xf32, #tpu.memory_space<vmem>>) attributes {dimension_semantics = [], scalar_prefetch = 0 : i64, scratch_operands = 1 : i64, tpu.core_type = #tpu.core_type<tc>} {
    %c0 = arith.constant 0 : index
    %c0_0 = arith.constant 0 : index
    %0 = vector.load %arg0[%c0, %c0_0] : memref<32x3xf32, #tpu.memory_space<vmem>>, vector<32x3xf32>
    %c0_1 = arith.constant 0 : index
    %c0_2 = arith.constant 0 : index
    %1 = vector.load %arg1[%c0_1, %c0_2] : memref<3x64xf32, #tpu.memory_space<vmem>>, vector<3x64xf32>
    %cst = arith.constant dense<0.000000e+00> : vector<32x64xf32>
    %2 = tpu.matmul %0, %1, %cst {dimension_numbers = #tpu.dot_dimension_numbers<[1], [0], [0], [1], [0, 0, 1, 1], [], []>} : vector<32x3xf32>, vector<3x64xf32>, vector<32x64xf32> -> vector<32x64xf32>
    %c0_3 = arith.constant 0 : index
    %c0_4 = arith.constant 0 : index
    %3 = vector.load %arg2[%c0_3, %c0_4] : memref<1x64xf32, #tpu.memory_space<vmem>>, vector<1x64xf32>
    %c0_5 = arith.constant 0 : index
    %c0_6 = arith.constant 0 : index
    %4 = vector.load %arg3[%c0_5, %c0_6] : memref<1x64xf32, #tpu.memory_space<vmem>>, vector<1x64xf32>
    %cst_7 = arith.constant dense<0.000000e+00> : vector<64xf32>
    %5 = vector.multi_reduction <add>, %2, %cst_7 [0] : vector<32x64xf32> to vector<64xf32>
    %6 = vector.shape_cast %5 : vector<64xf32> to vector<1x64xf32>
    %cst_8 = arith.constant 3.200000e+01 : f32
    %7 = vector.broadcast %cst_8 : f32 to vector<1x64xf32>
    %8 = arith.divf %6, %7 : vector<1x64xf32>
    %9 = vector.broadcast %8 : vector<1x64xf32> to vector<32x64xf32>
    %10 = arith.subf %2, %9 : vector<32x64xf32>
    %11 = arith.mulf %10, %10 : vector<32x64xf32>
    %cst_9 = arith.constant dense<0.000000e+00> : vector<64xf32>
    %12 = vector.multi_reduction <add>, %11, %cst_9 [0] : vector<32x64xf32> to vector<64xf32>
    %13 = vector.shape_cast %12 : vector<64xf32> to vector<1x64xf32>
    %cst_10 = arith.constant 3.200000e+01 : f32
    %14 = vector.broadcast %cst_10 : f32 to vector<1x64xf32>
    %15 = arith.divf %13, %14 : vector<1x64xf32>
    %16 = vector.broadcast %8 : vector<1x64xf32> to vector<32x64xf32>
    %17 = arith.subf %2, %16 : vector<32x64xf32>
    %cst_11 = arith.constant 9.99999974E-6 : f32
    %18 = vector.broadcast %cst_11 : f32 to vector<1x64xf32>
    %19 = arith.addf %15, %18 : vector<1x64xf32>
    %20 = math.rsqrt %19 : vector<1x64xf32>
    %21 = vector.broadcast %20 : vector<1x64xf32> to vector<32x64xf32>
    %22 = arith.mulf %17, %21 : vector<32x64xf32>
    %23 = vector.broadcast %3 : vector<1x64xf32> to vector<32x64xf32>
    %24 = arith.mulf %22, %23 : vector<32x64xf32>
    %25 = vector.broadcast %4 : vector<1x64xf32> to vector<32x64xf32>
    %26 = arith.addf %24, %25 : vector<32x64xf32>
    %cst_12 = arith.constant 0.000000e+00 : f32
    %27 = vector.broadcast %cst_12 : f32 to vector<32x64xf32>
    %28 = arith.maximumf %26, %27 : vector<32x64xf32>
    %c0_13 = arith.constant 0 : index
    %c0_14 = arith.constant 0 : index
    %29 = vector.load %arg4[%c0_13, %c0_14] : memref<64x128xf32, #tpu.memory_space<vmem>>, vector<64x128xf32>
    %cst_15 = arith.constant dense<0.000000e+00> : vector<32x128xf32>
    %30 = tpu.matmul %28, %29, %cst_15 {dimension_numbers = #tpu.dot_dimension_numbers<[1], [0], [0], [1], [0, 0, 1, 1], [], []>} : vector<32x64xf32>, vector<64x128xf32>, vector<32x128xf32> -> vector<32x128xf32>
    %c0_16 = arith.constant 0 : index
    %c0_17 = arith.constant 0 : index
    %31 = vector.load %arg5[%c0_16, %c0_17] : memref<1x128xf32, #tpu.memory_space<vmem>>, vector<1x128xf32>
    %c0_18 = arith.constant 0 : index
    %c0_19 = arith.constant 0 : index
    %32 = vector.load %arg6[%c0_18, %c0_19] : memref<1x128xf32, #tpu.memory_space<vmem>>, vector<1x128xf32>
    %cst_20 = arith.constant dense<0.000000e+00> : vector<128xf32>
    %33 = vector.multi_reduction <add>, %30, %cst_20 [0] : vector<32x128xf32> to vector<128xf32>
    %34 = vector.shape_cast %33 : vector<128xf32> to vector<1x128xf32>
    %cst_21 = arith.constant 3.200000e+01 : f32
    %35 = vector.broadcast %cst_21 : f32 to vector<1x128xf32>
    %36 = arith.divf %34, %35 : vector<1x128xf32>
    %37 = vector.broadcast %36 : vector<1x128xf32> to vector<32x128xf32>
    %38 = arith.subf %30, %37 : vector<32x128xf32>
    %39 = arith.mulf %38, %38 : vector<32x128xf32>
    %cst_22 = arith.constant dense<0.000000e+00> : vector<128xf32>
    %40 = vector.multi_reduction <add>, %39, %cst_22 [0] : vector<32x128xf32> to vector<128xf32>
    %41 = vector.shape_cast %40 : vector<128xf32> to vector<1x128xf32>
    %cst_23 = arith.constant 3.200000e+01 : f32
    %42 = vector.broadcast %cst_23 : f32 to vector<1x128xf32>
    %43 = arith.divf %41, %42 : vector<1x128xf32>
    %44 = vector.broadcast %36 : vector<1x128xf32> to vector<32x128xf32>
    %45 = arith.subf %30, %44 : vector<32x128xf32>
    %cst_24 = arith.constant 9.99999974E-6 : f32
    %46 = vector.broadcast %cst_24 : f32 to vector<1x128xf32>
    %47 = arith.addf %43, %46 : vector<1x128xf32>
    %48 = math.rsqrt %47 : vector<1x128xf32>
    %49 = vector.broadcast %48 : vector<1x128xf32> to vector<32x128xf32>
    %50 = arith.mulf %45, %49 : vector<32x128xf32>
    %51 = vector.broadcast %31 : vector<1x128xf32> to vector<32x128xf32>
    %52 = arith.mulf %50, %51 : vector<32x128xf32>
    %53 = vector.broadcast %32 : vector<1x128xf32> to vector<32x128xf32>
    %54 = arith.addf %52, %53 : vector<32x128xf32>
    %cst_25 = arith.constant 0.000000e+00 : f32
    %55 = vector.broadcast %cst_25 : f32 to vector<32x128xf32>
    %56 = arith.maximumf %54, %55 : vector<32x128xf32>
    %c0_26 = arith.constant 0 : index
    %c0_27 = arith.constant 0 : index
    %57 = vector.load %arg7[%c0_26, %c0_27] : memref<128x1024xf32, #tpu.memory_space<vmem>>, vector<128x1024xf32>
    %cst_28 = arith.constant dense<0.000000e+00> : vector<32x1024xf32>
    %58 = tpu.matmul %56, %57, %cst_28 {dimension_numbers = #tpu.dot_dimension_numbers<[1], [0], [0], [1], [0, 0, 1, 1], [], []>} : vector<32x128xf32>, vector<128x1024xf32>, vector<32x1024xf32> -> vector<32x1024xf32>
    %c0_29 = arith.constant 0 : index
    %c0_30 = arith.constant 0 : index
    %59 = vector.load %arg8[%c0_29, %c0_30] : memref<1x1024xf32, #tpu.memory_space<vmem>>, vector<1x1024xf32>
    %c0_31 = arith.constant 0 : index
    %c0_32 = arith.constant 0 : index
    %60 = vector.load %arg9[%c0_31, %c0_32] : memref<1x1024xf32, #tpu.memory_space<vmem>>, vector<1x1024xf32>
    %cst_33 = arith.constant dense<0.000000e+00> : vector<1024xf32>
    %61 = vector.multi_reduction <add>, %58, %cst_33 [0] : vector<32x1024xf32> to vector<1024xf32>
    %62 = vector.shape_cast %61 : vector<1024xf32> to vector<1x1024xf32>
    %cst_34 = arith.constant 3.200000e+01 : f32
    %63 = vector.broadcast %cst_34 : f32 to vector<1x1024xf32>
    %64 = arith.divf %62, %63 : vector<1x1024xf32>
    %65 = vector.broadcast %64 : vector<1x1024xf32> to vector<32x1024xf32>
    %66 = arith.subf %58, %65 : vector<32x1024xf32>
    %67 = arith.mulf %66, %66 : vector<32x1024xf32>
    %cst_35 = arith.constant dense<0.000000e+00> : vector<1024xf32>
    %68 = vector.multi_reduction <add>, %67, %cst_35 [0] : vector<32x1024xf32> to vector<1024xf32>
    %69 = vector.shape_cast %68 : vector<1024xf32> to vector<1x1024xf32>
    %cst_36 = arith.constant 3.200000e+01 : f32
    %70 = vector.broadcast %cst_36 : f32 to vector<1x1024xf32>
    %71 = arith.divf %69, %70 : vector<1x1024xf32>
    %72 = vector.broadcast %64 : vector<1x1024xf32> to vector<32x1024xf32>
    %73 = arith.subf %58, %72 : vector<32x1024xf32>
    %cst_37 = arith.constant 9.99999974E-6 : f32
    %74 = vector.broadcast %cst_37 : f32 to vector<1x1024xf32>
    %75 = arith.addf %71, %74 : vector<1x1024xf32>
    %76 = math.rsqrt %75 : vector<1x1024xf32>
    %77 = vector.broadcast %76 : vector<1x1024xf32> to vector<32x1024xf32>
    %78 = arith.mulf %73, %77 : vector<32x1024xf32>
    %79 = vector.broadcast %59 : vector<1x1024xf32> to vector<32x1024xf32>
    %80 = arith.mulf %78, %79 : vector<32x1024xf32>
    %81 = vector.broadcast %60 : vector<1x1024xf32> to vector<32x1024xf32>
    %82 = arith.addf %80, %81 : vector<32x1024xf32>
    %cst_38 = arith.constant 0.000000e+00 : f32
    %83 = vector.broadcast %cst_38 : f32 to vector<32x1024xf32>
    %84 = arith.maximumf %82, %83 : vector<32x1024xf32>
    %85 = vector.extract_strided_slice %84 {offsets = [0, 0], sizes = [16, 1024], strides = [1, 1]} : vector<32x1024xf32> to vector<16x1024xf32>
    %cst_39 = arith.constant dense<0xFF800000> : vector<1024xf32>
    %86 = vector.multi_reduction <maximumf>, %85, %cst_39 [0] : vector<16x1024xf32> to vector<1024xf32>
    %87 = vector.shape_cast %86 : vector<1024xf32> to vector<1x1024xf32>
    %c0_40 = arith.constant 0 : index
    %c0_41 = arith.constant 0 : index
    %88 = vector.load %arg20[%c0_40, %c0_41] : memref<2x1024xf32, #tpu.memory_space<vmem>>, vector<1x1024xf32>
    tpu.vector_store %arg20[%c0_40, %c0_41], %87 {strides = array<i32>} : memref<2x1024xf32, #tpu.memory_space<vmem>>, vector<1x1024xf32>,
    %89 = vector.extract_strided_slice %84 {offsets = [16, 0], sizes = [16, 1024], strides = [1, 1]} : vector<32x1024xf32> to vector<16x1024xf32>
    %cst_42 = arith.constant dense<0xFF800000> : vector<1024xf32>
    %90 = vector.multi_reduction <maximumf>, %89, %cst_42 [0] : vector<16x1024xf32> to vector<1024xf32>
    %91 = vector.shape_cast %90 : vector<1024xf32> to vector<1x1024xf32>
    %c1 = arith.constant 1 : index
    %c0_43 = arith.constant 0 : index
    %92 = vector.load %arg20[%c1, %c0_43] : memref<2x1024xf32, #tpu.memory_space<vmem>>, vector<1x1024xf32>
    tpu.vector_store %arg20[%c1, %c0_43], %91 {strides = array<i32>} : memref<2x1024xf32, #tpu.memory_space<vmem>>, vector<1x1024xf32>,
    %c0_44 = arith.constant 0 : index
    %c0_45 = arith.constant 0 : index
    %93 = vector.load %arg20[%c0_44, %c0_45] : memref<2x1024xf32, #tpu.memory_space<vmem>>, vector<2x1024xf32>
    %c0_46 = arith.constant 0 : index
    %c0_47 = arith.constant 0 : index
    %94 = vector.load %arg10[%c0_46, %c0_47] : memref<1024x512xf32, #tpu.memory_space<vmem>>, vector<1024x512xf32>
    %cst_48 = arith.constant dense<0.000000e+00> : vector<2x512xf32>
    %95 = tpu.matmul %93, %94, %cst_48 {dimension_numbers = #tpu.dot_dimension_numbers<[1], [0], [0], [1], [0, 0, 1, 1], [], []>} : vector<2x1024xf32>, vector<1024x512xf32>, vector<2x512xf32> -> vector<2x512xf32>
    %c0_49 = arith.constant 0 : index
    %c0_50 = arith.constant 0 : index
    %96 = vector.load %arg11[%c0_49, %c0_50] : memref<1x512xf32, #tpu.memory_space<vmem>>, vector<1x512xf32>
    %c0_51 = arith.constant 0 : index
    %c0_52 = arith.constant 0 : index
    %97 = vector.load %arg12[%c0_51, %c0_52] : memref<1x512xf32, #tpu.memory_space<vmem>>, vector<1x512xf32>
    %cst_53 = arith.constant dense<0.000000e+00> : vector<512xf32>
    %98 = vector.multi_reduction <add>, %95, %cst_53 [0] : vector<2x512xf32> to vector<512xf32>
    %99 = vector.shape_cast %98 : vector<512xf32> to vector<1x512xf32>
    %cst_54 = arith.constant 2.000000e+00 : f32
    %100 = vector.broadcast %cst_54 : f32 to vector<1x512xf32>
    %101 = arith.divf %99, %100 : vector<1x512xf32>
    %102 = vector.broadcast %101 : vector<1x512xf32> to vector<2x512xf32>
    %103 = arith.subf %95, %102 : vector<2x512xf32>
    %104 = arith.mulf %103, %103 : vector<2x512xf32>
    %cst_55 = arith.constant dense<0.000000e+00> : vector<512xf32>
    %105 = vector.multi_reduction <add>, %104, %cst_55 [0] : vector<2x512xf32> to vector<512xf32>
    %106 = vector.shape_cast %105 : vector<512xf32> to vector<1x512xf32>
    %cst_56 = arith.constant 2.000000e+00 : f32
    %107 = vector.broadcast %cst_56 : f32 to vector<1x512xf32>
    %108 = arith.divf %106, %107 : vector<1x512xf32>
    %109 = vector.broadcast %101 : vector<1x512xf32> to vector<2x512xf32>
    %110 = arith.subf %95, %109 : vector<2x512xf32>
    %cst_57 = arith.constant 9.99999974E-6 : f32
    %111 = vector.broadcast %cst_57 : f32 to vector<1x512xf32>
    %112 = arith.addf %108, %111 : vector<1x512xf32>
    %113 = math.rsqrt %112 : vector<1x512xf32>
    %114 = vector.broadcast %113 : vector<1x512xf32> to vector<2x512xf32>
    %115 = arith.mulf %110, %114 : vector<2x512xf32>
    %116 = vector.broadcast %96 : vector<1x512xf32> to vector<2x512xf32>
    %117 = arith.mulf %115, %116 : vector<2x512xf32>
    %118 = vector.broadcast %97 : vector<1x512xf32> to vector<2x512xf32>
    %119 = arith.addf %117, %118 : vector<2x512xf32>
    %cst_58 = arith.constant 0.000000e+00 : f32
    %120 = vector.broadcast %cst_58 : f32 to vector<2x512xf32>
    %121 = arith.maximumf %119, %120 : vector<2x512xf32>
    %c0_59 = arith.constant 0 : index
    %c0_60 = arith.constant 0 : index
    %122 = vector.load %arg13[%c0_59, %c0_60] : memref<512x256xf32, #tpu.memory_space<vmem>>, vector<512x256xf32>
    %cst_61 = arith.constant dense<0.000000e+00> : vector<2x256xf32>
    %123 = tpu.matmul %121, %122, %cst_61 {dimension_numbers = #tpu.dot_dimension_numbers<[1], [0], [0], [1], [0, 0, 1, 1], [], []>} : vector<2x512xf32>, vector<512x256xf32>, vector<2x256xf32> -> vector<2x256xf32>
    %c0_62 = arith.constant 0 : index
    %c0_63 = arith.constant 0 : index
    %124 = vector.load %arg14[%c0_62, %c0_63] : memref<1x256xf32, #tpu.memory_space<vmem>>, vector<1x256xf32>
    %c0_64 = arith.constant 0 : index
    %c0_65 = arith.constant 0 : index
    %125 = vector.load %arg15[%c0_64, %c0_65] : memref<1x256xf32, #tpu.memory_space<vmem>>, vector<1x256xf32>
    %cst_66 = arith.constant dense<0.000000e+00> : vector<256xf32>
    %126 = vector.multi_reduction <add>, %123, %cst_66 [0] : vector<2x256xf32> to vector<256xf32>
    %127 = vector.shape_cast %126 : vector<256xf32> to vector<1x256xf32>
    %cst_67 = arith.constant 2.000000e+00 : f32
    %128 = vector.broadcast %cst_67 : f32 to vector<1x256xf32>
    %129 = arith.divf %127, %128 : vector<1x256xf32>
    %130 = vector.broadcast %129 : vector<1x256xf32> to vector<2x256xf32>
    %131 = arith.subf %123, %130 : vector<2x256xf32>
    %132 = arith.mulf %131, %131 : vector<2x256xf32>
    %cst_68 = arith.constant dense<0.000000e+00> : vector<256xf32>
    %133 = vector.multi_reduction <add>, %132, %cst_68 [0] : vector<2x256xf32> to vector<256xf32>
    %134 = vector.shape_cast %133 : vector<256xf32> to vector<1x256xf32>
    %cst_69 = arith.constant 2.000000e+00 : f32
    %135 = vector.broadcast %cst_69 : f32 to vector<1x256xf32>
    %136 = arith.divf %134, %135 : vector<1x256xf32>
    %137 = vector.broadcast %129 : vector<1x256xf32> to vector<2x256xf32>
    %138 = arith.subf %123, %137 : vector<2x256xf32>
    %cst_70 = arith.constant 9.99999974E-6 : f32
    %139 = vector.broadcast %cst_70 : f32 to vector<1x256xf32>
    %140 = arith.addf %136, %139 : vector<1x256xf32>
    %141 = math.rsqrt %140 : vector<1x256xf32>
    %142 = vector.broadcast %141 : vector<1x256xf32> to vector<2x256xf32>
    %143 = arith.mulf %138, %142 : vector<2x256xf32>
    %144 = vector.broadcast %124 : vector<1x256xf32> to vector<2x256xf32>
    %145 = arith.mulf %143, %144 : vector<2x256xf32>
    %146 = vector.broadcast %125 : vector<1x256xf32> to vector<2x256xf32>
    %147 = arith.addf %145, %146 : vector<2x256xf32>
    %cst_71 = arith.constant 0.000000e+00 : f32
    %148 = vector.broadcast %cst_71 : f32 to vector<2x256xf32>
    %149 = arith.maximumf %147, %148 : vector<2x256xf32>
    %c0_72 = arith.constant 0 : index
    %c0_73 = arith.constant 0 : index
    %150 = vector.load %arg16[%c0_72, %c0_73] : memref<256x9xf32, #tpu.memory_space<vmem>>, vector<256x9xf32>
    %cst_74 = arith.constant dense<0.000000e+00> : vector<2x9xf32>
    %151 = tpu.matmul %149, %150, %cst_74 {dimension_numbers = #tpu.dot_dimension_numbers<[1], [0], [0], [1], [0, 0, 1, 1], [], []>} : vector<2x256xf32>, vector<256x9xf32>, vector<2x9xf32> -> vector<2x9xf32>
    %c0_75 = arith.constant 0 : index
    %c0_76 = arith.constant 0 : index
    %152 = vector.load %arg17[%c0_75, %c0_76] : memref<1x9xf32, #tpu.memory_space<vmem>>, vector<1x9xf32>
    %153 = vector.broadcast %152 : vector<1x9xf32> to vector<2x9xf32>
    %154 = arith.addf %151, %153 : vector<2x9xf32>
    %c0_77 = arith.constant 0 : index
    %c0_78 = arith.constant 0 : index
    %155 = vector.load %arg18[%c0_77, %c0_78] : memref<1x9xf32, #tpu.memory_space<vmem>>, vector<1x9xf32>
    %156 = vector.broadcast %155 : vector<1x9xf32> to vector<2x9xf32>
    %157 = arith.addf %154, %156 : vector<2x9xf32>
    %c0_79 = arith.constant 0 : index
    %c0_80 = arith.constant 0 : index
    %158 = vector.load %arg19[%c0_79, %c0_80] : memref<2x9xf32, #tpu.memory_space<vmem>>, vector<2x9xf32>
    tpu.vector_store %arg19[%c0_79, %c0_80], %157 {strides = array<i32>} : memref<2x9xf32, #tpu.memory_space<vmem>>, vector<2x9xf32>,
    return
  }
}

</mosaic_0001>

<llo_original>
// kernel: tpu_custom_call.1
$region0: #{tpu_custom_call.1}
  #allocation0 [shape = 'u32[]', space=smem, size = 0x4, offset = 0x4, fixed_abs, tag = 'smem constant byte address 0x4 - core index']
  #allocation1 [shape = 'u32[144,128]{1,0:T(1,128)}', space=vmem, size = 0x12000, scoped, tag = 'internal scratch']
  #allocation2 [shape = 'f32[2,1024]{1,0:T(2,128)}', space=vmem, size = 0x2000, scoped, tag = 'scratch operand']
  %s0 = inlined_call_operand.vmem [shape: f32[32,3], index: 0, kind: input, shape index: {}]
  %s1 = inlined_call_operand.hbm [shape: f32[3,64], index: 1, kind: input, shape index: {}]
  %s2 = inlined_call_operand.hbm [shape: f32[1,64], index: 2, kind: input, shape index: {}]
  %s3 = inlined_call_operand.hbm [shape: f32[1,64], index: 3, kind: input, shape index: {}]
  %s4 = inlined_call_operand.hbm [shape: f32[64,128], index: 4, kind: input, shape index: {}]
  %s5 = inlined_call_operand.hbm [shape: f32[1,128], index: 5, kind: input, shape index: {}]
  %s6 = inlined_call_operand.hbm [shape: f32[1,128], index: 6, kind: input, shape index: {}]
  %s7 = inlined_call_operand.hbm [shape: f32[128,1024], index: 7, kind: input, shape index: {}]
  %s8 = inlined_call_operand.hbm [shape: f32[1,1024], index: 8, kind: input, shape index: {}]
  %s9 = inlined_call_operand.hbm [shape: f32[1,1024], index: 9, kind: input, shape index: {}]
  %s10 = inlined_call_operand.hbm [shape: f32[1024,512], index: 10, kind: input, shape index: {}]
  %s11 = inlined_call_operand.hbm [shape: f32[1,512], index: 11, kind: input, shape index: {}]
  %s12 = inlined_call_operand.hbm [shape: f32[1,512], index: 12, kind: input, shape index: {}]
  %s13 = inlined_call_operand.hbm [shape: f32[512,256], index: 13, kind: input, shape index: {}]
  %s14 = inlined_call_operand.hbm [shape: f32[1,256], index: 14, kind: input, shape index: {}]
  %s15 = inlined_call_operand.hbm [shape: f32[1,256], index: 15, kind: input, shape index: {}]
  %s16 = inlined_call_operand.vmem [shape: f32[256,9], index: 16, kind: input, shape index: {}]
  %s17 = inlined_call_operand.hbm [shape: f32[1,9], index: 17, kind: input, shape index: {}]
  %s18 = inlined_call_operand.hbm [shape: f32[1,9], index: 18, kind: input, shape index: {}]
  %s19 = inlined_call_operand.hbm [shape: f32[2,9], index: 19, kind: output, shape index: {}]
  %s20 = sld [smem:[#allocation0]]
  $region154: #{tpu_custom_call.1} parent=0
    _
  %s22 = ssub.s32 1, %s20
  %s23 = scalar_select 0, %s22, %s20
  $region1: #{tpu_custom_call.1} parent=0
    #allocation3 [shape = 'u8[2048]{0}', space=vmem, size = 0x800, scoped, tag = 'input window, operand 1, single buffered']
    #allocation4 [shape = 's32[1]{0}', space=sflag, size = 0x4, scoped, tag = 'scoped memory for tpu_custom_call.1']
    #allocation5 [shape = 's32[1]{0}', space=sflag, size = 0x4, scoped, tag = 'scoped memory for tpu_custom_call.1']
    #allocation6 [shape = 'u8[512]{0}', space=vmem, size = 0x400, scoped, tag = 'input window, operand 2, single buffered']
    #allocation7 [shape = 's32[1]{0}', space=sflag, size = 0x4, scoped, tag = 'scoped memory for tpu_custom_call.1']
    #allocation8 [shape = 'u8[512]{0}', space=vmem, size = 0x400, scoped, tag = 'input window, operand 3, single buffered']
    #allocation9 [shape = 'u8[32768]{0}', space=vmem, size = 0x8000, scoped, tag = 'input window, operand 4, single buffered']
    #allocation10 [shape = 's32[1]{0}', space=sflag, size = 0x4, scoped, tag = 'scoped memory for tpu_custom_call.1']
    #allocation11 [shape = 'u8[512]{0}', space=vmem, size = 0x400, scoped, tag = 'input window, operand 5, single buffered']
    #allocation12 [shape = 'u8[512]{0}', space=vmem, size = 0x400, scoped, tag = 'input window, operand 6, single buffered']
    #allocation13 [shape = 's32[1]{0}', space=sflag, size = 0x4, scoped, tag = 'scoped memory for tpu_custom_call.1']
    #allocation14 [shape = 'u8[524288]{0}', space=vmem, size = 0x80000, scoped, tag = 'input window, operand 7, single buffered']
    #allocation15 [shape = 'u8[4096]{0}', space=vmem, size = 0x1000, scoped, tag = 'input window, operand 8, single buffered']
    #allocation16 [shape = 's32[1]{0}', space=sflag, size = 0x4, scoped, tag = 'scoped memory for tpu_custom_call.1']
    #allocation17 [shape = 'u8[4096]{0}', space=vmem, size = 0x1000, scoped, tag = 'input window, operand 9, single buffered']
    #allocation18 [shape = 'u8[2097152]{0}', space=vmem, size = 0x200000, scoped, tag = 'input window, operand 10, single buffered']
    #allocation19 [shape = 's32[1]{0}', space=sflag, size = 0x4, scoped, tag = 'scoped memory for tpu_custom_call.1']
    #allocation20 [shape = 'u8[2048]{0}', space=vmem, size = 0x800, scoped, tag = 'input window, operand 11, single buffered']
    #allocation21 [shape = 'u8[2048]{0}', space=vmem, size = 0x800, scoped, tag = 'input window, operand 12, single buffered']
    #allocation22 [shape = 's32[1]{0}', space=sflag, size = 0x4, scoped, tag = 'scoped memory for tpu_custom_call.1']
    #allocation23 [shape = 'u8[524288]{0}', space=vmem, size = 0x80000, scoped, tag = 'input window, operand 13, single buffered']
    #allocation24 [shape = 'u8[1024]{0}', space=vmem, size = 0x400, scoped, tag = 'input window, operand 14, single buffered']
    #allocation25 [shape = 's32[1]{0}', space=sflag, size = 0x4, scoped, tag = 'scoped memory for tpu_custom_call.1']
    #allocation26 [shape = 'u8[1024]{0}', space=vmem, size = 0x400, scoped, tag = 'input window, operand 15, single buffered']
    #allocation27 [shape = 'u8[512]{0}', space=vmem, size = 0x400, scoped, tag = 'input window, operand 17, single buffered']
    #allocation28 [shape = 's32[1]{0}', space=sflag, size = 0x4, scoped, tag = 'scoped memory for tpu_custom_call.1']
    #allocation29 [shape = 'u8[512]{0}', space=vmem, size = 0x400, scoped, tag = 'input window, operand 18, single buffered']
    #allocation30 [shape = 'u8[1024]{0}', space=vmem, size = 0x400, scoped, tag = 'output window, operand 0, single buffered']
    %24 = vsyncpa [#allocation4], 0
    %25 = vsyncpa [#allocation7], 0
    %26 = vsyncpa [#allocation10], 0
    %27 = vsyncpa [#allocation13], 0
    %28 = vsyncpa [#allocation16], 0
    %29 = vsyncpa [#allocation19], 0
    %30 = vsyncpa [#allocation22], 0
    %31 = vsyncpa [#allocation25], 0
    %32 = vsyncpa [#allocation28], 0
    %33 = vsyncpa [#allocation5], 0
    // Predicated region
    $region2: #{tpu_custom_call.1} parent=1 // pred_check
      _
    $region3: #{tpu_custom_call.1} parent=1 // pred_check_branch
      %35 = sbr.rel (0) target = $region5
    $region4: #{tpu_custom_call.1} parent=1 // pred_region
      _
    $region5: #{tpu_custom_call.1} parent=1 // pred_fallthru
      _
    // Predicated region
    $region6: #{tpu_custom_call.1} parent=1 // pred_check
      _
    $region7: #{tpu_custom_call.1} parent=1 // pred_check_branch
      %37 = sbr.rel (0) target = $region9
    $region8: #{tpu_custom_call.1} parent=1 // pred_region
      %s39 = ssub.s32 64, 64
      %40 = vsyncadd [#allocation4], %s39
      %s42 = sshll.u32 [#allocation3], 4
      %s43 = int_to_ptr.vmem [resolvable:$true] %s42
      %45 = dma.hbm_to_vmem [thread:$0]  %s1, 64, %s43, [#allocation4]
    $region9: #{tpu_custom_call.1} parent=1 // pred_fallthru
      _
    // Predicated region
    $region10: #{tpu_custom_call.1} parent=1 // pred_check
      _
    $region11: #{tpu_custom_call.1} parent=1 // pred_check_branch
      %47 = sbr.rel (0) target = $region13
    $region12: #{tpu_custom_call.1} parent=1 // pred_region
      %s49 = ssub.s32 16, 16
      %50 = vsyncadd [#allocation7], %s49
      %s52 = sshll.u32 [#allocation6], 4
      %s53 = int_to_ptr.vmem [resolvable:$true] %s52
      %55 = dma.hbm_to_vmem [thread:$0]  %s2, 16, %s53, [#allocation7]
    $region13: #{tpu_custom_call.1} parent=1 // pred_fallthru
      _
    // Predicated region
    $region14: #{tpu_custom_call.1} parent=1 // pred_check
      _
    $region15: #{tpu_custom_call.1} parent=1 // pred_check_branch
      %57 = sbr.rel (0) target = $region17
    $region16: #{tpu_custom_call.1} parent=1 // pred_region
      %s59 = ssub.s32 16, 16
      %60 = vsyncadd [#allocation7], %s59
      %s62 = sshll.u32 [#allocation8], 4
      %s63 = int_to_ptr.vmem [resolvable:$true] %s62
      %65 = dma.hbm_to_vmem [thread:$0]  %s3, 16, %s63, [#allocation7]
    $region17: #{tpu_custom_call.1} parent=1 // pred_fallthru
      _
    // Predicated region
    $region18: #{tpu_custom_call.1} parent=1 // pred_check
      _
    $region19: #{tpu_custom_call.1} parent=1 // pred_check_branch
      %67 = sbr.rel (0) target = $region21
    $region20: #{tpu_custom_call.1} parent=1 // pred_region
      %s69 = ssub.s32 1024, 1024
      %70 = vsyncadd [#allocation10], %s69
      %s71 = sshll.u32 [#allocation9], 4
      %s72 = int_to_ptr.vmem [resolvable:$true] %s71
      %77 = dma.hbm_to_vmem [thread:$0]  %s4, 1024, %s72, [#allocation10], 128, 128, 8
    $region21: #{tpu_custom_call.1} parent=1 // pred_fallthru
      _
    // Predicated region
    $region22: #{tpu_custom_call.1} parent=1 // pred_check
      _
    $region23: #{tpu_custom_call.1} parent=1 // pred_check_branch
      %79 = sbr.rel (0) target = $region25
    $region24: #{tpu_custom_call.1} parent=1 // pred_region
      %s81 = ssub.s32 16, 16
      %82 = vsyncadd [#allocation10], %s81
      %s84 = sshll.u32 [#allocation11], 4
      %s85 = int_to_ptr.vmem [resolvable:$true] %s84
      %87 = dma.hbm_to_vmem [thread:$0]  %s5, 16, %s85, [#allocation10]
    $region25: #{tpu_custom_call.1} parent=1 // pred_fallthru
      _
    // Predicated region
    $region26: #{tpu_custom_call.1} parent=1 // pred_check
      _
    $region27: #{tpu_custom_call.1} parent=1 // pred_check_branch
      %89 = sbr.rel (0) target = $region29
    $region28: #{tpu_custom_call.1} parent=1 // pred_region
      %s91 = ssub.s32 16, 16
      %92 = vsyncadd [#allocation13], %s91
      %s94 = sshll.u32 [#allocation12], 4
      %s95 = int_to_ptr.vmem [resolvable:$true] %s94
      %97 = dma.hbm_to_vmem [thread:$0]  %s6, 16, %s95, [#allocation13]
    $region29: #{tpu_custom_call.1} parent=1 // pred_fallthru
      _
    // Predicated region
    $region30: #{tpu_custom_call.1} parent=1 // pred_check
      _
    $region31: #{tpu_custom_call.1} parent=1 // pred_check_branch
      %99 = sbr.rel (0) target = $region33
    $region32: #{tpu_custom_call.1} parent=1 // pred_region
      %s101 = ssub.s32 16384, 16384
      %102 = vsyncadd [#allocation13], %s101
      %s103 = sshll.u32 [#allocation14], 4
      %s104 = int_to_ptr.vmem [resolvable:$true] %s103
      %109 = dma.hbm_to_vmem [thread:$0]  %s7, 16384, %s104, [#allocation13], 1024, 1024, 64
    $region33: #{tpu_custom_call.1} parent=1 // pred_fallthru
      _
    // Predicated region
    $region34: #{tpu_custom_call.1} parent=1 // pred_check
      _
    $region35: #{tpu_custom_call.1} parent=1 // pred_check_branch
      %111 = sbr.rel (0) target = $region37
    $region36: #{tpu_custom_call.1} parent=1 // pred_region
      %s113 = ssub.s32 128, 128
      %114 = vsyncadd [#allocation16], %s113
      %s116 = sshll.u32 [#allocation15], 4
      %s117 = int_to_ptr.vmem [resolvable:$true] %s116
      %119 = dma.hbm_to_vmem [thread:$0]  %s8, 128, %s117, [#allocation16]
    $region37: #{tpu_custom_call.1} parent=1 // pred_fallthru
      _
    // Predicated region
    $region38: #{tpu_custom_call.1} parent=1 // pred_check
      _
    $region39: #{tpu_custom_call.1} parent=1 // pred_check_branch
      %121 = sbr.rel (0) target = $region41
    $region40: #{tpu_custom_call.1} parent=1 // pred_region
      %s123 = ssub.s32 128, 128
      %124 = vsyncadd [#allocation16], %s123
      %s126 = sshll.u32 [#allocation17], 4
      %s127 = int_to_ptr.vmem [resolvable:$true] %s126
      %129 = dma.hbm_to_vmem [thread:$0]  %s9, 128, %s127, [#allocation16]
    $region41: #{tpu_custom_call.1} parent=1 // pred_fallthru
      _
    // Predicated region
    $region42: #{tpu_custom_call.1} parent=1 // pred_check
      _
    $region43: #{tpu_custom_call.1} parent=1 // pred_check_branch
      %131 = sbr.rel (0) target = $region45
    $region44: #{tpu_custom_call.1} parent=1 // pred_region
      %s133 = ssub.s32 65536, 65536
      %134 = vsyncadd [#allocation19], %s133
      %s135 = sshll.u32 [#allocation18], 4
      %s136 = int_to_ptr.vmem [resolvable:$true] %s135
      %141 = dma.hbm_to_vmem [thread:$0]  %s10, 65536, %s136, [#allocation19], 512, 512, 32
    $region45: #{tpu_custom_call.1} parent=1 // pred_fallthru
      _
    // Predicated region
    $region46: #{tpu_custom_call.1} parent=1 // pred_check
      _
    $region47: #{tpu_custom_call.1} parent=1 // pred_check_branch
      %143 = sbr.rel (0) target = $region49
    $region48: #{tpu_custom_call.1} parent=1 // pred_region
      %s145 = ssub.s32 64, 64
      %146 = vsyncadd [#allocation19], %s145
      %s148 = sshll.u32 [#allocation20], 4
      %s149 = int_to_ptr.vmem [resolvable:$true] %s148
      %151 = dma.hbm_to_vmem [thread:$0]  %s11, 64, %s149, [#allocation19]
    $region49: #{tpu_custom_call.1} parent=1 // pred_fallthru
      _
    // Predicated region
    $region50: #{tpu_custom_call.1} parent=1 // pred_check
      _
    $region51: #{tpu_custom_call.1} parent=1 // pred_check_branch
      %153 = sbr.rel (0) target = $region53
    $region52: #{tpu_custom_call.1} parent=1 // pred_region
      %s155 = ssub.s32 64, 64
      %156 = vsyncadd [#allocation22], %s155
      %s158 = sshll.u32 [#allocation21], 4
      %s159 = int_to_ptr.vmem [resolvable:$true] %s158
      %161 = dma.hbm_to_vmem [thread:$0]  %s12, 64, %s159, [#allocation22]
    $region53: #{tpu_custom_call.1} parent=1 // pred_fallthru
      _
    // Predicated region
    $region54: #{tpu_custom_call.1} parent=1 // pred_check
      _
    $region55: #{tpu_custom_call.1} parent=1 // pred_check_branch
      %163 = sbr.rel (0) target = $region57
    $region56: #{tpu_custom_call.1} parent=1 // pred_region
      %s165 = ssub.s32 16384, 16384
      %166 = vsyncadd [#allocation22], %s165
      %s167 = sshll.u32 [#allocation23], 4
      %s168 = int_to_ptr.vmem [resolvable:$true] %s167
      %173 = dma.hbm_to_vmem [thread:$0]  %s13, 16384, %s168, [#allocation22], 256, 256, 16
    $region57: #{tpu_custom_call.1} parent=1 // pred_fallthru
      _
    // Predicated region
    $region58: #{tpu_custom_call.1} parent=1 // pred_check
      _
    $region59: #{tpu_custom_call.1} parent=1 // pred_check_branch
      %175 = sbr.rel (0) target = $region61
    $region60: #{tpu_custom_call.1} parent=1 // pred_region
      %s177 = ssub.s32 32, 32
      %178 = vsyncadd [#allocation25], %s177
      %s180 = sshll.u32 [#allocation24], 4
      %s181 = int_to_ptr.vmem [resolvable:$true] %s180
      %183 = dma.hbm_to_vmem [thread:$0]  %s14, 32, %s181, [#allocation25]
    $region61: #{tpu_custom_call.1} parent=1 // pred_fallthru
      _
    // Predicated region
    $region62: #{tpu_custom_call.1} parent=1 // pred_check
      _
    $region63: #{tpu_custom_call.1} parent=1 // pred_check_branch
      %185 = sbr.rel (0) target = $region65
    $region64: #{tpu_custom_call.1} parent=1 // pred_region
      %s187 = ssub.s32 32, 32
      %188 = vsyncadd [#allocation25], %s187
      %s190 = sshll.u32 [#allocation26], 4
      %s191 = int_to_ptr.vmem [resolvable:$true] %s190
      %193 = dma.hbm_to_vmem [thread:$0]  %s15, 32, %s191, [#allocation25]
    $region65: #{tpu_custom_call.1} parent=1 // pred_fallthru
      _
    // Predicated region
    $region66: #{tpu_custom_call.1} parent=1 // pred_check
      _
    $region67: #{tpu_custom_call.1} parent=1 // pred_check_branch
      %195 = sbr.rel (0) target = $region69
    $region68: #{tpu_custom_call.1} parent=1 // pred_region
      _
    $region69: #{tpu_custom_call.1} parent=1 // pred_fallthru
      _
    // Predicated region
    $region70: #{tpu_custom_call.1} parent=1 // pred_check
      _
    $region71: #{tpu_custom_call.1} parent=1 // pred_check_branch
      %197 = sbr.rel (0) target = $region73
    $region72: #{tpu_custom_call.1} parent=1 // pred_region
      %s199 = ssub.s32 16, 16
      %200 = vsyncadd [#allocation28], %s199
      %s202 = sshll.u32 [#allocation27], 4
      %s203 = int_to_ptr.vmem [resolvable:$true] %s202
      %205 = dma.hbm_to_vmem [thread:$0]  %s17, 16, %s203, [#allocation28]
    $region73: #{tpu_custom_call.1} parent=1 // pred_fallthru
      _
    // Predicated region
    $region74: #{tpu_custom_call.1} parent=1 // pred_check
      _
    $region75: #{tpu_custom_call.1} parent=1 // pred_check_branch
      %207 = sbr.rel (0) target = $region77
    $region76: #{tpu_custom_call.1} parent=1 // pred_region
      %s209 = ssub.s32 16, 16
      %210 = vsyncadd [#allocation28], %s209
      %s212 = sshll.u32 [#allocation29], 4
      %s213 = int_to_ptr.vmem [resolvable:$true] %s212
      %215 = dma.hbm_to_vmem [thread:$0]  %s18, 16, %s213, [#allocation28]
    $region77: #{tpu_custom_call.1} parent=1 // pred_fallthru
      _
    // Predicated region
    $region78: #{tpu_custom_call.1} parent=1 // pred_check
      _
    $region79: #{tpu_custom_call.1} parent=1 // pred_check_branch
      %217 = sbr.rel (0) target = $region81
    $region80: #{tpu_custom_call.1} parent=1 // pred_region
      %218 = dma.done [#allocation4], 64
    $region81: #{tpu_custom_call.1} parent=1 // pred_fallthru
      _
    // Predicated region
    $region82: #{tpu_custom_call.1} parent=1 // pred_check
      _
    $region83: #{tpu_custom_call.1} parent=1 // pred_check_branch
      %220 = sbr.rel (0) target = $region85
    $region84: #{tpu_custom_call.1} parent=1 // pred_region
      %221 = dma.done [#allocation7], 16
    $region85: #{tpu_custom_call.1} parent=1 // pred_fallthru
      _
    // Predicated region
    $region86: #{tpu_custom_call.1} parent=1 // pred_check
      _
    $region87: #{tpu_custom_call.1} parent=1 // pred_check_branch
      %223 = sbr.rel (0) target = $region89
    $region88: #{tpu_custom_call.1} parent=1 // pred_region
      %224 = dma.done [#allocation7], 16
    $region89: #{tpu_custom_call.1} parent=1 // pred_fallthru
      _
    // Predicated region
    $region90: #{tpu_custom_call.1} parent=1 // pred_check
      _
    $region91: #{tpu_custom_call.1} parent=1 // pred_check_branch
      %226 = sbr.rel (0) target = $region93
    $region92: #{tpu_custom_call.1} parent=1 // pred_region
      %227 = dma.done [#allocation10], 1024
    $region93: #{tpu_custom_call.1} parent=1 // pred_fallthru
      _
    // Predicated region
    $region94: #{tpu_custom_call.1} parent=1 // pred_check
      _
    $region95: #{tpu_custom_call.1} parent=1 // pred_check_branch
      %229 = sbr.rel (0) target = $region97
    $region96: #{tpu_custom_call.1} parent=1 // pred_region
      %230 = dma.done [#allocation10], 16
    $region97: #{tpu_custom_call.1} parent=1 // pred_fallthru
      _
    // Predicated region
    $region98: #{tpu_custom_call.1} parent=1 // pred_check
      _
    $region99: #{tpu_custom_call.1} parent=1 // pred_check_branch
      %232 = sbr.rel (0) target = $region101
    $region100: #{tpu_custom_call.1} parent=1 // pred_region
      %233 = dma.done [#allocation13], 16
    $region101: #{tpu_custom_call.1} parent=1 // pred_fallthru
      _
    // Predicated region
    $region102: #{tpu_custom_call.1} parent=1 // pred_check
      _
    $region103: #{tpu_custom_call.1} parent=1 // pred_check_branch
      %235 = sbr.rel (0) target = $region105
    $region104: #{tpu_custom_call.1} parent=1 // pred_region
      %236 = dma.done [#allocation13], 16384
    $region105: #{tpu_custom_call.1} parent=1 // pred_fallthru
      _
    // Predicated region
    $region106: #{tpu_custom_call.1} parent=1 // pred_check
      _
    $region107: #{tpu_custom_call.1} parent=1 // pred_check_branch
      %238 = sbr.rel (0) target = $region109
    $region108: #{tpu_custom_call.1} parent=1 // pred_region
      %239 = dma.done [#allocation16], 128
    $region109: #{tpu_custom_call.1} parent=1 // pred_fallthru
      _
    // Predicated region
    $region110: #{tpu_custom_call.1} parent=1 // pred_check
      _
    $region111: #{tpu_custom_call.1} parent=1 // pred_check_branch
      %241 = sbr.rel (0) target = $region113
    $region112: #{tpu_custom_call.1} parent=1 // pred_region
      %242 = dma.done [#allocation16], 128
    $region113: #{tpu_custom_call.1} parent=1 // pred_fallthru
      _
    // Predicated region
    $region114: #{tpu_custom_call.1} parent=1 // pred_check
      _
    $region115: #{tpu_custom_call.1} parent=1 // pred_check_branch
      %244 = sbr.rel (0) target = $region117
    $region116: #{tpu_custom_call.1} parent=1 // pred_region
      %245 = dma.done [#allocation19], 65536
    $region117: #{tpu_custom_call.1} parent=1 // pred_fallthru
      _
    // Predicated region
    $region118: #{tpu_custom_call.1} parent=1 // pred_check
      _
    $region119: #{tpu_custom_call.1} parent=1 // pred_check_branch
      %247 = sbr.rel (0) target = $region121
    $region120: #{tpu_custom_call.1} parent=1 // pred_region
      %248 = dma.done [#allocation19], 64
    $region121: #{tpu_custom_call.1} parent=1 // pred_fallthru
      _
    // Predicated region
    $region122: #{tpu_custom_call.1} parent=1 // pred_check
      _
    $region123: #{tpu_custom_call.1} parent=1 // pred_check_branch
      %250 = sbr.rel (0) target = $region125
    $region124: #{tpu_custom_call.1} parent=1 // pred_region
      %251 = dma.done [#allocation22], 64
    $region125: #{tpu_custom_call.1} parent=1 // pred_fallthru
      _
    // Predicated region
    $region126: #{tpu_custom_call.1} parent=1 // pred_check
      _
    $region127: #{tpu_custom_call.1} parent=1 // pred_check_branch
      %253 = sbr.rel (0) target = $region129
    $region128: #{tpu_custom_call.1} parent=1 // pred_region
      %254 = dma.done [#allocation22], 16384
    $region129: #{tpu_custom_call.1} parent=1 // pred_fallthru
      _
    // Predicated region
    $region130: #{tpu_custom_call.1} parent=1 // pred_check
      _
    $region131: #{tpu_custom_call.1} parent=1 // pred_check_branch
      %256 = sbr.rel (0) target = $region133
    $region132: #{tpu_custom_call.1} parent=1 // pred_region
      %257 = dma.done [#allocation25], 32
    $region133: #{tpu_custom_call.1} parent=1 // pred_fallthru
      _
    // Predicated region
    $region134: #{tpu_custom_call.1} parent=1 // pred_check
      _
    $region135: #{tpu_custom_call.1} parent=1 // pred_check_branch
      %259 = sbr.rel (0) target = $region137
    $region136: #{tpu_custom_call.1} parent=1 // pred_region
      %260 = dma.done [#allocation25], 32
    $region137: #{tpu_custom_call.1} parent=1 // pred_fallthru
      _
    // Predicated region
    $region138: #{tpu_custom_call.1} parent=1 // pred_check
      _
    $region139: #{tpu_custom_call.1} parent=1 // pred_check_branch
      %262 = sbr.rel (0) target = $region141
    $region140: #{tpu_custom_call.1} parent=1 // pred_region
      %263 = dma.done [#allocation28], 16
    $region141: #{tpu_custom_call.1} parent=1 // pred_fallthru
      _
    // Predicated region
    $region142: #{tpu_custom_call.1} parent=1 // pred_check
      _
    $region143: #{tpu_custom_call.1} parent=1 // pred_check_branch
      %265 = sbr.rel (0) target = $region145
    $region144: #{tpu_custom_call.1} parent=1 // pred_region
      %266 = dma.done [#allocation28], 16
    $region145: #{tpu_custom_call.1} parent=1 // pred_fallthru
      _
    %v267 = vld [vmem:[%s0] sm:$0xff]
    %v268 = vld [vmem:[%s0 + $0x8] sm:$0xff]
    %v269 = vld [vmem:[%s0 + $0x10] sm:$0xff]
    %v270 = vld [vmem:[%s0 + $0x18] sm:$0xff]
    %v271 = vld [vmem:[#allocation3] sm:$0x7]
    %vm272 = vcmask 23552
    %v274 = vsel %vm272, %v267, 0
    %v277 = vsel %vm272, %v268, 0
    %v280 = vsel %vm272, %v269, 0
    %v283 = vsel %vm272, %v270, 0
    %vm285 = vcmask 1042432
    %v287 = vsel %vm285, %v271, 0
    %289 = vmatprep.subr.mxu0 0.0
    %290 = vmatpush1.msra.mxu0 %v287
    %291 = vmatprep.subr.mxu0 0.0
    %292 = vmatpush1.msra.mxu0 0.0
    %293 = vmatprep.subr.mxu0 0.0
    %294 = vmatpush1.msra.mxu0 0.0
    %295 = vmatprep.subr.mxu0 0.0
    %296 = vmatpush1.msra.mxu0 0.0
    %297 = vmatprep.subr.mxu0 0.0
    %298 = vmatpush1.msra.mxu0 0.0
    %299 = vmatprep.subr.mxu0 0.0
    %300 = vmatpush1.msra.mxu0 0.0
    %301 = vmatprep.subr.mxu0 0.0
    %302 = vmatpush1.msra.mxu0 0.0
    %303 = vmatprep.subr.mxu0 0.0
    %304 = vmatpush1.msra.mxu0 0.0
    %305 = vmatprep.subr.mxu0 0.0
    %306 = vmatpush1.msra.mxu0 0.0
    %307 = vmatprep.subr.mxu0 0.0
    %308 = vmatpush1.msra.mxu0 0.0
    %309 = vmatprep.subr.mxu0 0.0
    %310 = vmatpush1.msra.mxu0 0.0
    %311 = vmatprep.subr.mxu0 0.0
    %312 = vmatpush1.msra.mxu0 0.0
    %313 = vmatprep.subr.mxu0 0.0
    %314 = vmatpush1.msra.mxu0 0.0
    %315 = vmatprep.subr.mxu0 0.0
    %316 = vmatpush1.msra.mxu0 0.0
    %317 = vmatprep.subr.mxu0 0.0
    %318 = vmatpush1.msra.mxu0 0.0
    %319 = vmatprep.subr.mxu0 0.0
    %320 = vmatpush1.msra.mxu0 0.0
    %321 = vmatprep.subr.mxu0 0.0
    %322 = vmatpush1.msra.mxu0 0.0
    %323 = vmatprep.subr.mxu0 0.0
    %324 = vmatpush1.msra.mxu0 0.0
    %325 = vmatprep.subr.mxu0 0.0
    %326 = vmatpush1.msra.mxu0 0.0
    %327 = vmatprep.subr.mxu0 0.0
    %328 = vmatpush1.msra.mxu0 0.0
    %329 = vmatprep.subr.mxu0 0.0
    %330 = vmatpush1.msra.mxu0 0.0
    %331 = vmatprep.subr.mxu0 0.0
    %332 = vmatpush1.msra.mxu0 0.0
    %333 = vmatprep.subr.mxu0 0.0
    %334 = vmatpush1.msra.mxu0 0.0
    %335 = vmatprep.subr.mxu0 0.0
    %336 = vmatpush1.msra.mxu0 0.0
    %337 = vmatprep.subr.mxu0 0.0
    %338 = vmatpush1.msra.mxu0 0.0
    %339 = vmatprep.subr.mxu0 0.0
    %340 = vmatpush1.msra.mxu0 0.0
    %341 = vmatprep.subr.mxu0 0.0
    %342 = vmatpush1.msra.mxu0 0.0
    %343 = vmatprep.subr.mxu0 0.0
    %344 = vmatpush1.msra.mxu0 0.0
    %345 = vmatprep.subr.mxu0 0.0
    %346 = vmatpush1.msra.mxu0 0.0
    %347 = vmatprep.subr.mxu0 0.0
    %348 = vmatpush1.msra.mxu0 0.0
    %349 = vmatprep.subr.mxu0 0.0
    %350 = vmatpush1.msra.mxu0 0.0
    %351 = vmatprep.subr.mxu0 0.0
    %352 = vmatpush1.msra.mxu0 0.0
    %353 = vmatprep.mubr.f32.mxu0 0.0
    %354 = vmatmul.mubr.f32.gmra.mrb[0].mxu0 %v274
    %v355 = vpop.f32.mrb[0].mxu0
    %v356 = vadd.f32 0.0, %v355
    %v357 = vpop.f32.mrb[0].mxu0
    %358 = vmatprep.mubr.f32.mxu0 0.0
    %359 = vmatmul.mubr.f32.gmra.mrb[0].mxu0 %v277
    %v360 = vpop.f32.mrb[0].mxu0
    %v361 = vadd.f32 0.0, %v360
    %v362 = vpop.f32.mrb[0].mxu0
    %363 = vmatprep.mubr.f32.mxu0 0.0
    %364 = vmatmul.mubr.f32.gmra.mrb[0].mxu0 %v280
    %v365 = vpop.f32.mrb[0].mxu0
    %v366 = vadd.f32 0.0, %v365
    %v367 = vpop.f32.mrb[0].mxu0
    %368 = vmatprep.mubr.f32.mxu0 0.0
    %369 = vmatmul.mubr.f32.gmra.mrb[0].mxu0 %v283
    %v370 = vpop.f32.mrb[0].mxu0
    %v371 = vadd.f32 0.0, %v370
    %v372 = vpop.f32.mrb[0].mxu0
    %373 = vdwg.mxu0
    %v374 = vld [vmem:[#allocation6] sm:$0x1]
    %v375 = vld [vmem:[#allocation8] sm:$0x1]
    %vm376 = vcmask 523264
    %v377 = vsel %vm376, %v356, 0.0
    %v378 = vsel %vm376, %v361, 0.0
    %v379 = vadd.f32 %v377, %v378
    %v380 = vsel %vm376, %v366, 0.0
    %v381 = vadd.f32 %v379, %v380
    %v382 = vsel %vm376, %v371, 0.0
    %v383 = vadd.f32 %v381, %v382
    %v384 = vrot.slane %v383, 4
    %v385 = vadd.f32 %v383, %v384
    %v386 = vrot.slane %v385, 2
    %v387 = vadd.f32 %v385, %v386
    %v388 = vrot.slane %v387, 1
    %v389 = vadd.f32 %v387, %v388
    %v390 = vrcp.pop 32.0
    %v391 = vmul.f32 %v389, %v390
    %v392 = vsub.f32 %v356, %v391
    %v393 = vsub.f32 %v361, %v391
    %v394 = vsub.f32 %v366, %v391
    %v395 = vsub.f32 %v371, %v391
    %v396 = vmul.f32 %v392, %v392
    %v397 = vmul.f32 %v393, %v393
    %v398 = vmul.f32 %v394, %v394
    %v399 = vmul.f32 %v395, %v395
    %v400 = vsel %vm376, %v396, 0.0
    %v401 = vsel %vm376, %v397, 0.0
    %v402 = vadd.f32 %v400, %v401
    %v403 = vsel %vm376, %v398, 0.0
    %v404 = vadd.f32 %v402, %v403
    %v405 = vsel %vm376, %v399, 0.0
    %v406 = vadd.f32 %v404, %v405
    %v407 = vrot.slane %v406, 4
    %v408 = vadd.f32 %v406, %v407
    %v409 = vrot.slane %v408, 2
    %v410 = vadd.f32 %v408, %v409
    %v411 = vrot.slane %v410, 1
    %v412 = vadd.f32 %v410, %v411
    %v413 = vmul.f32 %v412, %v390
    %v414 = vadd.f32 %v413, 1e-05
    %v415 = vrsqrt.pop %v414
    %v416 = vmul.f32 %v392, %v415
    %v417 = vmul.f32 %v393, %v415
    %v418 = vmul.f32 %v394, %v415
    %v419 = vmul.f32 %v395, %v415
    %v421 = vlaneseq
    %v422 = vshrl.u32 %v421, 7
    %v423 = vsub.s32 0, %v422
    %v424 = vrot.slane %v374, %v423
    %v426 = vmul.f32 %v416, %v424
    %v427 = vmul.f32 %v417, %v424
    %v428 = vmul.f32 %v418, %v424
    %v429 = vmul.f32 %v419, %v424
    %v431 = vlaneseq
    %v432 = vshrl.u32 %v431, 7
    %v433 = vsub.s32 0, %v432
    %v434 = vrot.slane %v375, %v433
    %v436 = vadd.f32 %v426, %v434
    %v437 = vadd.f32 %v427, %v434
    %v438 = vadd.f32 %v428, %v434
    %v439 = vadd.f32 %v429, %v434
    %v440 = vmax.f32 %v436, 0.0
    %v441 = vmax.f32 %v437, 0.0
    %v442 = vmax.f32 %v438, 0.0
    %v443 = vmax.f32 %v439, 0.0
    %v444 = vld [vmem:[#allocation9] sm:$0xff]
    %v445 = vld [vmem:[#allocation9 + $0x8] sm:$0xff]
    %v446 = vld [vmem:[#allocation9 + $0x10] sm:$0xff]
    %v447 = vld [vmem:[#allocation9 + $0x18] sm:$0xff]
    %v448 = vld [vmem:[#allocation9 + $0x20] sm:$0xff]
    %v449 = vld [vmem:[#allocation9 + $0x28] sm:$0xff]
    %v450 = vld [vmem:[#allocation9 + $0x30] sm:$0xff]
    %v451 = vld [vmem:[#allocation9 + $0x38] sm:$0xff]
    %v453 = vsel %vm376, %v440, 0
    %v456 = vsel %vm376, %v441, 0
    %v459 = vsel %vm376, %v442, 0
    %v462 = vsel %vm376, %v443, 0
    %464 = vmatprep.subr.mxu0 0.0
    %465 = vmatpush1.msra.mxu0 %v444
    %466 = vmatprep.subr.mxu0 0.0
    %467 = vmatpush1.msra.mxu0 %v445
    %468 = vmatprep.subr.mxu0 0.0
    %469 = vmatpush1.msra.mxu0 %v446
    %470 = vmatprep.subr.mxu0 0.0
    %471 = vmatpush1.msra.mxu0 %v447
    %472 = vmatprep.subr.mxu0 0.0
    %473 = vmatpush1.msra.mxu0 %v448
    %474 = vmatprep.subr.mxu0 0.0
    %475 = vmatpush1.msra.mxu0 %v449
    %476 = vmatprep.subr.mxu0 0.0
    %477 = vmatpush1.msra.mxu0 %v450
    %478 = vmatprep.subr.mxu0 0.0
    %479 = vmatpush1.msra.mxu0 %v451
    %480 = vmatprep.subr.mxu0 0.0
    %481 = vmatpush1.msra.mxu0 0.0
    %482 = vmatprep.subr.mxu0 0.0
    %483 = vmatpush1.msra.mxu0 0.0
    %484 = vmatprep.subr.mxu0 0.0
    %485 = vmatpush1.msra.mxu0 0.0
    %486 = vmatprep.subr.mxu0 0.0
    %487 = vmatpush1.msra.mxu0 0.0
    %488 = vmatprep.subr.mxu0 0.0
    %489 = vmatpush1.msra.mxu0 0.0
    %490 = vmatprep.subr.mxu0 0.0
    %491 = vmatpush1.msra.mxu0 0.0
    %492 = vmatprep.subr.mxu0 0.0
    %493 = vmatpush1.msra.mxu0 0.0
    %494 = vmatprep.subr.mxu0 0.0
    %495 = vmatpush1.msra.mxu0 0.0
    %496 = vmatprep.subr.mxu0 0.0
    %497 = vmatpush1.msra.mxu0 0.0
    %498 = vmatprep.subr.mxu0 0.0
    %499 = vmatpush1.msra.mxu0 0.0
    %500 = vmatprep.subr.mxu0 0.0
    %501 = vmatpush1.msra.mxu0 0.0
    %502 = vmatprep.subr.mxu0 0.0
    %503 = vmatpush1.msra.mxu0 0.0
    %504 = vmatprep.subr.mxu0 0.0
    %505 = vmatpush1.msra.mxu0 0.0
    %506 = vmatprep.subr.mxu0 0.0
    %507 = vmatpush1.msra.mxu0 0.0
    %508 = vmatprep.subr.mxu0 0.0
    %509 = vmatpush1.msra.mxu0 0.0
    %510 = vmatprep.subr.mxu0 0.0
    %511 = vmatpush1.msra.mxu0 0.0
    %512 = vmatprep.subr.mxu0 0.0
    %513 = vmatpush1.msra.mxu0 0.0
    %514 = vmatprep.subr.mxu0 0.0
    %515 = vmatpush1.msra.mxu0 0.0
    %516 = vmatprep.subr.mxu0 0.0
    %517 = vmatpush1.msra.mxu0 0.0
    %518 = vmatprep.subr.mxu0 0.0
    %519 = vmatpush1.msra.mxu0 0.0
    %520 = vmatprep.subr.mxu0 0.0
    %521 = vmatpush1.msra.mxu0 0.0
    %522 = vmatprep.subr.mxu0 0.0
    %523 = vmatpush1.msra.mxu0 0.0
    %524 = vmatprep.subr.mxu0 0.0
    %525 = vmatpush1.msra.mxu0 0.0
    %526 = vmatprep.subr.mxu0 0.0
    %527 = vmatpush1.msra.mxu0 0.0
    %528 = vmatprep.mubr.f32.mxu0 0.0
    %529 = vmatmul.mubr.f32.gmra.mrb[0].mxu0 %v453
    %v530 = vpop.f32.mrb[0].mxu0
    %v531 = vadd.f32 0.0, %v530
    %v532 = vpop.f32.mrb[0].mxu0
    %533 = vmatprep.mubr.f32.mxu0 0.0
    %534 = vmatmul.mubr.f32.gmra.mrb[0].mxu0 %v456
    %v535 = vpop.f32.mrb[0].mxu0
    %v536 = vadd.f32 0.0, %v535
    %v537 = vpop.f32.mrb[0].mxu0
    %538 = vmatprep.mubr.f32.mxu0 0.0
    %539 = vmatmul.mubr.f32.gmra.mrb[0].mxu0 %v459
    %v540 = vpop.f32.mrb[0].mxu0
    %v541 = vadd.f32 0.0, %v540
    %v542 = vpop.f32.mrb[0].mxu0
    %543 = vmatprep.mubr.f32.mxu0 0.0
    %544 = vmatmul.mubr.f32.gmra.mrb[0].mxu0 %v462
    %v545 = vpop.f32.mrb[0].mxu0
    %v546 = vadd.f32 0.0, %v545
    %v547 = vpop.f32.mrb[0].mxu0
    %548 = vdwg.mxu0
    %v549 = vld [vmem:[#allocation11] sm:$0x1]
    %v550 = vld [vmem:[#allocation12] sm:$0x1]
    %v551 = vadd.f32 %v531, %v536
    %v552 = vadd.f32 %v551, %v541
    %v553 = vadd.f32 %v552, %v546
    %v554 = vrot.slane %v553, 4
    %v555 = vadd.f32 %v553, %v554
    %v556 = vrot.slane %v555, 2
    %v557 = vadd.f32 %v555, %v556
    %v558 = vrot.slane %v557, 1
    %v559 = vadd.f32 %v557, %v558
    %v560 = vmul.f32 %v559, %v390
    %v561 = vsub.f32 %v531, %v560
    %v562 = vsub.f32 %v536, %v560
    %v563 = vsub.f32 %v541, %v560
    %v564 = vsub.f32 %v546, %v560
    %v565 = vmul.f32 %v561, %v561
    %v566 = vmul.f32 %v562, %v562
    %v567 = vmul.f32 %v563, %v563
    %v568 = vmul.f32 %v564, %v564
    %v569 = vadd.f32 %v565, %v566
    %v570 = vadd.f32 %v569, %v567
    %v571 = vadd.f32 %v570, %v568
    %v572 = vrot.slane %v571, 4
    %v573 = vadd.f32 %v571, %v572
    %v574 = vrot.slane %v573, 2
    %v575 = vadd.f32 %v573, %v574
    %v576 = vrot.slane %v575, 1
    %v577 = vadd.f32 %v575, %v576
    %v578 = vmul.f32 %v577, %v390
    %v579 = vadd.f32 %v578, 1e-05
    %v580 = vrsqrt.pop %v579
    %v581 = vmul.f32 %v561, %v580
    %v582 = vmul.f32 %v562, %v580
    %v583 = vmul.f32 %v563, %v580
    %v584 = vmul.f32 %v564, %v580
    %v586 = vlaneseq
    %v587 = vshrl.u32 %v586, 7
    %v588 = vsub.s32 0, %v587
    %v589 = vrot.slane %v549, %v588
    %v591 = vmul.f32 %v581, %v589
    %v592 = vmul.f32 %v582, %v589
    %v593 = vmul.f32 %v583, %v589
    %v594 = vmul.f32 %v584, %v589
    %v596 = vlaneseq
    %v597 = vshrl.u32 %v596, 7
    %v598 = vsub.s32 0, %v597
    %v599 = vrot.slane %v550, %v598
    %v601 = vadd.f32 %v591, %v599
    %v602 = vadd.f32 %v592, %v599
    %v603 = vadd.f32 %v593, %v599
    %v604 = vadd.f32 %v594, %v599
    %v605 = vmax.f32 %v601, 0.0
    %v606 = vmax.f32 %v602, 0.0
    %v607 = vmax.f32 %v603, 0.0
    %v608 = vmax.f32 %v604, 0.0
    %v609 = vld [vmem:[#allocation14] sm:$0xff]
    %v610 = vld [vmem:[#allocation14 + $0x8] sm:$0xff]
    %v611 = vld [vmem:[#allocation14 + $0x10] sm:$0xff]
    %v612 = vld [vmem:[#allocation14 + $0x18] sm:$0xff]
    %v613 = vld [vmem:[#allocation14 + $0x20] sm:$0xff]
    %v614 = vld [vmem:[#allocation14 + $0x28] sm:$0xff]
    %v615 = vld [vmem:[#allocation14 + $0x30] sm:$0xff]
    %v616 = vld [vmem:[#allocation14 + $0x38] sm:$0xff]
    %v617 = vld [vmem:[#allocation14 + $0x40] sm:$0xff]
    %v618 = vld [vmem:[#allocation14 + $0x48] sm:$0xff]
    %v619 = vld [vmem:[#allocation14 + $0x50] sm:$0xff]
    %v620 = vld [vmem:[#allocation14 + $0x58] sm:$0xff]
    %v621 = vld [vmem:[#allocation14 + $0x60] sm:$0xff]
    %v622 = vld [vmem:[#allocation14 + $0x68] sm:$0xff]
    %v623 = vld [vmem:[#allocation14 + $0x70] sm:$0xff]
    %v624 = vld [vmem:[#allocation14 + $0x78] sm:$0xff]
    %v625 = vld [vmem:[#allocation14 + $0x80] sm:$0xff]
    %v626 = vld [vmem:[#allocation14 + $0x88] sm:$0xff]
    %v627 = vld [vmem:[#allocation14 + $0x90] sm:$0xff]
    %v628 = vld [vmem:[#allocation14 + $0x98] sm:$0xff]
    %v629 = vld [vmem:[#allocation14 + $0xa0] sm:$0xff]
    %v630 = vld [vmem:[#allocation14 + $0xa8] sm:$0xff]
    %v631 = vld [vmem:[#allocation14 + $0xb0] sm:$0xff]
    %v632 = vld [vmem:[#allocation14 + $0xb8] sm:$0xff]
    %v633 = vld [vmem:[#allocation14 + $0xc0] sm:$0xff]
    %v634 = vld [vmem:[#allocation14 + $0xc8] sm:$0xff]
    %v635 = vld [vmem:[#allocation14 + $0xd0] sm:$0xff]
    %v636 = vld [vmem:[#allocation14 + $0xd8] sm:$0xff]
    %v637 = vld [vmem:[#allocation14 + $0xe0] sm:$0xff]
    %v638 = vld [vmem:[#allocation14 + $0xe8] sm:$0xff]
    %v639 = vld [vmem:[#allocation14 + $0xf0] sm:$0xff]
    %v640 = vld [vmem:[#allocation14 + $0xf8] sm:$0xff]
    %v641 = vld [vmem:[#allocation14 + $0x100] sm:$0xff]
    %v642 = vld [vmem:[#allocation14 + $0x108] sm:$0xff]
    %v643 = vld [vmem:[#allocation14 + $0x110] sm:$0xff]
    %v644 = vld [vmem:[#allocation14 + $0x118] sm:$0xff]
    %v645 = vld [vmem:[#allocation14 + $0x120] sm:$0xff]
    %v646 = vld [vmem:[#allocation14 + $0x128] sm:$0xff]
    %v647 = vld [vmem:[#allocation14 + $0x130] sm:$0xff]
    %v648 = vld [vmem:[#allocation14 + $0x138] sm:$0xff]
    %v649 = vld [vmem:[#allocation14 + $0x140] sm:$0xff]
    %v650 = vld [vmem:[#allocation14 + $0x148] sm:$0xff]
    %v651 = vld [vmem:[#allocation14 + $0x150] sm:$0xff]
    %v652 = vld [vmem:[#allocation14 + $0x158] sm:$0xff]
    %v653 = vld [vmem:[#allocation14 + $0x160] sm:$0xff]
    %v654 = vld [vmem:[#allocation14 + $0x168] sm:$0xff]
    %v655 = vld [vmem:[#allocation14 + $0x170] sm:$0xff]
    %v656 = vld [vmem:[#allocation14 + $0x178] sm:$0xff]
    %v657 = vld [vmem:[#allocation14 + $0x180] sm:$0xff]
    %v658 = vld [vmem:[#allocation14 + $0x188] sm:$0xff]
    %v659 = vld [vmem:[#allocation14 + $0x190] sm:$0xff]
    %v660 = vld [vmem:[#allocation14 + $0x198] sm:$0xff]
    %v661 = vld [vmem:[#allocation14 + $0x1a0] sm:$0xff]
    %v662 = vld [vmem:[#allocation14 + $0x1a8] sm:$0xff]
    %v663 = vld [vmem:[#allocation14 + $0x1b0] sm:$0xff]
    %v664 = vld [vmem:[#allocation14 + $0x1b8] sm:$0xff]
    %v665 = vld [vmem:[#allocation14 + $0x1c0] sm:$0xff]
    %v666 = vld [vmem:[#allocation14 + $0x1c8] sm:$0xff]
    %v667 = vld [vmem:[#allocation14 + $0x1d0] sm:$0xff]
    %v668 = vld [vmem:[#allocation14 + $0x1d8] sm:$0xff]
    %v669 = vld [vmem:[#allocation14 + $0x1e0] sm:$0xff]
    %v670 = vld [vmem:[#allocation14 + $0x1e8] sm:$0xff]
    %v671 = vld [vmem:[#allocation14 + $0x1f0] sm:$0xff]
    %v672 = vld [vmem:[#allocation14 + $0x1f8] sm:$0xff]
    %v673 = vld [vmem:[#allocation14 + $0x200] sm:$0xff]
    %v674 = vld [vmem:[#allocation14 + $0x208] sm:$0xff]
    %v675 = vld [vmem:[#allocation14 + $0x210] sm:$0xff]
    %v676 = vld [vmem:[#allocation14 + $0x218] sm:$0xff]
    %v677 = vld [vmem:[#allocation14 + $0x220] sm:$0xff]
    %v678 = vld [vmem:[#allocation14 + $0x228] sm:$0xff]
    %v679 = vld [vmem:[#allocation14 + $0x230] sm:$0xff]
    %v680 = vld [vmem:[#allocation14 + $0x238] sm:$0xff]
    %v681 = vld [vmem:[#allocation14 + $0x240] sm:$0xff]
    %v682 = vld [vmem:[#allocation14 + $0x248] sm:$0xff]
    %v683 = vld [vmem:[#allocation14 + $0x250] sm:$0xff]
    %v684 = vld [vmem:[#allocation14 + $0x258] sm:$0xff]
    %v685 = vld [vmem:[#allocation14 + $0x260] sm:$0xff]
    %v686 = vld [vmem:[#allocation14 + $0x268] sm:$0xff]
    %v687 = vld [vmem:[#allocation14 + $0x270] sm:$0xff]
    %v688 = vld [vmem:[#allocation14 + $0x278] sm:$0xff]
    %v689 = vld [vmem:[#allocation14 + $0x280] sm:$0xff]
    %v690 = vld [vmem:[#allocation14 + $0x288] sm:$0xff]
    %v691 = vld [vmem:[#allocation14 + $0x290] sm:$0xff]
    %v692 = vld [vmem:[#allocation14 + $0x298] sm:$0xff]
    %v693 = vld [vmem:[#allocation14 + $0x2a0] sm:$0xff]
    %v694 = vld [vmem:[#allocation14 + $0x2a8] sm:$0xff]
    %v695 = vld [vmem:[#allocation14 + $0x2b0] sm:$0xff]
    %v696 = vld [vmem:[#allocation14 + $0x2b8] sm:$0xff]
    %v697 = vld [vmem:[#allocation14 + $0x2c0] sm:$0xff]
    %v698 = vld [vmem:[#allocation14 + $0x2c8] sm:$0xff]
    %v699 = vld [vmem:[#allocation14 + $0x2d0] sm:$0xff]
    %v700 = vld [vmem:[#allocation14 + $0x2d8] sm:$0xff]
    %v701 = vld [vmem:[#allocation14 + $0x2e0] sm:$0xff]
    %v702 = vld [vmem:[#allocation14 + $0x2e8] sm:$0xff]
    %v703 = vld [vmem:[#allocation14 + $0x2f0] sm:$0xff]
    %v704 = vld [vmem:[#allocation14 + $0x2f8] sm:$0xff]
    %v705 = vld [vmem:[#allocation14 + $0x300] sm:$0xff]
    %v706 = vld [vmem:[#allocation14 + $0x308] sm:$0xff]
    %v707 = vld [vmem:[#allocation14 + $0x310] sm:$0xff]
    %v708 = vld [vmem:[#allocation14 + $0x318] sm:$0xff]
    %v709 = vld [vmem:[#allocation14 + $0x320] sm:$0xff]
    %v710 = vld [vmem:[#allocation14 + $0x328] sm:$0xff]
    %v711 = vld [vmem:[#allocation14 + $0x330] sm:$0xff]
    %v712 = vld [vmem:[#allocation14 + $0x338] sm:$0xff]
    %v713 = vld [vmem:[#allocation14 + $0x340] sm:$0xff]
    %v714 = vld [vmem:[#allocation14 + $0x348] sm:$0xff]
    %v715 = vld [vmem:[#allocation14 + $0x350] sm:$0xff]
    %v716 = vld [vmem:[#allocation14 + $0x358] sm:$0xff]
    %v717 = vld [vmem:[#allocation14 + $0x360] sm:$0xff]
    %v718 = vld [vmem:[#allocation14 + $0x368] sm:$0xff]
    %v719 = vld [vmem:[#allocation14 + $0x370] sm:$0xff]
    %v720 = vld [vmem:[#allocation14 + $0x378] sm:$0xff]
    %v721 = vld [vmem:[#allocation14 + $0x380] sm:$0xff]
    %v722 = vld [vmem:[#allocation14 + $0x388] sm:$0xff]
    %v723 = vld [vmem:[#allocation14 + $0x390] sm:$0xff]
    %v724 = vld [vmem:[#allocation14 + $0x398] sm:$0xff]
    %v725 = vld [vmem:[#allocation14 + $0x3a0] sm:$0xff]
    %v726 = vld [vmem:[#allocation14 + $0x3a8] sm:$0xff]
    %v727 = vld [vmem:[#allocation14 + $0x3b0] sm:$0xff]
    %v728 = vld [vmem:[#allocation14 + $0x3b8] sm:$0xff]
    %v729 = vld [vmem:[#allocation14 + $0x3c0] sm:$0xff]
    %v730 = vld [vmem:[#allocation14 + $0x3c8] sm:$0xff]
    %v731 = vld [vmem:[#allocation14 + $0x3d0] sm:$0xff]
    %v732 = vld [vmem:[#allocation14 + $0x3d8] sm:$0xff]
    %v733 = vld [vmem:[#allocation14 + $0x3e0] sm:$0xff]
    %v734 = vld [vmem:[#allocation14 + $0x3e8] sm:$0xff]
    %v735 = vld [vmem:[#allocation14 + $0x3f0] sm:$0xff]
    %v736 = vld [vmem:[#allocation14 + $0x3f8] sm:$0xff]
    %737 = vmatprep.subr.mxu0 %v610
    %738 = vmatpush1.msra.mxu0 %v609
    %739 = vmatprep.subr.mxu0 %v618
    %740 = vmatpush1.msra.mxu0 %v617
    %741 = vmatprep.subr.mxu0 %v626
    %742 = vmatpush1.msra.mxu0 %v625
    %743 = vmatprep.subr.mxu0 %v634
    %744 = vmatpush1.msra.mxu0 %v633
    %745 = vmatprep.subr.mxu0 %v642
    %746 = vmatpush1.msra.mxu0 %v641
    %747 = vmatprep.subr.mxu0 %v650
    %748 = vmatpush1.msra.mxu0 %v649
    %749 = vmatprep.subr.mxu0 %v658
    %750 = vmatpush1.msra.mxu0 %v657
    %751 = vmatprep.subr.mxu0 %v666
    %752 = vmatpush1.msra.mxu0 %v665
    %753 = vmatprep.subr.mxu0 %v674
    %754 = vmatpush1.msra.mxu0 %v673
    %755 = vmatprep.subr.mxu0 %v682
    %756 = vmatpush1.msra.mxu0 %v681
    %757 = vmatprep.subr.mxu0 %v690
    %758 = vmatpush1.msra.mxu0 %v689
    %759 = vmatprep.subr.mxu0 %v698
    %760 = vmatpush1.msra.mxu0 %v697
    %761 = vmatprep.subr.mxu0 %v706
    %762 = vmatpush1.msra.mxu0 %v705
    %763 = vmatprep.subr.mxu0 %v714
    %764 = vmatpush1.msra.mxu0 %v713
    %765 = vmatprep.subr.mxu0 %v722
    %766 = vmatpush1.msra.mxu0 %v721
    %767 = vmatprep.subr.mxu0 %v730
    %768 = vmatpush1.msra.mxu0 %v729
    %769 = vmatprep.subr.mxu0 0.0
    %770 = vmatpush1.msra.mxu0 0.0
    %771 = vmatprep.subr.mxu0 0.0
    %772 = vmatpush1.msra.mxu0 0.0
    %773 = vmatprep.subr.mxu0 0.0
    %774 = vmatpush1.msra.mxu0 0.0
    %775 = vmatprep.subr.mxu0 0.0
    %776 = vmatpush1.msra.mxu0 0.0
    %777 = vmatprep.subr.mxu0 0.0
    %778 = vmatpush1.msra.mxu0 0.0
    %779 = vmatprep.subr.mxu0 0.0
    %780 = vmatpush1.msra.mxu0 0.0
    %781 = vmatprep.subr.mxu0 0.0
    %782 = vmatpush1.msra.mxu0 0.0
    %783 = vmatprep.subr.mxu0 0.0
    %784 = vmatpush1.msra.mxu0 0.0
    %785 = vmatprep.subr.mxu0 0.0
    %786 = vmatpush1.msra.mxu0 0.0
    %787 = vmatprep.subr.mxu0 0.0
    %788 = vmatpush1.msra.mxu0 0.0
    %789 = vmatprep.subr.mxu0 0.0
    %790 = vmatpush1.msra.mxu0 0.0
    %791 = vmatprep.subr.mxu0 0.0
    %792 = vmatpush1.msra.mxu0 0.0
    %793 = vmatprep.subr.mxu0 0.0
    %794 = vmatpush1.msra.mxu0 0.0
    %795 = vmatprep.subr.mxu0 0.0
    %796 = vmatpush1.msra.mxu0 0.0
    %797 = vmatprep.subr.mxu0 0.0
    %798 = vmatpush1.msra.mxu0 0.0
    %799 = vmatprep.subr.mxu0 0.0
    %800 = vmatpush1.msra.mxu0 0.0
    %801 = vmatprep.mubr.f32.mxu0 0.0
    %802 = vmatmul.mubr.f32.gmra.mrb[0].mxu0 %v605
    %v803 = vpop.f32.mrb[0].mxu0
    %v804 = vadd.f32 0.0, %v803
    %v805 = vpop.f32.mrb[0].mxu0
    %v806 = vadd.f32 0.0, %v805
    %807 = vmatprep.mubr.f32.mxu0 0.0
    %808 = vmatmul.mubr.f32.gmra.mrb[0].mxu0 %v606
    %v809 = vpop.f32.mrb[0].mxu0
    %v810 = vadd.f32 0.0, %v809
    %v811 = vpop.f32.mrb[0].mxu0
    %v812 = vadd.f32 0.0, %v811
    %813 = vmatprep.mubr.f32.mxu0 0.0
    %814 = vmatmul.mubr.f32.gmra.mrb[0].mxu0 %v607
    %v815 = vpop.f32.mrb[0].mxu0
    %v816 = vadd.f32 0.0, %v815
    %v817 = vpop.f32.mrb[0].mxu0
    %v818 = vadd.f32 0.0, %v817
    %819 = vmatprep.mubr.f32.mxu0 0.0
    %820 = vmatmul.mubr.f32.gmra.mrb[0].mxu0 %v608
    %v821 = vpop.f32.mrb[0].mxu0
    %v822 = vadd.f32 0.0, %v821
    %v823 = vpop.f32.mrb[0].mxu0
    %v824 = vadd.f32 0.0, %v823
    %825 = vdwg.mxu0
    %826 = vmatprep.subr.mxu0 %v612
    %827 = vmatpush1.msra.mxu0 %v611
    %828 = vmatprep.subr.mxu0 %v620
    %829 = vmatpush1.msra.mxu0 %v619
    %830 = vmatprep.subr.mxu0 %v628
    %831 = vmatpush1.msra.mxu0 %v627
    %832 = vmatprep.subr.mxu0 %v636
    %833 = vmatpush1.msra.mxu0 %v635
    %834 = vmatprep.subr.mxu0 %v644
    %835 = vmatpush1.msra.mxu0 %v643
    %836 = vmatprep.subr.mxu0 %v652
    %837 = vmatpush1.msra.mxu0 %v651
    %838 = vmatprep.subr.mxu0 %v660
    %839 = vmatpush1.msra.mxu0 %v659
    %840 = vmatprep.subr.mxu0 %v668
    %841 = vmatpush1.msra.mxu0 %v667
    %842 = vmatprep.subr.mxu0 %v676
    %843 = vmatpush1.msra.mxu0 %v675
    %844 = vmatprep.subr.mxu0 %v684
    %845 = vmatpush1.msra.mxu0 %v683
    %846 = vmatprep.subr.mxu0 %v692
    %847 = vmatpush1.msra.mxu0 %v691
    %848 = vmatprep.subr.mxu0 %v700
    %849 = vmatpush1.msra.mxu0 %v699
    %850 = vmatprep.subr.mxu0 %v708
    %851 = vmatpush1.msra.mxu0 %v707
    %852 = vmatprep.subr.mxu0 %v716
    %853 = vmatpush1.msra.mxu0 %v715
    %854 = vmatprep.subr.mxu0 %v724
    %855 = vmatpush1.msra.mxu0 %v723
    %856 = vmatprep.subr.mxu0 %v732
    %857 = vmatpush1.msra.mxu0 %v731
    %858 = vmatprep.subr.mxu0 0.0
    %859 = vmatpush1.msra.mxu0 0.0
    %860 = vmatprep.subr.mxu0 0.0
    %861 = vmatpush1.msra.mxu0 0.0
    %862 = vmatprep.subr.mxu0 0.0
    %863 = vmatpush1.msra.mxu0 0.0
    %864 = vmatprep.subr.mxu0 0.0
    %865 = vmatpush1.msra.mxu0 0.0
    %866 = vmatprep.subr.mxu0 0.0
    %867 = vmatpush1.msra.mxu0 0.0
    %868 = vmatprep.subr.mxu0 0.0
    %869 = vmatpush1.msra.mxu0 0.0
    %870 = vmatprep.subr.mxu0 0.0
    %871 = vmatpush1.msra.mxu0 0.0
    %872 = vmatprep.subr.mxu0 0.0
    %873 = vmatpush1.msra.mxu0 0.0
    %874 = vmatprep.subr.mxu0 0.0
    %875 = vmatpush1.msra.mxu0 0.0
    %876 = vmatprep.subr.mxu0 0.0
    %877 = vmatpush1.msra.mxu0 0.0
    %878 = vmatprep.subr.mxu0 0.0
    %879 = vmatpush1.msra.mxu0 0.0
    %880 = vmatprep.subr.mxu0 0.0
    %881 = vmatpush1.msra.mxu0 0.0
    %882 = vmatprep.subr.mxu0 0.0
    %883 = vmatpush1.msra.mxu0 0.0
    %884 = vmatprep.subr.mxu0 0.0
    %885 = vmatpush1.msra.mxu0 0.0
    %886 = vmatprep.subr.mxu0 0.0
    %887 = vmatpush1.msra.mxu0 0.0
    %888 = vmatprep.subr.mxu0 0.0
    %889 = vmatpush1.msra.mxu0 0.0
    %890 = vmatprep.mubr.f32.mxu0 0.0
    %891 = vmatmul.mubr.f32.gmra.mrb[0].mxu0 %v605
    %v892 = vpop.f32.mrb[0].mxu0
    %v893 = vadd.f32 0.0, %v892
    %v894 = vpop.f32.mrb[0].mxu0
    %v895 = vadd.f32 0.0, %v894
    %896 = vmatprep.mubr.f32.mxu0 0.0
    %897 = vmatmul.mubr.f32.gmra.mrb[0].mxu0 %v606
    %v898 = vpop.f32.mrb[0].mxu0
    %v899 = vadd.f32 0.0, %v898
    %v900 = vpop.f32.mrb[0].mxu0
    %v901 = vadd.f32 0.0, %v900
    %902 = vmatprep.mubr.f32.mxu0 0.0
    %903 = vmatmul.mubr.f32.gmra.mrb[0].mxu0 %v607
    %v904 = vpop.f32.mrb[0].mxu0
    %v905 = vadd.f32 0.0, %v904
    %v906 = vpop.f32.mrb[0].mxu0
    %v907 = vadd.f32 0.0, %v906
    %908 = vmatprep.mubr.f32.mxu0 0.0
    %909 = vmatmul.mubr.f32.gmra.mrb[0].mxu0 %v608
    %v910 = vpop.f32.mrb[0].mxu0
    %v911 = vadd.f32 0.0, %v910
    %v912 = vpop.f32.mrb[0].mxu0
    %v913 = vadd.f32 0.0, %v912
    %914 = vdwg.mxu0
    %915 = vmatprep.subr.mxu0 %v614
    %916 = vmatpush1.msra.mxu0 %v613
    %917 = vmatprep.subr.mxu0 %v622
    %918 = vmatpush1.msra.mxu0 %v621
    %919 = vmatprep.subr.mxu0 %v630
    %920 = vmatpush1.msra.mxu0 %v629
    %921 = vmatprep.subr.mxu0 %v638
    %922 = vmatpush1.msra.mxu0 %v637
    %923 = vmatprep.subr.mxu0 %v646
    %924 = vmatpush1.msra.mxu0 %v645
    %925 = vmatprep.subr.mxu0 %v654
    %926 = vmatpush1.msra.mxu0 %v653
    %927 = vmatprep.subr.mxu0 %v662
    %928 = vmatpush1.msra.mxu0 %v661
    %929 = vmatprep.subr.mxu0 %v670
    %930 = vmatpush1.msra.mxu0 %v669
    %931 = vmatprep.subr.mxu0 %v678
    %932 = vmatpush1.msra.mxu0 %v677
    %933 = vmatprep.subr.mxu0 %v686
    %934 = vmatpush1.msra.mxu0 %v685
    %935 = vmatprep.subr.mxu0 %v694
    %936 = vmatpush1.msra.mxu0 %v693
    %937 = vmatprep.subr.mxu0 %v702
    %938 = vmatpush1.msra.mxu0 %v701
    %939 = vmatprep.subr.mxu0 %v710
    %940 = vmatpush1.msra.mxu0 %v709
    %941 = vmatprep.subr.mxu0 %v718
    %942 = vmatpush1.msra.mxu0 %v717
    %943 = vmatprep.subr.mxu0 %v726
    %944 = vmatpush1.msra.mxu0 %v725
    %945 = vmatprep.subr.mxu0 %v734
    %946 = vmatpush1.msra.mxu0 %v733
    %947 = vmatprep.subr.mxu0 0.0
    %948 = vmatpush1.msra.mxu0 0.0
    %949 = vmatprep.subr.mxu0 0.0
    %950 = vmatpush1.msra.mxu0 0.0
    %951 = vmatprep.subr.mxu0 0.0
    %952 = vmatpush1.msra.mxu0 0.0
    %953 = vmatprep.subr.mxu0 0.0
    %954 = vmatpush1.msra.mxu0 0.0
    %955 = vmatprep.subr.mxu0 0.0
    %956 = vmatpush1.msra.mxu0 0.0
    %957 = vmatprep.subr.mxu0 0.0
    %958 = vmatpush1.msra.mxu0 0.0
    %959 = vmatprep.subr.mxu0 0.0
    %960 = vmatpush1.msra.mxu0 0.0
    %961 = vmatprep.subr.mxu0 0.0
    %962 = vmatpush1.msra.mxu0 0.0
    %963 = vmatprep.subr.mxu0 0.0
    %964 = vmatpush1.msra.mxu0 0.0
    %965 = vmatprep.subr.mxu0 0.0
    %966 = vmatpush1.msra.mxu0 0.0
    %967 = vmatprep.subr.mxu0 0.0
    %968 = vmatpush1.msra.mxu0 0.0
    %969 = vmatprep.subr.mxu0 0.0
    %970 = vmatpush1.msra.mxu0 0.0
    %971 = vmatprep.subr.mxu0 0.0
    %972 = vmatpush1.msra.mxu0 0.0
    %973 = vmatprep.subr.mxu0 0.0
    %974 = vmatpush1.msra.mxu0 0.0
    %975 = vmatprep.subr.mxu0 0.0
    %976 = vmatpush1.msra.mxu0 0.0
    %977 = vmatprep.subr.mxu0 0.0
    %978 = vmatpush1.msra.mxu0 0.0
    %979 = vmatprep.mubr.f32.mxu0 0.0
    %980 = vmatmul.mubr.f32.gmra.mrb[0].mxu0 %v605
    %v981 = vpop.f32.mrb[0].mxu0
    %v982 = vadd.f32 0.0, %v981
    %v983 = vpop.f32.mrb[0].mxu0
    %v984 = vadd.f32 0.0, %v983
    %985 = vmatprep.mubr.f32.mxu0 0.0
    %986 = vmatmul.mubr.f32.gmra.mrb[0].mxu0 %v606
    %v987 = vpop.f32.mrb[0].mxu0
    %v988 = vadd.f32 0.0, %v987
    %v989 = vpop.f32.mrb[0].mxu0
    %v990 = vadd.f32 0.0, %v989
    %991 = vmatprep.mubr.f32.mxu0 0.0
    %992 = vmatmul.mubr.f32.gmra.mrb[0].mxu0 %v607
    %v993 = vpop.f32.mrb[0].mxu0
    %v994 = vadd.f32 0.0, %v993
    %v995 = vpop.f32.mrb[0].mxu0
    %v996 = vadd.f32 0.0, %v995
    %997 = vmatprep.mubr.f32.mxu0 0.0
    %998 = vmatmul.mubr.f32.gmra.mrb[0].mxu0 %v608
    %v999 = vpop.f32.mrb[0].mxu0
    %v1000 = vadd.f32 0.0, %v999
    %v1001 = vpop.f32.mrb[0].mxu0
    %v1002 = vadd.f32 0.0, %v1001
    %1003 = vdwg.mxu0
    %1004 = vmatprep.subr.mxu0 %v616
    %1005 = vmatpush1.msra.mxu0 %v615
    %1006 = vmatprep.subr.mxu0 %v624
    %1007 = vmatpush1.msra.mxu0 %v623
    %1008 = vmatprep.subr.mxu0 %v632
    %1009 = vmatpush1.msra.mxu0 %v631
    %1010 = vmatprep.subr.mxu0 %v640
    %1011 = vmatpush1.msra.mxu0 %v639
    %1012 = vmatprep.subr.mxu0 %v648
    %1013 = vmatpush1.msra.mxu0 %v647
    %1014 = vmatprep.subr.mxu0 %v656
    %1015 = vmatpush1.msra.mxu0 %v655
    %1016 = vmatprep.subr.mxu0 %v664
    %1017 = vmatpush1.msra.mxu0 %v663
    %1018 = vmatprep.subr.mxu0 %v672
    %1019 = vmatpush1.msra.mxu0 %v671
    %1020 = vmatprep.subr.mxu0 %v680
    %1021 = vmatpush1.msra.mxu0 %v679
    %1022 = vmatprep.subr.mxu0 %v688
    %1023 = vmatpush1.msra.mxu0 %v687
    %1024 = vmatprep.subr.mxu0 %v696
    %1025 = vmatpush1.msra.mxu0 %v695
    %1026 = vmatprep.subr.mxu0 %v704
    %1027 = vmatpush1.msra.mxu0 %v703
    %1028 = vmatprep.subr.mxu0 %v712
    %1029 = vmatpush1.msra.mxu0 %v711
    %1030 = vmatprep.subr.mxu0 %v720
    %1031 = vmatpush1.msra.mxu0 %v719
    %1032 = vmatprep.subr.mxu0 %v728
    %1033 = vmatpush1.msra.mxu0 %v727
    %1034 = vmatprep.subr.mxu0 %v736
    %1035 = vmatpush1.msra.mxu0 %v735
    %1036 = vmatprep.subr.mxu0 0.0
    %1037 = vmatpush1.msra.mxu0 0.0
    %1038 = vmatprep.subr.mxu0 0.0
    %1039 = vmatpush1.msra.mxu0 0.0
    %1040 = vmatprep.subr.mxu0 0.0
    %1041 = vmatpush1.msra.mxu0 0.0
    %1042 = vmatprep.subr.mxu0 0.0
    %1043 = vmatpush1.msra.mxu0 0.0
    %1044 = vmatprep.subr.mxu0 0.0
    %1045 = vmatpush1.msra.mxu0 0.0
    %1046 = vmatprep.subr.mxu0 0.0
    %1047 = vmatpush1.msra.mxu0 0.0
    %1048 = vmatprep.subr.mxu0 0.0
    %1049 = vmatpush1.msra.mxu0 0.0
    %1050 = vmatprep.subr.mxu0 0.0
    %1051 = vmatpush1.msra.mxu0 0.0
    %1052 = vmatprep.subr.mxu0 0.0
    %1053 = vmatpush1.msra.mxu0 0.0
    %1054 = vmatprep.subr.mxu0 0.0
    %1055 = vmatpush1.msra.mxu0 0.0
    %1056 = vmatprep.subr.mxu0 0.0
    %1057 = vmatpush1.msra.mxu0 0.0
    %1058 = vmatprep.subr.mxu0 0.0
    %1059 = vmatpush1.msra.mxu0 0.0
    %1060 = vmatprep.subr.mxu0 0.0
    %1061 = vmatpush1.msra.mxu0 0.0
    %1062 = vmatprep.subr.mxu0 0.0
    %1063 = vmatpush1.msra.mxu0 0.0
    %1064 = vmatprep.subr.mxu0 0.0
    %1065 = vmatpush1.msra.mxu0 0.0
    %1066 = vmatprep.subr.mxu0 0.0
    %1067 = vmatpush1.msra.mxu0 0.0
    %1068 = vmatprep.mubr.f32.mxu0 0.0
    %1069 = vmatmul.mubr.f32.gmra.mrb[0].mxu0 %v605
    %v1070 = vpop.f32.mrb[0].mxu0
    %v1071 = vadd.f32 0.0, %v1070
    %v1072 = vpop.f32.mrb[0].mxu0
    %v1073 = vadd.f32 0.0, %v1072
    %1074 = vmatprep.mubr.f32.mxu0 0.0
    %1075 = vmatmul.mubr.f32.gmra.mrb[0].mxu0 %v606
    %v1076 = vpop.f32.mrb[0].mxu0
    %v1077 = vadd.f32 0.0, %v1076
    %v1078 = vpop.f32.mrb[0].mxu0
    %v1079 = vadd.f32 0.0, %v1078
    %1080 = vmatprep.mubr.f32.mxu0 0.0
    %1081 = vmatmul.mubr.f32.gmra.mrb[0].mxu0 %v607
    %v1082 = vpop.f32.mrb[0].mxu0
    %v1083 = vadd.f32 0.0, %v1082
    %v1084 = vpop.f32.mrb[0].mxu0
    %v1085 = vadd.f32 0.0, %v1084
    %1086 = vmatprep.mubr.f32.mxu0 0.0
    %1087 = vmatmul.mubr.f32.gmra.mrb[0].mxu0 %v608
    %v1088 = vpop.f32.mrb[0].mxu0
    %v1089 = vadd.f32 0.0, %v1088
    %v1090 = vpop.f32.mrb[0].mxu0
    %v1091 = vadd.f32 0.0, %v1090
    %1092 = vdwg.mxu0
    %v1093 = vld [vmem:[#allocation15] sm:$0xff]
    %v1094 = vld [vmem:[#allocation17] sm:$0xff]
    %v1095 = vadd.f32 %v804, %v810
    %v1096 = vadd.f32 %v1095, %v816
    %v1097 = vadd.f32 %v1096, %v822
    %v1098 = vrot.slane %v1097, 4
    %v1099 = vadd.f32 %v1097, %v1098
    %v1100 = vrot.slane %v1099, 2
    %v1101 = vadd.f32 %v1099, %v1100
    %v1102 = vrot.slane %v1101, 1
    %v1103 = vadd.f32 %v1101, %v1102
    %v1104 = vadd.f32 %v806, %v812
    %v1105 = vadd.f32 %v1104, %v818
    %v1106 = vadd.f32 %v1105, %v824
    %v1107 = vrot.slane %v1106, 4
    %v1108 = vadd.f32 %v1106, %v1107
    %v1109 = vrot.slane %v1108, 2
    %v1110 = vadd.f32 %v1108, %v1109
    %v1111 = vrot.slane %v1110, 1
    %v1112 = vadd.f32 %v1110, %v1111
    %v1113 = vadd.f32 %v893, %v899
    %v1114 = vadd.f32 %v1113, %v905
    %v1115 = vadd.f32 %v1114, %v911
    %v1116 = vrot.slane %v1115, 4
    %v1117 = vadd.f32 %v1115, %v1116
    %v1118 = vrot.slane %v1117, 2
    %v1119 = vadd.f32 %v1117, %v1118
    %v1120 = vrot.slane %v1119, 1
    %v1121 = vadd.f32 %v1119, %v1120
    %v1122 = vadd.f32 %v895, %v901
    %v1123 = vadd.f32 %v1122, %v907
    %v1124 = vadd.f32 %v1123, %v913
    %v1125 = vrot.slane %v1124, 4
    %v1126 = vadd.f32 %v1124, %v1125
    %v1127 = vrot.slane %v1126, 2
    %v1128 = vadd.f32 %v1126, %v1127
    %v1129 = vrot.slane %v1128, 1
    %v1130 = vadd.f32 %v1128, %v1129
    %v1131 = vadd.f32 %v982, %v988
    %v1132 = vadd.f32 %v1131, %v994
    %v1133 = vadd.f32 %v1132, %v1000
    %v1134 = vrot.slane %v1133, 4
    %v1135 = vadd.f32 %v1133, %v1134
    %v1136 = vrot.slane %v1135, 2
    %v1137 = vadd.f32 %v1135, %v1136
    %v1138 = vrot.slane %v1137, 1
    %v1139 = vadd.f32 %v1137, %v1138
    %v1140 = vadd.f32 %v984, %v990
    %v1141 = vadd.f32 %v1140, %v996
    %v1142 = vadd.f32 %v1141, %v1002
    %v1143 = vrot.slane %v1142, 4
    %v1144 = vadd.f32 %v1142, %v1143
    %v1145 = vrot.slane %v1144, 2
    %v1146 = vadd.f32 %v1144, %v1145
    %v1147 = vrot.slane %v1146, 1
    %v1148 = vadd.f32 %v1146, %v1147
    %v1149 = vadd.f32 %v1071, %v1077
    %v1150 = vadd.f32 %v1149, %v1083
    %v1151 = vadd.f32 %v1150, %v1089
    %v1152 = vrot.slane %v1151, 4
    %v1153 = vadd.f32 %v1151, %v1152
    %v1154 = vrot.slane %v1153, 2
    %v1155 = vadd.f32 %v1153, %v1154
    %v1156 = vrot.slane %v1155, 1
    %v1157 = vadd.f32 %v1155, %v1156
    %v1158 = vadd.f32 %v1073, %v1079
    %v1159 = vadd.f32 %v1158, %v1085
    %v1160 = vadd.f32 %v1159, %v1091
    %v1161 = vrot.slane %v1160, 4
    %v1162 = vadd.f32 %v1160, %v1161
    %v1163 = vrot.slane %v1162, 2
    %v1164 = vadd.f32 %v1162, %v1163
    %v1165 = vrot.slane %v1164, 1
    %v1166 = vadd.f32 %v1164, %v1165
    %v1167 = vmul.f32 %v1103, %v390
    %v1168 = vmul.f32 %v1112, %v390
    %v1169 = vmul.f32 %v1121, %v390
    %v1170 = vmul.f32 %v1130, %v390
    %v1171 = vmul.f32 %v1139, %v390
    %v1172 = vmul.f32 %v1148, %v390
    %v1173 = vmul.f32 %v1157, %v390
    %v1174 = vmul.f32 %v1166, %v390
    %v1175 = vsub.f32 %v804, %v1167
    %v1176 = vsub.f32 %v806, %v1168
    %v1177 = vsub.f32 %v893, %v1169
    %v1178 = vsub.f32 %v895, %v1170
    %v1179 = vsub.f32 %v982, %v1171
    %v1180 = vsub.f32 %v984, %v1172
    %v1181 = vsub.f32 %v1071, %v1173
    %v1182 = vsub.f32 %v1073, %v1174
    %v1183 = vsub.f32 %v810, %v1167
    %v1184 = vsub.f32 %v812, %v1168
    %v1185 = vsub.f32 %v899, %v1169
    %v1186 = vsub.f32 %v901, %v1170
    %v1187 = vsub.f32 %v988, %v1171
    %v1188 = vsub.f32 %v990, %v1172
    %v1189 = vsub.f32 %v1077, %v1173
    %v1190 = vsub.f32 %v1079, %v1174
    %v1191 = vsub.f32 %v816, %v1167
    %v1192 = vsub.f32 %v818, %v1168
    %v1193 = vsub.f32 %v905, %v1169
    %v1194 = vsub.f32 %v907, %v1170
    %v1195 = vsub.f32 %v994, %v1171
    %v1196 = vsub.f32 %v996, %v1172
    %v1197 = vsub.f32 %v1083, %v1173
    %v1198 = vsub.f32 %v1085, %v1174
    %v1199 = vsub.f32 %v822, %v1167
    %v1200 = vsub.f32 %v824, %v1168
    %v1201 = vsub.f32 %v911, %v1169
    %v1202 = vsub.f32 %v913, %v1170
    %v1203 = vsub.f32 %v1000, %v1171
    %v1204 = vsub.f32 %v1002, %v1172
    %v1205 = vsub.f32 %v1089, %v1173
    %v1206 = vsub.f32 %v1091, %v1174
    %v1207 = vmul.f32 %v1175, %v1175
    %v1208 = vmul.f32 %v1176, %v1176
    %v1209 = vmul.f32 %v1177, %v1177
    %v1210 = vmul.f32 %v1178, %v1178
    %v1211 = vmul.f32 %v1179, %v1179
    %v1212 = vmul.f32 %v1180, %v1180
    %v1213 = vmul.f32 %v1181, %v1181
    %v1214 = vmul.f32 %v1182, %v1182
    %v1215 = vmul.f32 %v1183, %v1183
    %v1216 = vmul.f32 %v1184, %v1184
    %v1217 = vmul.f32 %v1185, %v1185
    %v1218 = vmul.f32 %v1186, %v1186
    %v1219 = vmul.f32 %v1187, %v1187
    %v1220 = vmul.f32 %v1188, %v1188
    %v1221 = vmul.f32 %v1189, %v1189
    %v1222 = vmul.f32 %v1190, %v1190
    %v1223 = vmul.f32 %v1191, %v1191
    %v1224 = vmul.f32 %v1192, %v1192
    %v1225 = vmul.f32 %v1193, %v1193
    %v1226 = vmul.f32 %v1194, %v1194
    %v1227 = vmul.f32 %v1195, %v1195
    %v1228 = vmul.f32 %v1196, %v1196
    %v1229 = vmul.f32 %v1197, %v1197
    %v1230 = vmul.f32 %v1198, %v1198
    %v1231 = vmul.f32 %v1199, %v1199
    %v1232 = vmul.f32 %v1200, %v1200
    %v1233 = vmul.f32 %v1201, %v1201
    %v1234 = vmul.f32 %v1202, %v1202
    %v1235 = vmul.f32 %v1203, %v1203
    %v1236 = vmul.f32 %v1204, %v1204
    %v1237 = vmul.f32 %v1205, %v1205
    %v1238 = vmul.f32 %v1206, %v1206
    %v1239 = vadd.f32 %v1207, %v1215
    %v1240 = vadd.f32 %v1239, %v1223
    %v1241 = vadd.f32 %v1240, %v1231
    %v1242 = vrot.slane %v1241, 4
    %v1243 = vadd.f32 %v1241, %v1242
    %v1244 = vrot.slane %v1243, 2
    %v1245 = vadd.f32 %v1243, %v1244
    %v1246 = vrot.slane %v1245, 1
    %v1247 = vadd.f32 %v1245, %v1246
    %v1248 = vadd.f32 %v1208, %v1216
    %v1249 = vadd.f32 %v1248, %v1224
    %v1250 = vadd.f32 %v1249, %v1232
    %v1251 = vrot.slane %v1250, 4
    %v1252 = vadd.f32 %v1250, %v1251
    %v1253 = vrot.slane %v1252, 2
    %v1254 = vadd.f32 %v1252, %v1253
    %v1255 = vrot.slane %v1254, 1
    %v1256 = vadd.f32 %v1254, %v1255
    %v1257 = vadd.f32 %v1209, %v1217
    %v1258 = vadd.f32 %v1257, %v1225
    %v1259 = vadd.f32 %v1258, %v1233
    %v1260 = vrot.slane %v1259, 4
    %v1261 = vadd.f32 %v1259, %v1260
    %v1262 = vrot.slane %v1261, 2
    %v1263 = vadd.f32 %v1261, %v1262
    %v1264 = vrot.slane %v1263, 1
    %v1265 = vadd.f32 %v1263, %v1264
    %v1266 = vadd.f32 %v1210, %v1218
    %v1267 = vadd.f32 %v1266, %v1226
    %v1268 = vadd.f32 %v1267, %v1234
    %v1269 = vrot.slane %v1268, 4
    %v1270 = vadd.f32 %v1268, %v1269
    %v1271 = vrot.slane %v1270, 2
    %v1272 = vadd.f32 %v1270, %v1271
    %v1273 = vrot.slane %v1272, 1
    %v1274 = vadd.f32 %v1272, %v1273
    %v1275 = vadd.f32 %v1211, %v1219
    %v1276 = vadd.f32 %v1275, %v1227
    %v1277 = vadd.f32 %v1276, %v1235
    %v1278 = vrot.slane %v1277, 4
    %v1279 = vadd.f32 %v1277, %v1278
    %v1280 = vrot.slane %v1279, 2
    %v1281 = vadd.f32 %v1279, %v1280
    %v1282 = vrot.slane %v1281, 1
    %v1283 = vadd.f32 %v1281, %v1282
    %v1284 = vadd.f32 %v1212, %v1220
    %v1285 = vadd.f32 %v1284, %v1228
    %v1286 = vadd.f32 %v1285, %v1236
    %v1287 = vrot.slane %v1286, 4
    %v1288 = vadd.f32 %v1286, %v1287
    %v1289 = vrot.slane %v1288, 2
    %v1290 = vadd.f32 %v1288, %v1289
    %v1291 = vrot.slane %v1290, 1
    %v1292 = vadd.f32 %v1290, %v1291
    %v1293 = vadd.f32 %v1213, %v1221
    %v1294 = vadd.f32 %v1293, %v1229
    %v1295 = vadd.f32 %v1294, %v1237
    %v1296 = vrot.slane %v1295, 4
    %v1297 = vadd.f32 %v1295, %v1296
    %v1298 = vrot.slane %v1297, 2
    %v1299 = vadd.f32 %v1297, %v1298
    %v1300 = vrot.slane %v1299, 1
    %v1301 = vadd.f32 %v1299, %v1300
    %v1302 = vadd.f32 %v1214, %v1222
    %v1303 = vadd.f32 %v1302, %v1230
    %v1304 = vadd.f32 %v1303, %v1238
    %v1305 = vrot.slane %v1304, 4
    %v1306 = vadd.f32 %v1304, %v1305
    %v1307 = vrot.slane %v1306, 2
    %v1308 = vadd.f32 %v1306, %v1307
    %v1309 = vrot.slane %v1308, 1
    %v1310 = vadd.f32 %v1308, %v1309
    %v1311 = vmul.f32 %v1247, %v390
    %v1312 = vmul.f32 %v1256, %v390
    %v1313 = vmul.f32 %v1265, %v390
    %v1314 = vmul.f32 %v1274, %v390
    %v1315 = vmul.f32 %v1283, %v390
    %v1316 = vmul.f32 %v1292, %v390
    %v1317 = vmul.f32 %v1301, %v390
    %v1318 = vmul.f32 %v1310, %v390
    %v1319 = vadd.f32 %v1311, 1e-05
    %v1320 = vadd.f32 %v1312, 1e-05
    %v1321 = vadd.f32 %v1313, 1e-05
    %v1322 = vadd.f32 %v1314, 1e-05
    %v1323 = vadd.f32 %v1315, 1e-05
    %v1324 = vadd.f32 %v1316, 1e-05
    %v1325 = vadd.f32 %v1317, 1e-05
    %v1326 = vadd.f32 %v1318, 1e-05
    %v1327 = vrsqrt.pop %v1319
    %v1328 = vrsqrt.pop %v1320
    %v1329 = vrsqrt.pop %v1321
    %v1330 = vrsqrt.pop %v1322
    %v1331 = vrsqrt.pop %v1323
    %v1332 = vrsqrt.pop %v1324
    %v1333 = vrsqrt.pop %v1325
    %v1334 = vrsqrt.pop %v1326
    %v1335 = vmul.f32 %v1175, %v1327
    %v1336 = vmul.f32 %v1176, %v1328
    %v1337 = vmul.f32 %v1177, %v1329
    %v1338 = vmul.f32 %v1178, %v1330
    %v1339 = vmul.f32 %v1179, %v1331
    %v1340 = vmul.f32 %v1180, %v1332
    %v1341 = vmul.f32 %v1181, %v1333
    %v1342 = vmul.f32 %v1182, %v1334
    %v1343 = vmul.f32 %v1183, %v1327
    %v1344 = vmul.f32 %v1184, %v1328
    %v1345 = vmul.f32 %v1185, %v1329
    %v1346 = vmul.f32 %v1186, %v1330
    %v1347 = vmul.f32 %v1187, %v1331
    %v1348 = vmul.f32 %v1188, %v1332
    %v1349 = vmul.f32 %v1189, %v1333
    %v1350 = vmul.f32 %v1190, %v1334
    %v1351 = vmul.f32 %v1191, %v1327
    %v1352 = vmul.f32 %v1192, %v1328
    %v1353 = vmul.f32 %v1193, %v1329
    %v1354 = vmul.f32 %v1194, %v1330
    %v1355 = vmul.f32 %v1195, %v1331
    %v1356 = vmul.f32 %v1196, %v1332
    %v1357 = vmul.f32 %v1197, %v1333
    %v1358 = vmul.f32 %v1198, %v1334
    %v1359 = vmul.f32 %v1199, %v1327
    %v1360 = vmul.f32 %v1200, %v1328
    %v1361 = vmul.f32 %v1201, %v1329
    %v1362 = vmul.f32 %v1202, %v1330
    %v1363 = vmul.f32 %v1203, %v1331
    %v1364 = vmul.f32 %v1204, %v1332
    %v1365 = vmul.f32 %v1205, %v1333
    %v1366 = vmul.f32 %v1206, %v1334
    %v1368 = vlaneseq
    %v1369 = vshrl.u32 %v1368, 7
    %v1370 = vsub.s32 0, %v1369
    %v1371 = vrot.slane %v1093, %v1370
    %v1372 = vlaneseq
    %v1373 = vshrl.u32 %v1372, 7
    %v1374 = vsub.s32 1, %v1373
    %v1375 = vrot.slane %v1093, %v1374
    %v1376 = vlaneseq
    %v1377 = vshrl.u32 %v1376, 7
    %v1378 = vsub.s32 2, %v1377
    %v1379 = vrot.slane %v1093, %v1378
    %v1380 = vlaneseq
    %v1381 = vshrl.u32 %v1380, 7
    %v1382 = vsub.s32 3, %v1381
    %v1383 = vrot.slane %v1093, %v1382
    %v1384 = vlaneseq
    %v1385 = vshrl.u32 %v1384, 7
    %v1386 = vsub.s32 4, %v1385
    %v1387 = vrot.slane %v1093, %v1386
    %v1388 = vlaneseq
    %v1389 = vshrl.u32 %v1388, 7
    %v1390 = vsub.s32 5, %v1389
    %v1391 = vrot.slane %v1093, %v1390
    %v1392 = vlaneseq
    %v1393 = vshrl.u32 %v1392, 7
    %v1394 = vsub.s32 6, %v1393
    %v1395 = vrot.slane %v1093, %v1394
    %v1396 = vlaneseq
    %v1397 = vshrl.u32 %v1396, 7
    %v1398 = vsub.s32 7, %v1397
    %v1399 = vrot.slane %v1093, %v1398
    %v1408 = vmul.f32 %v1335, %v1371
    %v1409 = vmul.f32 %v1336, %v1375
    %v1410 = vmul.f32 %v1337, %v1379
    %v1411 = vmul.f32 %v1338, %v1383
    %v1412 = vmul.f32 %v1339, %v1387
    %v1413 = vmul.f32 %v1340, %v1391
    %v1414 = vmul.f32 %v1341, %v1395
    %v1415 = vmul.f32 %v1342, %v1399
    %v1416 = vmul.f32 %v1343, %v1371
    %v1417 = vmul.f32 %v1344, %v1375
    %v1418 = vmul.f32 %v1345, %v1379
    %v1419 = vmul.f32 %v1346, %v1383
    %v1420 = vmul.f32 %v1347, %v1387
    %v1421 = vmul.f32 %v1348, %v1391
    %v1422 = vmul.f32 %v1349, %v1395
    %v1423 = vmul.f32 %v1350, %v1399
    %v1424 = vmul.f32 %v1351, %v1371
    %v1425 = vmul.f32 %v1352, %v1375
    %v1426 = vmul.f32 %v1353, %v1379
    %v1427 = vmul.f32 %v1354, %v1383
    %v1428 = vmul.f32 %v1355, %v1387
    %v1429 = vmul.f32 %v1356, %v1391
    %v1430 = vmul.f32 %v1357, %v1395
    %v1431 = vmul.f32 %v1358, %v1399
    %v1432 = vmul.f32 %v1359, %v1371
    %v1433 = vmul.f32 %v1360, %v1375
    %v1434 = vmul.f32 %v1361, %v1379
    %v1435 = vmul.f32 %v1362, %v1383
    %v1436 = vmul.f32 %v1363, %v1387
    %v1437 = vmul.f32 %v1364, %v1391
    %v1438 = vmul.f32 %v1365, %v1395
    %v1439 = vmul.f32 %v1366, %v1399
    %v1441 = vlaneseq
    %v1442 = vshrl.u32 %v1441, 7
    %v1443 = vsub.s32 0, %v1442
    %v1444 = vrot.slane %v1094, %v1443
    %v1445 = vlaneseq
    %v1446 = vshrl.u32 %v1445, 7
    %v1447 = vsub.s32 1, %v1446
    %v1448 = vrot.slane %v1094, %v1447
    %v1449 = vlaneseq
    %v1450 = vshrl.u32 %v1449, 7
    %v1451 = vsub.s32 2, %v1450
    %v1452 = vrot.slane %v1094, %v1451
    %v1453 = vlaneseq
    %v1454 = vshrl.u32 %v1453, 7
    %v1455 = vsub.s32 3, %v1454
    %v1456 = vrot.slane %v1094, %v1455
    %v1457 = vlaneseq
    %v1458 = vshrl.u32 %v1457, 7
    %v1459 = vsub.s32 4, %v1458
    %v1460 = vrot.slane %v1094, %v1459
    %v1461 = vlaneseq
    %v1462 = vshrl.u32 %v1461, 7
    %v1463 = vsub.s32 5, %v1462
    %v1464 = vrot.slane %v1094, %v1463
    %v1465 = vlaneseq
    %v1466 = vshrl.u32 %v1465, 7
    %v1467 = vsub.s32 6, %v1466
    %v1468 = vrot.slane %v1094, %v1467
    %v1469 = vlaneseq
    %v1470 = vshrl.u32 %v1469, 7
    %v1471 = vsub.s32 7, %v1470
    %v1472 = vrot.slane %v1094, %v1471
    %v1481 = vadd.f32 %v1408, %v1444
    %v1482 = vadd.f32 %v1409, %v1448
    %v1483 = vadd.f32 %v1410, %v1452
    %v1484 = vadd.f32 %v1411, %v1456
    %v1485 = vadd.f32 %v1412, %v1460
    %v1486 = vadd.f32 %v1413, %v1464
    %v1487 = vadd.f32 %v1414, %v1468
    %v1488 = vadd.f32 %v1415, %v1472
    %v1489 = vadd.f32 %v1416, %v1444
    %v1490 = vadd.f32 %v1417, %v1448
    %v1491 = vadd.f32 %v1418, %v1452
    %v1492 = vadd.f32 %v1419, %v1456
    %v1493 = vadd.f32 %v1420, %v1460
    %v1494 = vadd.f32 %v1421, %v1464
    %v1495 = vadd.f32 %v1422, %v1468
    %v1496 = vadd.f32 %v1423, %v1472
    %v1497 = vadd.f32 %v1424, %v1444
    %v1498 = vadd.f32 %v1425, %v1448
    %v1499 = vadd.f32 %v1426, %v1452
    %v1500 = vadd.f32 %v1427, %v1456
    %v1501 = vadd.f32 %v1428, %v1460
    %v1502 = vadd.f32 %v1429, %v1464
    %v1503 = vadd.f32 %v1430, %v1468
    %v1504 = vadd.f32 %v1431, %v1472
    %v1505 = vadd.f32 %v1432, %v1444
    %v1506 = vadd.f32 %v1433, %v1448
    %v1507 = vadd.f32 %v1434, %v1452
    %v1508 = vadd.f32 %v1435, %v1456
    %v1509 = vadd.f32 %v1436, %v1460
    %v1510 = vadd.f32 %v1437, %v1464
    %v1511 = vadd.f32 %v1438, %v1468
    %v1512 = vadd.f32 %v1439, %v1472
    %v1513 = vmax.f32 %v1481, 0.0
    %v1514 = vmax.f32 %v1482, 0.0
    %v1515 = vmax.f32 %v1483, 0.0
    %v1516 = vmax.f32 %v1484, 0.0
    %v1517 = vmax.f32 %v1485, 0.0
    %v1518 = vmax.f32 %v1486, 0.0
    %v1519 = vmax.f32 %v1487, 0.0
    %v1520 = vmax.f32 %v1488, 0.0
    %v1521 = vmax.f32 %v1489, 0.0
    %v1522 = vmax.f32 %v1490, 0.0
    %v1523 = vmax.f32 %v1491, 0.0
    %v1524 = vmax.f32 %v1492, 0.0
    %v1525 = vmax.f32 %v1493, 0.0
    %v1526 = vmax.f32 %v1494, 0.0
    %v1527 = vmax.f32 %v1495, 0.0
    %v1528 = vmax.f32 %v1496, 0.0
    %v1529 = vmax.f32 %v1497, 0.0
    %v1530 = vmax.f32 %v1498, 0.0
    %v1531 = vmax.f32 %v1499, 0.0
    %v1532 = vmax.f32 %v1500, 0.0
    %v1533 = vmax.f32 %v1501, 0.0
    %v1534 = vmax.f32 %v1502, 0.0
    %v1535 = vmax.f32 %v1503, 0.0
    %v1536 = vmax.f32 %v1504, 0.0
    %v1537 = vmax.f32 %v1505, 0.0
    %v1538 = vmax.f32 %v1506, 0.0
    %v1539 = vmax.f32 %v1507, 0.0
    %v1540 = vmax.f32 %v1508, 0.0
    %v1541 = vmax.f32 %v1509, 0.0
    %v1542 = vmax.f32 %v1510, 0.0
    %v1543 = vmax.f32 %v1511, 0.0
    %v1544 = vmax.f32 %v1512, 0.0
    %v1545 = vmax.f32 %v1513, %v1521
    %v1546 = vrot.slane %v1545, 4
    %v1547 = vmax.f32 %v1545, %v1546
    %v1548 = vrot.slane %v1547, 2
    %v1549 = vmax.f32 %v1547, %v1548
    %v1550 = vrot.slane %v1549, 1
    %v1551 = vmax.f32 %v1549, %v1550
    %v1552 = vmax.f32 %v1514, %v1522
    %v1553 = vrot.slane %v1552, 4
    %v1554 = vmax.f32 %v1552, %v1553
    %v1555 = vrot.slane %v1554, 2
    %v1556 = vmax.f32 %v1554, %v1555
    %v1557 = vrot.slane %v1556, 1
    %v1558 = vmax.f32 %v1556, %v1557
    %v1559 = vmax.f32 %v1515, %v1523
    %v1560 = vrot.slane %v1559, 4
    %v1561 = vmax.f32 %v1559, %v1560
    %v1562 = vrot.slane %v1561, 2
    %v1563 = vmax.f32 %v1561, %v1562
    %v1564 = vrot.slane %v1563, 1
    %v1565 = vmax.f32 %v1563, %v1564
    %v1566 = vmax.f32 %v1516, %v1524
    %v1567 = vrot.slane %v1566, 4
    %v1568 = vmax.f32 %v1566, %v1567
    %v1569 = vrot.slane %v1568, 2
    %v1570 = vmax.f32 %v1568, %v1569
    %v1571 = vrot.slane %v1570, 1
    %v1572 = vmax.f32 %v1570, %v1571
    %v1573 = vmax.f32 %v1517, %v1525
    %v1574 = vrot.slane %v1573, 4
    %v1575 = vmax.f32 %v1573, %v1574
    %v1576 = vrot.slane %v1575, 2
    %v1577 = vmax.f32 %v1575, %v1576
    %v1578 = vrot.slane %v1577, 1
    %v1579 = vmax.f32 %v1577, %v1578
    %v1580 = vmax.f32 %v1518, %v1526
    %v1581 = vrot.slane %v1580, 4
    %v1582 = vmax.f32 %v1580, %v1581
    %v1583 = vrot.slane %v1582, 2
    %v1584 = vmax.f32 %v1582, %v1583
    %v1585 = vrot.slane %v1584, 1
    %v1586 = vmax.f32 %v1584, %v1585
    %v1587 = vmax.f32 %v1519, %v1527
    %v1588 = vrot.slane %v1587, 4
    %v1589 = vmax.f32 %v1587, %v1588
    %v1590 = vrot.slane %v1589, 2
    %v1591 = vmax.f32 %v1589, %v1590
    %v1592 = vrot.slane %v1591, 1
    %v1593 = vmax.f32 %v1591, %v1592
    %v1594 = vmax.f32 %v1520, %v1528
    %v1595 = vrot.slane %v1594, 4
    %v1596 = vmax.f32 %v1594, %v1595
    %v1597 = vrot.slane %v1596, 2
    %v1598 = vmax.f32 %v1596, %v1597
    %v1599 = vrot.slane %v1598, 1
    %v1600 = vmax.f32 %v1598, %v1599
    %v1609 = vcombine.low %v1551, %v1558
    %v1610 = vcombine.low %v1565, %v1572
    %v1611 = vcombine.low %v1579, %v1586
    %v1612 = vcombine.low %v1593, %v1600
    %v1614 = vunpack.c.l.s4 1966171168
    %v1615 = vunpack.c.0.s8 %v1614
    %v1616 = vlaneseq
    %v1617 = vshrl.u32 %v1616, 7
    %v1618 = vsub.s32 %v1615, %v1617
    %v1619 = vrot.slane %v1609, %v1618
    %v1621 = vunpack.c.l.s4 1966171168
    %v1622 = vunpack.c.0.s8 %v1621
    %v1623 = vlaneseq
    %v1624 = vshrl.u32 %v1623, 7
    %v1625 = vsub.s32 %v1622, %v1624
    %v1626 = vrot.slane %v1610, %v1625
    %v1628 = vunpack.c.l.s4 1966171168
    %v1629 = vunpack.c.0.s8 %v1628
    %v1630 = vlaneseq
    %v1631 = vshrl.u32 %v1630, 7
    %v1632 = vsub.s32 %v1629, %v1631
    %v1633 = vrot.slane %v1611, %v1632
    %v1635 = vunpack.c.l.s4 1966171168
    %v1636 = vunpack.c.0.s8 %v1635
    %v1637 = vlaneseq
    %v1638 = vshrl.u32 %v1637, 7
    %v1639 = vsub.s32 %v1636, %v1638
    %v1640 = vrot.slane %v1612, %v1639
    %v1641 = vcombine.low %v1619, %v1626
    %v1642 = vcombine.low %v1633, %v1640
    %v1644 = vunpack.c.l.s4 1966171168
    %v1645 = vunpack.c.0.s8 %v1644
    %v1646 = vlaneseq
    %v1647 = vshrl.u32 %v1646, 7
    %v1648 = vsub.s32 %v1645, %v1647
    %v1649 = vrot.slane %v1641, %v1648
    %v1651 = vunpack.c.l.s4 1966171168
    %v1652 = vunpack.c.0.s8 %v1651
    %v1653 = vlaneseq
    %v1654 = vshrl.u32 %v1653, 7
    %v1655 = vsub.s32 %v1652, %v1654
    %v1656 = vrot.slane %v1642, %v1655
    %v1657 = vcombine.low %v1649, %v1656
    %1659 = vst [vmem:[#allocation2] ss:$2 sm:$0xff] %v1657
    %v1660 = vmax.f32 %v1529, %v1537
    %v1661 = vrot.slane %v1660, 4
    %v1662 = vmax.f32 %v1660, %v1661
    %v1663 = vrot.slane %v1662, 2
    %v1664 = vmax.f32 %v1662, %v1663
    %v1665 = vrot.slane %v1664, 1
    %v1666 = vmax.f32 %v1664, %v1665
    %v1667 = vmax.f32 %v1530, %v1538
    %v1668 = vrot.slane %v1667, 4
    %v1669 = vmax.f32 %v1667, %v1668
    %v1670 = vrot.slane %v1669, 2
    %v1671 = vmax.f32 %v1669, %v1670
    %v1672 = vrot.slane %v1671, 1
    %v1673 = vmax.f32 %v1671, %v1672
    %v1674 = vmax.f32 %v1531, %v1539
    %v1675 = vrot.slane %v1674, 4
    %v1676 = vmax.f32 %v1674, %v1675
    %v1677 = vrot.slane %v1676, 2
    %v1678 = vmax.f32 %v1676, %v1677
    %v1679 = vrot.slane %v1678, 1
    %v1680 = vmax.f32 %v1678, %v1679
    %v1681 = vmax.f32 %v1532, %v1540
    %v1682 = vrot.slane %v1681, 4
    %v1683 = vmax.f32 %v1681, %v1682
    %v1684 = vrot.slane %v1683, 2
    %v1685 = vmax.f32 %v1683, %v1684
    %v1686 = vrot.slane %v1685, 1
    %v1687 = vmax.f32 %v1685, %v1686
    %v1688 = vmax.f32 %v1533, %v1541
    %v1689 = vrot.slane %v1688, 4
    %v1690 = vmax.f32 %v1688, %v1689
    %v1691 = vrot.slane %v1690, 2
    %v1692 = vmax.f32 %v1690, %v1691
    %v1693 = vrot.slane %v1692, 1
    %v1694 = vmax.f32 %v1692, %v1693
    %v1695 = vmax.f32 %v1534, %v1542
    %v1696 = vrot.slane %v1695, 4
    %v1697 = vmax.f32 %v1695, %v1696
    %v1698 = vrot.slane %v1697, 2
    %v1699 = vmax.f32 %v1697, %v1698
    %v1700 = vrot.slane %v1699, 1
    %v1701 = vmax.f32 %v1699, %v1700
    %v1702 = vmax.f32 %v1535, %v1543
    %v1703 = vrot.slane %v1702, 4
    %v1704 = vmax.f32 %v1702, %v1703
    %v1705 = vrot.slane %v1704, 2
    %v1706 = vmax.f32 %v1704, %v1705
    %v1707 = vrot.slane %v1706, 1
    %v1708 = vmax.f32 %v1706, %v1707
    %v1709 = vmax.f32 %v1536, %v1544
    %v1710 = vrot.slane %v1709, 4
    %v1711 = vmax.f32 %v1709, %v1710
    %v1712 = vrot.slane %v1711, 2
    %v1713 = vmax.f32 %v1711, %v1712
    %v1714 = vrot.slane %v1713, 1
    %v1715 = vmax.f32 %v1713, %v1714
    %v1724 = vcombine.low %v1666, %v1673
    %v1725 = vcombine.low %v1680, %v1687
    %v1726 = vcombine.low %v1694, %v1701
    %v1727 = vcombine.low %v1708, %v1715
    %v1729 = vunpack.c.l.s4 1966171168
    %v1730 = vunpack.c.0.s8 %v1729
    %v1731 = vlaneseq
    %v1732 = vshrl.u32 %v1731, 7
    %v1733 = vsub.s32 %v1730, %v1732
    %v1734 = vrot.slane %v1724, %v1733
    %v1736 = vunpack.c.l.s4 1966171168
    %v1737 = vunpack.c.0.s8 %v1736
    %v1738 = vlaneseq
    %v1739 = vshrl.u32 %v1738, 7
    %v1740 = vsub.s32 %v1737, %v1739
    %v1741 = vrot.slane %v1725, %v1740
    %v1743 = vunpack.c.l.s4 1966171168
    %v1744 = vunpack.c.0.s8 %v1743
    %v1745 = vlaneseq
    %v1746 = vshrl.u32 %v1745, 7
    %v1747 = vsub.s32 %v1744, %v1746
    %v1748 = vrot.slane %v1726, %v1747
    %v1750 = vunpack.c.l.s4 1966171168
    %v1751 = vunpack.c.0.s8 %v1750
    %v1752 = vlaneseq
    %v1753 = vshrl.u32 %v1752, 7
    %v1754 = vsub.s32 %v1751, %v1753
    %v1755 = vrot.slane %v1727, %v1754
    %v1756 = vcombine.low %v1734, %v1741
    %v1757 = vcombine.low %v1748, %v1755
    %v1759 = vunpack.c.l.s4 1966171168
    %v1760 = vunpack.c.0.s8 %v1759
    %v1761 = vlaneseq
    %v1762 = vshrl.u32 %v1761, 7
    %v1763 = vsub.s32 %v1760, %v1762
    %v1764 = vrot.slane %v1756, %v1763
    %v1766 = vunpack.c.l.s4 1966171168
    %v1767 = vunpack.c.0.s8 %v1766
    %v1768 = vlaneseq
    %v1769 = vshrl.u32 %v1768, 7
    %v1770 = vsub.s32 %v1767, %v1769
    %v1771 = vrot.slane %v1757, %v1770
    %v1772 = vcombine.low %v1764, %v1771
    %s1774 = scalar_lea.vmem [#allocation2], 1
    %1775 = vst [vmem:[%s1774] ss:$2 sm:$0xff] %v1772
    %v1776 = vld [vmem:[#allocation2] sm:$0xff]
    %v1777 = vld [vmem:[#allocation2 + $0x8] sm:$0xff]
    %v1778 = vld [vmem:[#allocation18] sm:$0xff]
    %v1779 = vld [vmem:[#allocation18 + $0x8] sm:$0xff]
    %v1780 = vld [vmem:[#allocation18 + $0x10] sm:$0xff]
    %v1781 = vld [vmem:[#allocation18 + $0x18] sm:$0xff]
    %v1782 = vld [vmem:[#allocation18 + $0x20] sm:$0xff]
    %v1783 = vld [vmem:[#allocation18 + $0x28] sm:$0xff]
    %v1784 = vld [vmem:[#allocation18 + $0x30] sm:$0xff]
    %v1785 = vld [vmem:[#allocation18 + $0x38] sm:$0xff]
    %v1786 = vld [vmem:[#allocation18 + $0x40] sm:$0xff]
    %v1787 = vld [vmem:[#allocation18 + $0x48] sm:$0xff]
    %v1788 = vld [vmem:[#allocation18 + $0x50] sm:$0xff]
    %v1789 = vld [vmem:[#allocation18 + $0x58] sm:$0xff]
    %v1790 = vld [vmem:[#allocation18 + $0x60] sm:$0xff]
    %v1791 = vld [vmem:[#allocation18 + $0x68] sm:$0xff]
    %v1792 = vld [vmem:[#allocation18 + $0x70] sm:$0xff]
    %v1793 = vld [vmem:[#allocation18 + $0x78] sm:$0xff]
    %v1794 = vld [vmem:[#allocation18 + $0x80] sm:$0xff]
    %v1795 = vld [vmem:[#allocation18 + $0x88] sm:$0xff]
    %v1796 = vld [vmem:[#allocation18 + $0x90] sm:$0xff]
    %v1797 = vld [vmem:[#allocation18 + $0x98] sm:$0xff]
    %v1798 = vld [vmem:[#allocation18 + $0xa0] sm:$0xff]
    %v1799 = vld [vmem:[#allocation18 + $0xa8] sm:$0xff]
    %v1800 = vld [vmem:[#allocation18 + $0xb0] sm:$0xff]
    %v1801 = vld [vmem:[#allocation18 + $0xb8] sm:$0xff]
    %v1802 = vld [vmem:[#allocation18 + $0xc0] sm:$0xff]
    %v1803 = vld [vmem:[#allocation18 + $0xc8] sm:$0xff]
    %v1804 = vld [vmem:[#allocation18 + $0xd0] sm:$0xff]
    %v1805 = vld [vmem:[#allocation18 + $0xd8] sm:$0xff]
    %v1806 = vld [vmem:[#allocation18 + $0xe0] sm:$0xff]
    %v1807 = vld [vmem:[#allocation18 + $0xe8] sm:$0xff]
    %v1808 = vld [vmem:[#allocation18 + $0xf0] sm:$0xff]
    %v1809 = vld [vmem:[#allocation18 + $0xf8] sm:$0xff]
    %v1810 = vld [vmem:[#allocation18 + $0x100] sm:$0xff]
    %v1811 = vld [vmem:[#allocation18 + $0x108] sm:$0xff]
    %v1812 = vld [vmem:[#allocation18 + $0x110] sm:$0xff]
    %v1813 = vld [vmem:[#allocation18 + $0x118] sm:$0xff]
    %v1814 = vld [vmem:[#allocation18 + $0x120] sm:$0xff]
    %v1815 = vld [vmem:[#allocation18 + $0x128] sm:$0xff]
    %v1816 = vld [vmem:[#allocation18 + $0x130] sm:$0xff]
    %v1817 = vld [vmem:[#allocation18 + $0x138] sm:$0xff]
    %v1818 = vld [vmem:[#allocation18 + $0x140] sm:$0xff]
    %v1819 = vld [vmem:[#allocation18 + $0x148] sm:$0xff]
    %v1820 = vld [vmem:[#allocation18 + $0x150] sm:$0xff]
    %v1821 = vld [vmem:[#allocation18 + $0x158] sm:$0xff]
    %v1822 = vld [vmem:[#allocation18 + $0x160] sm:$0xff]
    %v1823 = vld [vmem:[#allocation18 + $0x168] sm:$0xff]
    %v1824 = vld [vmem:[#allocation18 + $0x170] sm:$0xff]
    %v1825 = vld [vmem:[#allocation18 + $0x178] sm:$0xff]
    %v1826 = vld [vmem:[#allocation18 + $0x180] sm:$0xff]
    %v1827 = vld [vmem:[#allocation18 + $0x188] sm:$0xff]
    %v1828 = vld [vmem:[#allocation18 + $0x190] sm:$0xff]
    %v1829 = vld [vmem:[#allocation18 + $0x198] sm:$0xff]
    %v1830 = vld [vmem:[#allocation18 + $0x1a0] sm:$0xff]
    %v1831 = vld [vmem:[#allocation18 + $0x1a8] sm:$0xff]
    %v1832 = vld [vmem:[#allocation18 + $0x1b0] sm:$0xff]
    %v1833 = vld [vmem:[#allocation18 + $0x1b8] sm:$0xff]
    %v1834 = vld [vmem:[#allocation18 + $0x1c0] sm:$0xff]
    %v1835 = vld [vmem:[#allocation18 + $0x1c8] sm:$0xff]
    %v1836 = vld [vmem:[#allocation18 + $0x1d0] sm:$0xff]
    %v1837 = vld [vmem:[#allocation18 + $0x1d8] sm:$0xff]
    %v1838 = vld [vmem:[#allocation18 + $0x1e0] sm:$0xff]
    %v1839 = vld [vmem:[#allocation18 + $0x1e8] sm:$0xff]
    %v1840 = vld [vmem:[#allocation18 + $0x1f0] sm:$0xff]
    %v1841 = vld [vmem:[#allocation18 + $0x1f8] sm:$0xff]
    %v1842 = vld [vmem:[#allocation18 + $0x200] sm:$0xff]
    %v1843 = vld [vmem:[#allocation18 + $0x208] sm:$0xff]
    %v1844 = vld [vmem:[#allocation18 + $0x210] sm:$0xff]
    %v1845 = vld [vmem:[#allocation18 + $0x218] sm:$0xff]
    %v1846 = vld [vmem:[#allocation18 + $0x220] sm:$0xff]
    %v1847 = vld [vmem:[#allocation18 + $0x228] sm:$0xff]
    %v1848 = vld [vmem:[#allocation18 + $0x230] sm:$0xff]
    %v1849 = vld [vmem:[#allocation18 + $0x238] sm:$0xff]
    %v1850 = vld [vmem:[#allocation18 + $0x240] sm:$0xff]
    %v1851 = vld [vmem:[#allocation18 + $0x248] sm:$0xff]
    %v1852 = vld [vmem:[#allocation18 + $0x250] sm:$0xff]
    %v1853 = vld [vmem:[#allocation18 + $0x258] sm:$0xff]
    %v1854 = vld [vmem:[#allocation18 + $0x260] sm:$0xff]
    %v1855 = vld [vmem:[#allocation18 + $0x268] sm:$0xff]
    %v1856 = vld [vmem:[#allocation18 + $0x270] sm:$0xff]
    %v1857 = vld [vmem:[#allocation18 + $0x278] sm:$0xff]
    %v1858 = vld [vmem:[#allocation18 + $0x280] sm:$0xff]
    %v1859 = vld [vmem:[#allocation18 + $0x288] sm:$0xff]
    %v1860 = vld [vmem:[#allocation18 + $0x290] sm:$0xff]
    %v1861 = vld [vmem:[#allocation18 + $0x298] sm:$0xff]
    %v1862 = vld [vmem:[#allocation18 + $0x2a0] sm:$0xff]
    %v1863 = vld [vmem:[#allocation18 + $0x2a8] sm:$0xff]
    %v1864 = vld [vmem:[#allocation18 + $0x2b0] sm:$0xff]
    %v1865 = vld [vmem:[#allocation18 + $0x2b8] sm:$0xff]
    %v1866 = vld [vmem:[#allocation18 + $0x2c0] sm:$0xff]
    %v1867 = vld [vmem:[#allocation18 + $0x2c8] sm:$0xff]
    %v1868 = vld [vmem:[#allocation18 + $0x2d0] sm:$0xff]
    %v1869 = vld [vmem:[#allocation18 + $0x2d8] sm:$0xff]
    %v1870 = vld [vmem:[#allocation18 + $0x2e0] sm:$0xff]
    %v1871 = vld [vmem:[#allocation18 + $0x2e8] sm:$0xff]
    %v1872 = vld [vmem:[#allocation18 + $0x2f0] sm:$0xff]
    %v1873 = vld [vmem:[#allocation18 + $0x2f8] sm:$0xff]
    %v1874 = vld [vmem:[#allocation18 + $0x300] sm:$0xff]
    %v1875 = vld [vmem:[#allocation18 + $0x308] sm:$0xff]
    %v1876 = vld [vmem:[#allocation18 + $0x310] sm:$0xff]
    %v1877 = vld [vmem:[#allocation18 + $0x318] sm:$0xff]
    %v1878 = vld [vmem:[#allocation18 + $0x320] sm:$0xff]
    %v1879 = vld [vmem:[#allocation18 + $0x328] sm:$0xff]
    %v1880 = vld [vmem:[#allocation18 + $0x330] sm:$0xff]
    %v1881 = vld [vmem:[#allocation18 + $0x338] sm:$0xff]
    %v1882 = vld [vmem:[#allocation18 + $0x340] sm:$0xff]
    %v1883 = vld [vmem:[#allocation18 + $0x348] sm:$0xff]
    %v1884 = vld [vmem:[#allocation18 + $0x350] sm:$0xff]
    %v1885 = vld [vmem:[#allocation18 + $0x358] sm:$0xff]
    %v1886 = vld [vmem:[#allocation18 + $0x360] sm:$0xff]
    %v1887 = vld [vmem:[#allocation18 + $0x368] sm:$0xff]
    %v1888 = vld [vmem:[#allocation18 + $0x370] sm:$0xff]
    %v1889 = vld [vmem:[#allocation18 + $0x378] sm:$0xff]
    %v1890 = vld [vmem:[#allocation18 + $0x380] sm:$0xff]
    %v1891 = vld [vmem:[#allocation18 + $0x388] sm:$0xff]
    %v1892 = vld [vmem:[#allocation18 + $0x390] sm:$0xff]
    %v1893 = vld [vmem:[#allocation18 + $0x398] sm:$0xff]
    %v1894 = vld [vmem:[#allocation18 + $0x3a0] sm:$0xff]
    %v1895 = vld [vmem:[#allocation18 + $0x3a8] sm:$0xff]
    %v1896 = vld [vmem:[#allocation18 + $0x3b0] sm:$0xff]
    %v1897 = vld [vmem:[#allocation18 + $0x3b8] sm:$0xff]
    %v1898 = vld [vmem:[#allocation18 + $0x3c0] sm:$0xff]
    %v1899 = vld [vmem:[#allocation18 + $0x3c8] sm:$0xff]
    %v1900 = vld [vmem:[#allocation18 + $0x3d0] sm:$0xff]
    %v1901 = vld [vmem:[#allocation18 + $0x3d8] sm:$0xff]
    %v1902 = vld [vmem:[#allocation18 + $0x3e0] sm:$0xff]
    %v1903 = vld [vmem:[#allocation18 + $0x3e8] sm:$0xff]
    %v1904 = vld [vmem:[#allocation18 + $0x3f0] sm:$0xff]
    %v1905 = vld [vmem:[#allocation18 + $0x3f8] sm:$0xff]
    %v1906 = vld [vmem:[#allocation18 + $0x400] sm:$0xff]
    %v1907 = vld [vmem:[#allocation18 + $0x408] sm:$0xff]
    %v1908 = vld [vmem:[#allocation18 + $0x410] sm:$0xff]
    %v1909 = vld [vmem:[#allocation18 + $0x418] sm:$0xff]
    %v1910 = vld [vmem:[#allocation18 + $0x420] sm:$0xff]
    %v1911 = vld [vmem:[#allocation18 + $0x428] sm:$0xff]
    %v1912 = vld [vmem:[#allocation18 + $0x430] sm:$0xff]
    %v1913 = vld [vmem:[#allocation18 + $0x438] sm:$0xff]
    %v1914 = vld [vmem:[#allocation18 + $0x440] sm:$0xff]
    %v1915 = vld [vmem:[#allocation18 + $0x448] sm:$0xff]
    %v1916 = vld [vmem:[#allocation18 + $0x450] sm:$0xff]
    %v1917 = vld [vmem:[#allocation18 + $0x458] sm:$0xff]
    %v1918 = vld [vmem:[#allocation18 + $0x460] sm:$0xff]
    %v1919 = vld [vmem:[#allocation18 + $0x468] sm:$0xff]
    %v1920 = vld [vmem:[#allocation18 + $0x470] sm:$0xff]
    %v1921 = vld [vmem:[#allocation18 + $0x478] sm:$0xff]
    %v1922 = vld [vmem:[#allocation18 + $0x480] sm:$0xff]
    %v1923 = vld [vmem:[#allocation18 + $0x488] sm:$0xff]
    %v1924 = vld [vmem:[#allocation18 + $0x490] sm:$0xff]
    %v1925 = vld [vmem:[#allocation18 + $0x498] sm:$0xff]
    %v1926 = vld [vmem:[#allocation18 + $0x4a0] sm:$0xff]
    %v1927 = vld [vmem:[#allocation18 + $0x4a8] sm:$0xff]
    %v1928 = vld [vmem:[#allocation18 + $0x4b0] sm:$0xff]
    %v1929 = vld [vmem:[#allocation18 + $0x4b8] sm:$0xff]
    %v1930 = vld [vmem:[#allocation18 + $0x4c0] sm:$0xff]
    %v1931 = vld [vmem:[#allocation18 + $0x4c8] sm:$0xff]
    %v1932 = vld [vmem:[#allocation18 + $0x4d0] sm:$0xff]
    %v1933 = vld [vmem:[#allocation18 + $0x4d8] sm:$0xff]
    %v1934 = vld [vmem:[#allocation18 + $0x4e0] sm:$0xff]
    %v1935 = vld [vmem:[#allocation18 + $0x4e8] sm:$0xff]
    %v1936 = vld [vmem:[#allocation18 + $0x4f0] sm:$0xff]
    %v1937 = vld [vmem:[#allocation18 + $0x4f8] sm:$0xff]
    %v1938 = vld [vmem:[#allocation18 + $0x500] sm:$0xff]
    %v1939 = vld [vmem:[#allocation18 + $0x508] sm:$0xff]
    %v1940 = vld [vmem:[#allocation18 + $0x510] sm:$0xff]
    %v1941 = vld [vmem:[#allocation18 + $0x518] sm:$0xff]
    %v1942 = vld [vmem:[#allocation18 + $0x520] sm:$0xff]
    %v1943 = vld [vmem:[#allocation18 + $0x528] sm:$0xff]
    %v1944 = vld [vmem:[#allocation18 + $0x530] sm:$0xff]
    %v1945 = vld [vmem:[#allocation18 + $0x538] sm:$0xff]
    %v1946 = vld [vmem:[#allocation18 + $0x540] sm:$0xff]
    %v1947 = vld [vmem:[#allocation18 + $0x548] sm:$0xff]
    %v1948 = vld [vmem:[#allocation18 + $0x550] sm:$0xff]
    %v1949 = vld [vmem:[#allocation18 + $0x558] sm:$0xff]
    %v1950 = vld [vmem:[#allocation18 + $0x560] sm:$0xff]
    %v1951 = vld [vmem:[#allocation18 + $0x568] sm:$0xff]
    %v1952 = vld [vmem:[#allocation18 + $0x570] sm:$0xff]
    %v1953 = vld [vmem:[#allocation18 + $0x578] sm:$0xff]
    %v1954 = vld [vmem:[#allocation18 + $0x580] sm:$0xff]
    %v1955 = vld [vmem:[#allocation18 + $0x588] sm:$0xff]
    %v1956 = vld [vmem:[#allocation18 + $0x590] sm:$0xff]
    %v1957 = vld [vmem:[#allocation18 + $0x598] sm:$0xff]
    %v1958 = vld [vmem:[#allocation18 + $0x5a0] sm:$0xff]
    %v1959 = vld [vmem:[#allocation18 + $0x5a8] sm:$0xff]
    %v1960 = vld [vmem:[#allocation18 + $0x5b0] sm:$0xff]
    %v1961 = vld [vmem:[#allocation18 + $0x5b8] sm:$0xff]
    %v1962 = vld [vmem:[#allocation18 + $0x5c0] sm:$0xff]
    %v1963 = vld [vmem:[#allocation18 + $0x5c8] sm:$0xff]
    %v1964 = vld [vmem:[#allocation18 + $0x5d0] sm:$0xff]
    %v1965 = vld [vmem:[#allocation18 + $0x5d8] sm:$0xff]
    %v1966 = vld [vmem:[#allocation18 + $0x5e0] sm:$0xff]
    %v1967 = vld [vmem:[#allocation18 + $0x5e8] sm:$0xff]
    %v1968 = vld [vmem:[#allocation18 + $0x5f0] sm:$0xff]
    %v1969 = vld [vmem:[#allocation18 + $0x5f8] sm:$0xff]
    %v1970 = vld [vmem:[#allocation18 + $0x600] sm:$0xff]
    %v1971 = vld [vmem:[#allocation18 + $0x608] sm:$0xff]
    %v1972 = vld [vmem:[#allocation18 + $0x610] sm:$0xff]
    %v1973 = vld [vmem:[#allocation18 + $0x618] sm:$0xff]
    %v1974 = vld [vmem:[#allocation18 + $0x620] sm:$0xff]
    %v1975 = vld [vmem:[#allocation18 + $0x628] sm:$0xff]
    %v1976 = vld [vmem:[#allocation18 + $0x630] sm:$0xff]
    %v1977 = vld [vmem:[#allocation18 + $0x638] sm:$0xff]
    %v1978 = vld [vmem:[#allocation18 + $0x640] sm:$0xff]
    %v1979 = vld [vmem:[#allocation18 + $0x648] sm:$0xff]
    %v1980 = vld [vmem:[#allocation18 + $0x650] sm:$0xff]
    %v1981 = vld [vmem:[#allocation18 + $0x658] sm:$0xff]
    %v1982 = vld [vmem:[#allocation18 + $0x660] sm:$0xff]
    %v1983 = vld [vmem:[#allocation18 + $0x668] sm:$0xff]
    %v1984 = vld [vmem:[#allocation18 + $0x670] sm:$0xff]
    %v1985 = vld [vmem:[#allocation18 + $0x678] sm:$0xff]
    %v1986 = vld [vmem:[#allocation18 + $0x680] sm:$0xff]
    %v1987 = vld [vmem:[#allocation18 + $0x688] sm:$0xff]
    %v1988 = vld [vmem:[#allocation18 + $0x690] sm:$0xff]
    %v1989 = vld [vmem:[#allocation18 + $0x698] sm:$0xff]
    %v1990 = vld [vmem:[#allocation18 + $0x6a0] sm:$0xff]
    %v1991 = vld [vmem:[#allocation18 + $0x6a8] sm:$0xff]
    %v1992 = vld [vmem:[#allocation18 + $0x6b0] sm:$0xff]
    %v1993 = vld [vmem:[#allocation18 + $0x6b8] sm:$0xff]
    %v1994 = vld [vmem:[#allocation18 + $0x6c0] sm:$0xff]
    %v1995 = vld [vmem:[#allocation18 + $0x6c8] sm:$0xff]
    %v1996 = vld [vmem:[#allocation18 + $0x6d0] sm:$0xff]
    %v1997 = vld [vmem:[#allocation18 + $0x6d8] sm:$0xff]
    %v1998 = vld [vmem:[#allocation18 + $0x6e0] sm:$0xff]
    %v1999 = vld [vmem:[#allocation18 + $0x6e8] sm:$0xff]
    %v2000 = vld [vmem:[#allocation18 + $0x6f0] sm:$0xff]
    %v2001 = vld [vmem:[#allocation18 + $0x6f8] sm:$0xff]
    %v2002 = vld [vmem:[#allocation18 + $0x700] sm:$0xff]
    %v2003 = vld [vmem:[#allocation18 + $0x708] sm:$0xff]
    %v2004 = vld [vmem:[#allocation18 + $0x710] sm:$0xff]
    %v2005 = vld [vmem:[#allocation18 + $0x718] sm:$0xff]
    %v2006 = vld [vmem:[#allocation18 + $0x720] sm:$0xff]
    %v2007 = vld [vmem:[#allocation18 + $0x728] sm:$0xff]
    %v2008 = vld [vmem:[#allocation18 + $0x730] sm:$0xff]
    %v2009 = vld [vmem:[#allocation18 + $0x738] sm:$0xff]
    %v2010 = vld [vmem:[#allocation18 + $0x740] sm:$0xff]
    %v2011 = vld [vmem:[#allocation18 + $0x748] sm:$0xff]
    %v2012 = vld [vmem:[#allocation18 + $0x750] sm:$0xff]
    %v2013 = vld [vmem:[#allocation18 + $0x758] sm:$0xff]
    %v2014 = vld [vmem:[#allocation18 + $0x760] sm:$0xff]
    %v2015 = vld [vmem:[#allocation18 + $0x768] sm:$0xff]
    %v2016 = vld [vmem:[#allocation18 + $0x770] sm:$0xff]
    %v2017 = vld [vmem:[#allocation18 + $0x778] sm:$0xff]
    %v2018 = vld [vmem:[#allocation18 + $0x780] sm:$0xff]
    %v2019 = vld [vmem:[#allocation18 + $0x788] sm:$0xff]
    %v2020 = vld [vmem:[#allocation18 + $0x790] sm:$0xff]
    %v2021 = vld [vmem:[#allocation18 + $0x798] sm:$0xff]
    %v2022 = vld [vmem:[#allocation18 + $0x7a0] sm:$0xff]
    %v2023 = vld [vmem:[#allocation18 + $0x7a8] sm:$0xff]
    %v2024 = vld [vmem:[#allocation18 + $0x7b0] sm:$0xff]
    %v2025 = vld [vmem:[#allocation18 + $0x7b8] sm:$0xff]
    %v2026 = vld [vmem:[#allocation18 + $0x7c0] sm:$0xff]
    %v2027 = vld [vmem:[#allocation18 + $0x7c8] sm:$0xff]
    %v2028 = vld [vmem:[#allocation18 + $0x7d0] sm:$0xff]
    %v2029 = vld [vmem:[#allocation18 + $0x7d8] sm:$0xff]
    %v2030 = vld [vmem:[#allocation18 + $0x7e0] sm:$0xff]
    %v2031 = vld [vmem:[#allocation18 + $0x7e8] sm:$0xff]
    %v2032 = vld [vmem:[#allocation18 + $0x7f0] sm:$0xff]
    %v2033 = vld [vmem:[#allocation18 + $0x7f8] sm:$0xff]
    %v2034 = vld [vmem:[#allocation18 + $0x800] sm:$0xff]
    %v2035 = vld [vmem:[#allocation18 + $0x808] sm:$0xff]
    %v2036 = vld [vmem:[#allocation18 + $0x810] sm:$0xff]
    %v2037 = vld [vmem:[#allocation18 + $0x818] sm:$0xff]
    %v2038 = vld [vmem:[#allocation18 + $0x820] sm:$0xff]
    %v2039 = vld [vmem:[#allocation18 + $0x828] sm:$0xff]
    %v2040 = vld [vmem:[#allocation18 + $0x830] sm:$0xff]
    %v2041 = vld [vmem:[#allocation18 + $0x838] sm:$0xff]
    %v2042 = vld [vmem:[#allocation18 + $0x840] sm:$0xff]
    %v2043 = vld [vmem:[#allocation18 + $0x848] sm:$0xff]
    %v2044 = vld [vmem:[#allocation18 + $0x850] sm:$0xff]
    %v2045 = vld [vmem:[#allocation18 + $0x858] sm:$0xff]
    %v2046 = vld [vmem:[#allocation18 + $0x860] sm:$0xff]
    %v2047 = vld [vmem:[#allocation18 + $0x868] sm:$0xff]
    %v2048 = vld [vmem:[#allocation18 + $0x870] sm:$0xff]
    %v2049 = vld [vmem:[#allocation18 + $0x878] sm:$0xff]
    %v2050 = vld [vmem:[#allocation18 + $0x880] sm:$0xff]
    %v2051 = vld [vmem:[#allocation18 + $0x888] sm:$0xff]
    %v2052 = vld [vmem:[#allocation18 + $0x890] sm:$0xff]
    %v2053 = vld [vmem:[#allocation18 + $0x898] sm:$0xff]
    %v2054 = vld [vmem:[#allocation18 + $0x8a0] sm:$0xff]
    %v2055 = vld [vmem:[#allocation18 + $0x8a8] sm:$0xff]
    %v2056 = vld [vmem:[#allocation18 + $0x8b0] sm:$0xff]
    %v2057 = vld [vmem:[#allocation18 + $0x8b8] sm:$0xff]
    %v2058 = vld [vmem:[#allocation18 + $0x8c0] sm:$0xff]
    %v2059 = vld [vmem:[#allocation18 + $0x8c8] sm:$0xff]
    %v2060 = vld [vmem:[#allocation18 + $0x8d0] sm:$0xff]
    %v2061 = vld [vmem:[#allocation18 + $0x8d8] sm:$0xff]
    %v2062 = vld [vmem:[#allocation18 + $0x8e0] sm:$0xff]
    %v2063 = vld [vmem:[#allocation18 + $0x8e8] sm:$0xff]
    %v2064 = vld [vmem:[#allocation18 + $0x8f0] sm:$0xff]
    %v2065 = vld [vmem:[#allocation18 + $0x8f8] sm:$0xff]
    %v2066 = vld [vmem:[#allocation18 + $0x900] sm:$0xff]
    %v2067 = vld [vmem:[#allocation18 + $0x908] sm:$0xff]
    %v2068 = vld [vmem:[#allocation18 + $0x910] sm:$0xff]
    %v2069 = vld [vmem:[#allocation18 + $0x918] sm:$0xff]
    %v2070 = vld [vmem:[#allocation18 + $0x920] sm:$0xff]
    %v2071 = vld [vmem:[#allocation18 + $0x928] sm:$0xff]
    %v2072 = vld [vmem:[#allocation18 + $0x930] sm:$0xff]
    %v2073 = vld [vmem:[#allocation18 + $0x938] sm:$0xff]
    %v2074 = vld [vmem:[#allocation18 + $0x940] sm:$0xff]
    %v2075 = vld [vmem:[#allocation18 + $0x948] sm:$0xff]
    %v2076 = vld [vmem:[#allocation18 + $0x950] sm:$0xff]
    %v2077 = vld [vmem:[#allocation18 + $0x958] sm:$0xff]
    %v2078 = vld [vmem:[#allocation18 + $0x960] sm:$0xff]
    %v2079 = vld [vmem:[#allocation18 + $0x968] sm:$0xff]
    %v2080 = vld [vmem:[#allocation18 + $0x970] sm:$0xff]
    %v2081 = vld [vmem:[#allocation18 + $0x978] sm:$0xff]
    %v2082 = vld [vmem:[#allocation18 + $0x980] sm:$0xff]
    %v2083 = vld [vmem:[#allocation18 + $0x988] sm:$0xff]
    %v2084 = vld [vmem:[#allocation18 + $0x990] sm:$0xff]
    %v2085 = vld [vmem:[#allocation18 + $0x998] sm:$0xff]
    %v2086 = vld [vmem:[#allocation18 + $0x9a0] sm:$0xff]
    %v2087 = vld [vmem:[#allocation18 + $0x9a8] sm:$0xff]
    %v2088 = vld [vmem:[#allocation18 + $0x9b0] sm:$0xff]
    %v2089 = vld [vmem:[#allocation18 + $0x9b8] sm:$0xff]
    %v2090 = vld [vmem:[#allocation18 + $0x9c0] sm:$0xff]
    %v2091 = vld [vmem:[#allocation18 + $0x9c8] sm:$0xff]
    %v2092 = vld [vmem:[#allocation18 + $0x9d0] sm:$0xff]
    %v2093 = vld [vmem:[#allocation18 + $0x9d8] sm:$0xff]
    %v2094 = vld [vmem:[#allocation18 + $0x9e0] sm:$0xff]
    %v2095 = vld [vmem:[#allocation18 + $0x9e8] sm:$0xff]
    %v2096 = vld [vmem:[#allocation18 + $0x9f0] sm:$0xff]
    %v2097 = vld [vmem:[#allocation18 + $0x9f8] sm:$0xff]
    %v2098 = vld [vmem:[#allocation18 + $0xa00] sm:$0xff]
    %v2099 = vld [vmem:[#allocation18 + $0xa08] sm:$0xff]
    %v2100 = vld [vmem:[#allocation18 + $0xa10] sm:$0xff]
    %v2101 = vld [vmem:[#allocation18 + $0xa18] sm:$0xff]
    %v2102 = vld [vmem:[#allocation18 + $0xa20] sm:$0xff]
    %v2103 = vld [vmem:[#allocation18 + $0xa28] sm:$0xff]
    %v2104 = vld [vmem:[#allocation18 + $0xa30] sm:$0xff]
    %v2105 = vld [vmem:[#allocation18 + $0xa38] sm:$0xff]
    %v2106 = vld [vmem:[#allocation18 + $0xa40] sm:$0xff]
    %v2107 = vld [vmem:[#allocation18 + $0xa48] sm:$0xff]
    %v2108 = vld [vmem:[#allocation18 + $0xa50] sm:$0xff]
    %v2109 = vld [vmem:[#allocation18 + $0xa58] sm:$0xff]
    %v2110 = vld [vmem:[#allocation18 + $0xa60] sm:$0xff]
    %v2111 = vld [vmem:[#allocation18 + $0xa68] sm:$0xff]
    %v2112 = vld [vmem:[#allocation18 + $0xa70] sm:$0xff]
    %v2113 = vld [vmem:[#allocation18 + $0xa78] sm:$0xff]
    %v2114 = vld [vmem:[#allocation18 + $0xa80] sm:$0xff]
    %v2115 = vld [vmem:[#allocation18 + $0xa88] sm:$0xff]
    %v2116 = vld [vmem:[#allocation18 + $0xa90] sm:$0xff]
    %v2117 = vld [vmem:[#allocation18 + $0xa98] sm:$0xff]
    %v2118 = vld [vmem:[#allocation18 + $0xaa0] sm:$0xff]
    %v2119 = vld [vmem:[#allocation18 + $0xaa8] sm:$0xff]
    %v2120 = vld [vmem:[#allocation18 + $0xab0] sm:$0xff]
    %v2121 = vld [vmem:[#allocation18 + $0xab8] sm:$0xff]
    %v2122 = vld [vmem:[#allocation18 + $0xac0] sm:$0xff]
    %v2123 = vld [vmem:[#allocation18 + $0xac8] sm:$0xff]
    %v2124 = vld [vmem:[#allocation18 + $0xad0] sm:$0xff]
    %v2125 = vld [vmem:[#allocation18 + $0xad8] sm:$0xff]
    %v2126 = vld [vmem:[#allocation18 + $0xae0] sm:$0xff]
    %v2127 = vld [vmem:[#allocation18 + $0xae8] sm:$0xff]
    %v2128 = vld [vmem:[#allocation18 + $0xaf0] sm:$0xff]
    %v2129 = vld [vmem:[#allocation18 + $0xaf8] sm:$0xff]
    %v2130 = vld [vmem:[#allocation18 + $0xb00] sm:$0xff]
    %v2131 = vld [vmem:[#allocation18 + $0xb08] sm:$0xff]
    %v2132 = vld [vmem:[#allocation18 + $0xb10] sm:$0xff]
    %v2133 = vld [vmem:[#allocation18 + $0xb18] sm:$0xff]
    %v2134 = vld [vmem:[#allocation18 + $0xb20] sm:$0xff]
    %v2135 = vld [vmem:[#allocation18 + $0xb28] sm:$0xff]
    %v2136 = vld [vmem:[#allocation18 + $0xb30] sm:$0xff]
    %v2137 = vld [vmem:[#allocation18 + $0xb38] sm:$0xff]
    %v2138 = vld [vmem:[#allocation18 + $0xb40] sm:$0xff]
    %v2139 = vld [vmem:[#allocation18 + $0xb48] sm:$0xff]
    %v2140 = vld [vmem:[#allocation18 + $0xb50] sm:$0xff]
    %v2141 = vld [vmem:[#allocation18 + $0xb58] sm:$0xff]
    %v2142 = vld [vmem:[#allocation18 + $0xb60] sm:$0xff]
    %v2143 = vld [vmem:[#allocation18 + $0xb68] sm:$0xff]
    %v2144 = vld [vmem:[#allocation18 + $0xb70] sm:$0xff]
    %v2145 = vld [vmem:[#allocation18 + $0xb78] sm:$0xff]
    %v2146 = vld [vmem:[#allocation18 + $0xb80] sm:$0xff]
    %v2147 = vld [vmem:[#allocation18 + $0xb88] sm:$0xff]
    %v2148 = vld [vmem:[#allocation18 + $0xb90] sm:$0xff]
    %v2149 = vld [vmem:[#allocation18 + $0xb98] sm:$0xff]
    %v2150 = vld [vmem:[#allocation18 + $0xba0] sm:$0xff]
    %v2151 = vld [vmem:[#allocation18 + $0xba8] sm:$0xff]
    %v2152 = vld [vmem:[#allocation18 + $0xbb0] sm:$0xff]
    %v2153 = vld [vmem:[#allocation18 + $0xbb8] sm:$0xff]
    %v2154 = vld [vmem:[#allocation18 + $0xbc0] sm:$0xff]
    %v2155 = vld [vmem:[#allocation18 + $0xbc8] sm:$0xff]
    %v2156 = vld [vmem:[#allocation18 + $0xbd0] sm:$0xff]
    %v2157 = vld [vmem:[#allocation18 + $0xbd8] sm:$0xff]
    %v2158 = vld [vmem:[#allocation18 + $0xbe0] sm:$0xff]
    %v2159 = vld [vmem:[#allocation18 + $0xbe8] sm:$0xff]
    %v2160 = vld [vmem:[#allocation18 + $0xbf0] sm:$0xff]
    %v2161 = vld [vmem:[#allocation18 + $0xbf8] sm:$0xff]
    %v2162 = vld [vmem:[#allocation18 + $0xc00] sm:$0xff]
    %v2163 = vld [vmem:[#allocation18 + $0xc08] sm:$0xff]
    %v2164 = vld [vmem:[#allocation18 + $0xc10] sm:$0xff]
    %v2165 = vld [vmem:[#allocation18 + $0xc18] sm:$0xff]
    %v2166 = vld [vmem:[#allocation18 + $0xc20] sm:$0xff]
    %v2167 = vld [vmem:[#allocation18 + $0xc28] sm:$0xff]
    %v2168 = vld [vmem:[#allocation18 + $0xc30] sm:$0xff]
    %v2169 = vld [vmem:[#allocation18 + $0xc38] sm:$0xff]
    %v2170 = vld [vmem:[#allocation18 + $0xc40] sm:$0xff]
    %v2171 = vld [vmem:[#allocation18 + $0xc48] sm:$0xff]
    %v2172 = vld [vmem:[#allocation18 + $0xc50] sm:$0xff]
    %v2173 = vld [vmem:[#allocation18 + $0xc58] sm:$0xff]
    %v2174 = vld [vmem:[#allocation18 + $0xc60] sm:$0xff]
    %v2175 = vld [vmem:[#allocation18 + $0xc68] sm:$0xff]
    %v2176 = vld [vmem:[#allocation18 + $0xc70] sm:$0xff]
    %v2177 = vld [vmem:[#allocation18 + $0xc78] sm:$0xff]
    %v2178 = vld [vmem:[#allocation18 + $0xc80] sm:$0xff]
    %v2179 = vld [vmem:[#allocation18 + $0xc88] sm:$0xff]
    %v2180 = vld [vmem:[#allocation18 + $0xc90] sm:$0xff]
    %v2181 = vld [vmem:[#allocation18 + $0xc98] sm:$0xff]
    %v2182 = vld [vmem:[#allocation18 + $0xca0] sm:$0xff]
    %v2183 = vld [vmem:[#allocation18 + $0xca8] sm:$0xff]
    %v2184 = vld [vmem:[#allocation18 + $0xcb0] sm:$0xff]
    %v2185 = vld [vmem:[#allocation18 + $0xcb8] sm:$0xff]
    %v2186 = vld [vmem:[#allocation18 + $0xcc0] sm:$0xff]
    %v2187 = vld [vmem:[#allocation18 + $0xcc8] sm:$0xff]
    %v2188 = vld [vmem:[#allocation18 + $0xcd0] sm:$0xff]
    %v2189 = vld [vmem:[#allocation18 + $0xcd8] sm:$0xff]
    %v2190 = vld [vmem:[#allocation18 + $0xce0] sm:$0xff]
    %v2191 = vld [vmem:[#allocation18 + $0xce8] sm:$0xff]
    %v2192 = vld [vmem:[#allocation18 + $0xcf0] sm:$0xff]
    %v2193 = vld [vmem:[#allocation18 + $0xcf8] sm:$0xff]
    %v2194 = vld [vmem:[#allocation18 + $0xd00] sm:$0xff]
    %v2195 = vld [vmem:[#allocation18 + $0xd08] sm:$0xff]
    %v2196 = vld [vmem:[#allocation18 + $0xd10] sm:$0xff]
    %v2197 = vld [vmem:[#allocation18 + $0xd18] sm:$0xff]
    %v2198 = vld [vmem:[#allocation18 + $0xd20] sm:$0xff]
    %v2199 = vld [vmem:[#allocation18 + $0xd28] sm:$0xff]
    %v2200 = vld [vmem:[#allocation18 + $0xd30] sm:$0xff]
    %v2201 = vld [vmem:[#allocation18 + $0xd38] sm:$0xff]
    %v2202 = vld [vmem:[#allocation18 + $0xd40] sm:$0xff]
    %v2203 = vld [vmem:[#allocation18 + $0xd48] sm:$0xff]
    %v2204 = vld [vmem:[#allocation18 + $0xd50] sm:$0xff]
    %v2205 = vld [vmem:[#allocation18 + $0xd58] sm:$0xff]
    %v2206 = vld [vmem:[#allocation18 + $0xd60] sm:$0xff]
    %v2207 = vld [vmem:[#allocation18 + $0xd68] sm:$0xff]
    %v2208 = vld [vmem:[#allocation18 + $0xd70] sm:$0xff]
    %v2209 = vld [vmem:[#allocation18 + $0xd78] sm:$0xff]
    %v2210 = vld [vmem:[#allocation18 + $0xd80] sm:$0xff]
    %v2211 = vld [vmem:[#allocation18 + $0xd88] sm:$0xff]
    %v2212 = vld [vmem:[#allocation18 + $0xd90] sm:$0xff]
    %v2213 = vld [vmem:[#allocation18 + $0xd98] sm:$0xff]
    %v2214 = vld [vmem:[#allocation18 + $0xda0] sm:$0xff]
    %v2215 = vld [vmem:[#allocation18 + $0xda8] sm:$0xff]
    %v2216 = vld [vmem:[#allocation18 + $0xdb0] sm:$0xff]
    %v2217 = vld [vmem:[#allocation18 + $0xdb8] sm:$0xff]
    %v2218 = vld [vmem:[#allocation18 + $0xdc0] sm:$0xff]
    %v2219 = vld [vmem:[#allocation18 + $0xdc8] sm:$0xff]
    %v2220 = vld [vmem:[#allocation18 + $0xdd0] sm:$0xff]
    %v2221 = vld [vmem:[#allocation18 + $0xdd8] sm:$0xff]
    %v2222 = vld [vmem:[#allocation18 + $0xde0] sm:$0xff]
    %v2223 = vld [vmem:[#allocation18 + $0xde8] sm:$0xff]
    %v2224 = vld [vmem:[#allocation18 + $0xdf0] sm:$0xff]
    %v2225 = vld [vmem:[#allocation18 + $0xdf8] sm:$0xff]
    %v2226 = vld [vmem:[#allocation18 + $0xe00] sm:$0xff]
    %v2227 = vld [vmem:[#allocation18 + $0xe08] sm:$0xff]
    %v2228 = vld [vmem:[#allocation18 + $0xe10] sm:$0xff]
    %v2229 = vld [vmem:[#allocation18 + $0xe18] sm:$0xff]
    %v2230 = vld [vmem:[#allocation18 + $0xe20] sm:$0xff]
    %v2231 = vld [vmem:[#allocation18 + $0xe28] sm:$0xff]
    %v2232 = vld [vmem:[#allocation18 + $0xe30] sm:$0xff]
    %v2233 = vld [vmem:[#allocation18 + $0xe38] sm:$0xff]
    %v2234 = vld [vmem:[#allocation18 + $0xe40] sm:$0xff]
    %v2235 = vld [vmem:[#allocation18 + $0xe48] sm:$0xff]
    %v2236 = vld [vmem:[#allocation18 + $0xe50] sm:$0xff]
    %v2237 = vld [vmem:[#allocation18 + $0xe58] sm:$0xff]
    %v2238 = vld [vmem:[#allocation18 + $0xe60] sm:$0xff]
    %v2239 = vld [vmem:[#allocation18 + $0xe68] sm:$0xff]
    %v2240 = vld [vmem:[#allocation18 + $0xe70] sm:$0xff]
    %v2241 = vld [vmem:[#allocation18 + $0xe78] sm:$0xff]
    %v2242 = vld [vmem:[#allocation18 + $0xe80] sm:$0xff]
    %v2243 = vld [vmem:[#allocation18 + $0xe88] sm:$0xff]
    %v2244 = vld [vmem:[#allocation18 + $0xe90] sm:$0xff]
    %v2245 = vld [vmem:[#allocation18 + $0xe98] sm:$0xff]
    %v2246 = vld [vmem:[#allocation18 + $0xea0] sm:$0xff]
    %v2247 = vld [vmem:[#allocation18 + $0xea8] sm:$0xff]
    %v2248 = vld [vmem:[#allocation18 + $0xeb0] sm:$0xff]
    %v2249 = vld [vmem:[#allocation18 + $0xeb8] sm:$0xff]
    %v2250 = vld [vmem:[#allocation18 + $0xec0] sm:$0xff]
    %v2251 = vld [vmem:[#allocation18 + $0xec8] sm:$0xff]
    %v2252 = vld [vmem:[#allocation18 + $0xed0] sm:$0xff]
    %v2253 = vld [vmem:[#allocation18 + $0xed8] sm:$0xff]
    %v2254 = vld [vmem:[#allocation18 + $0xee0] sm:$0xff]
    %v2255 = vld [vmem:[#allocation18 + $0xee8] sm:$0xff]
    %v2256 = vld [vmem:[#allocation18 + $0xef0] sm:$0xff]
    %v2257 = vld [vmem:[#allocation18 + $0xef8] sm:$0xff]
    %v2258 = vld [vmem:[#allocation18 + $0xf00] sm:$0xff]
    %v2259 = vld [vmem:[#allocation18 + $0xf08] sm:$0xff]
    %v2260 = vld [vmem:[#allocation18 + $0xf10] sm:$0xff]
    %v2261 = vld [vmem:[#allocation18 + $0xf18] sm:$0xff]
    %v2262 = vld [vmem:[#allocation18 + $0xf20] sm:$0xff]
    %v2263 = vld [vmem:[#allocation18 + $0xf28] sm:$0xff]
    %v2264 = vld [vmem:[#allocation18 + $0xf30] sm:$0xff]
    %v2265 = vld [vmem:[#allocation18 + $0xf38] sm:$0xff]
    %v2266 = vld [vmem:[#allocation18 + $0xf40] sm:$0xff]
    %v2267 = vld [vmem:[#allocation18 + $0xf48] sm:$0xff]
    %v2268 = vld [vmem:[#allocation18 + $0xf50] sm:$0xff]
    %v2269 = vld [vmem:[#allocation18 + $0xf58] sm:$0xff]
    %v2270 = vld [vmem:[#allocation18 + $0xf60] sm:$0xff]
    %v2271 = vld [vmem:[#allocation18 + $0xf68] sm:$0xff]
    %v2272 = vld [vmem:[#allocation18 + $0xf70] sm:$0xff]
    %v2273 = vld [vmem:[#allocation18 + $0xf78] sm:$0xff]
    %v2274 = vld [vmem:[#allocation18 + $0xf80] sm:$0xff]
    %v2275 = vld [vmem:[#allocation18 + $0xf88] sm:$0xff]
    %v2276 = vld [vmem:[#allocation18 + $0xf90] sm:$0xff]
    %v2277 = vld [vmem:[#allocation18 + $0xf98] sm:$0xff]
    %v2278 = vld [vmem:[#allocation18 + $0xfa0] sm:$0xff]
    %v2279 = vld [vmem:[#allocation18 + $0xfa8] sm:$0xff]
    %v2280 = vld [vmem:[#allocation18 + $0xfb0] sm:$0xff]
    %v2281 = vld [vmem:[#allocation18 + $0xfb8] sm:$0xff]
    %v2282 = vld [vmem:[#allocation18 + $0xfc0] sm:$0xff]
    %v2283 = vld [vmem:[#allocation18 + $0xfc8] sm:$0xff]
    %v2284 = vld [vmem:[#allocation18 + $0xfd0] sm:$0xff]
    %v2285 = vld [vmem:[#allocation18 + $0xfd8] sm:$0xff]
    %v2286 = vld [vmem:[#allocation18 + $0xfe0] sm:$0xff]
    %v2287 = vld [vmem:[#allocation18 + $0xfe8] sm:$0xff]
    %v2288 = vld [vmem:[#allocation18 + $0xff0] sm:$0xff]
    %v2289 = vld [vmem:[#allocation18 + $0xff8] sm:$0xff]
    %v2292 = vcombine.high %v1776, %v1776
    %v2294 = vunpack.c.l.s4 1983009808
    %v2295 = vunpack.c.0.s8 %v2294
    %v2296 = vlaneseq
    %v2297 = vshrl.u32 %v2296, 7
    %v2298 = vsub.s32 %v2295, %v2297
    %v2299 = vrot.slane %v1776, %v2298
    %v2301 = vunpack.c.l.s4 1983009808
    %v2302 = vunpack.c.0.s8 %v2301
    %v2303 = vlaneseq
    %v2304 = vshrl.u32 %v2303, 7
    %v2305 = vsub.s32 %v2302, %v2304
    %v2306 = vrot.slane %v2292, %v2305
    %v2307 = vcombine.high %v2299, %v2299
    %v2308 = vcombine.high %v2306, %v2306
    %v2309 = vcombine.high %v1777, %v1777
    %v2311 = vunpack.c.l.s4 1983009808
    %v2312 = vunpack.c.0.s8 %v2311
    %v2313 = vlaneseq
    %v2314 = vshrl.u32 %v2313, 7
    %v2315 = vsub.s32 %v2312, %v2314
    %v2316 = vrot.slane %v1777, %v2315
    %v2318 = vunpack.c.l.s4 1983009808
    %v2319 = vunpack.c.0.s8 %v2318
    %v2320 = vlaneseq
    %v2321 = vshrl.u32 %v2320, 7
    %v2322 = vsub.s32 %v2319, %v2321
    %v2323 = vrot.slane %v2309, %v2322
    %v2324 = vcombine.high %v2316, %v2316
    %v2325 = vcombine.high %v2323, %v2323
    %2334 = vmatprep.subr.mxu0 %v1779
    %2335 = vmatpush1.msra.mxu0 %v1778
    %2336 = vmatprep.subr.mxu0 %v1783
    %2337 = vmatpush1.msra.mxu0 %v1782
    %2338 = vmatprep.subr.mxu0 %v1787
    %2339 = vmatpush1.msra.mxu0 %v1786
    %2340 = vmatprep.subr.mxu0 %v1791
    %2341 = vmatpush1.msra.mxu0 %v1790
    %2342 = vmatprep.subr.mxu0 %v1795
    %2343 = vmatpush1.msra.mxu0 %v1794
    %2344 = vmatprep.subr.mxu0 %v1799
    %2345 = vmatpush1.msra.mxu0 %v1798
    %2346 = vmatprep.subr.mxu0 %v1803
    %2347 = vmatpush1.msra.mxu0 %v1802
    %2348 = vmatprep.subr.mxu0 %v1807
    %2349 = vmatpush1.msra.mxu0 %v1806
    %2350 = vmatprep.subr.mxu0 %v1811
    %2351 = vmatpush1.msra.mxu0 %v1810
    %2352 = vmatprep.subr.mxu0 %v1815
    %2353 = vmatpush1.msra.mxu0 %v1814
    %2354 = vmatprep.subr.mxu0 %v1819
    %2355 = vmatpush1.msra.mxu0 %v1818
    %2356 = vmatprep.subr.mxu0 %v1823
    %2357 = vmatpush1.msra.mxu0 %v1822
    %2358 = vmatprep.subr.mxu0 %v1827
    %2359 = vmatpush1.msra.mxu0 %v1826
    %2360 = vmatprep.subr.mxu0 %v1831
    %2361 = vmatpush1.msra.mxu0 %v1830
    %2362 = vmatprep.subr.mxu0 %v1835
    %2363 = vmatpush1.msra.mxu0 %v1834
    %2364 = vmatprep.subr.mxu0 %v1839
    %2365 = vmatpush1.msra.mxu0 %v1838
    %2366 = vmatprep.subr.mxu0 %v1843
    %2367 = vmatpush1.msra.mxu0 %v1842
    %2368 = vmatprep.subr.mxu0 %v1847
    %2369 = vmatpush1.msra.mxu0 %v1846
    %2370 = vmatprep.subr.mxu0 %v1851
    %2371 = vmatpush1.msra.mxu0 %v1850
    %2372 = vmatprep.subr.mxu0 %v1855
    %2373 = vmatpush1.msra.mxu0 %v1854
    %2374 = vmatprep.subr.mxu0 %v1859
    %2375 = vmatpush1.msra.mxu0 %v1858
    %2376 = vmatprep.subr.mxu0 %v1863
    %2377 = vmatpush1.msra.mxu0 %v1862
    %2378 = vmatprep.subr.mxu0 %v1867
    %2379 = vmatpush1.msra.mxu0 %v1866
    %2380 = vmatprep.subr.mxu0 %v1871
    %2381 = vmatpush1.msra.mxu0 %v1870
    %2382 = vmatprep.subr.mxu0 %v1875
    %2383 = vmatpush1.msra.mxu0 %v1874
    %2384 = vmatprep.subr.mxu0 %v1879
    %2385 = vmatpush1.msra.mxu0 %v1878
    %2386 = vmatprep.subr.mxu0 %v1883
    %2387 = vmatpush1.msra.mxu0 %v1882
    %2388 = vmatprep.subr.mxu0 %v1887
    %2389 = vmatpush1.msra.mxu0 %v1886
    %2390 = vmatprep.subr.mxu0 %v1891
    %2391 = vmatpush1.msra.mxu0 %v1890
    %2392 = vmatprep.subr.mxu0 %v1895
    %2393 = vmatpush1.msra.mxu0 %v1894
    %2394 = vmatprep.subr.mxu0 %v1899
    %2395 = vmatpush1.msra.mxu0 %v1898
    %2396 = vmatprep.subr.mxu0 %v1903
    %2397 = vmatpush1.msra.mxu0 %v1902
    %2398 = vmatprep.mubr.f32.mxu0 %v2307
    %2399 = vmatmul.mubr.f32.gmra.mrb[0].mxu0 %v2299
    %v2400 = vpop.f32.mrb[0].mxu0
    %v2401 = vadd.f32 0.0, %v2400
    %v2402 = vpop.f32.mrb[0].mxu0
    %v2403 = vadd.f32 0.0, %v2402
    %2404 = vdwg.mxu0
    %2405 = vmatprep.subr.mxu0 %v1907
    %2406 = vmatpush1.msra.mxu0 %v1906
    %2407 = vmatprep.subr.mxu0 %v1911
    %2408 = vmatpush1.msra.mxu0 %v1910
    %2409 = vmatprep.subr.mxu0 %v1915
    %2410 = vmatpush1.msra.mxu0 %v1914
    %2411 = vmatprep.subr.mxu0 %v1919
    %2412 = vmatpush1.msra.mxu0 %v1918
    %2413 = vmatprep.subr.mxu0 %v1923
    %2414 = vmatpush1.msra.mxu0 %v1922
    %2415 = vmatprep.subr.mxu0 %v1927
    %2416 = vmatpush1.msra.mxu0 %v1926
    %2417 = vmatprep.subr.mxu0 %v1931
    %2418 = vmatpush1.msra.mxu0 %v1930
    %2419 = vmatprep.subr.mxu0 %v1935
    %2420 = vmatpush1.msra.mxu0 %v1934
    %2421 = vmatprep.subr.mxu0 %v1939
    %2422 = vmatpush1.msra.mxu0 %v1938
    %2423 = vmatprep.subr.mxu0 %v1943
    %2424 = vmatpush1.msra.mxu0 %v1942
    %2425 = vmatprep.subr.mxu0 %v1947
    %2426 = vmatpush1.msra.mxu0 %v1946
    %2427 = vmatprep.subr.mxu0 %v1951
    %2428 = vmatpush1.msra.mxu0 %v1950
    %2429 = vmatprep.subr.mxu0 %v1955
    %2430 = vmatpush1.msra.mxu0 %v1954
    %2431 = vmatprep.subr.mxu0 %v1959
    %2432 = vmatpush1.msra.mxu0 %v1958
    %2433 = vmatprep.subr.mxu0 %v1963
    %2434 = vmatpush1.msra.mxu0 %v1962
    %2435 = vmatprep.subr.mxu0 %v1967
    %2436 = vmatpush1.msra.mxu0 %v1966
    %2437 = vmatprep.subr.mxu0 %v1971
    %2438 = vmatpush1.msra.mxu0 %v1970
    %2439 = vmatprep.subr.mxu0 %v1975
    %2440 = vmatpush1.msra.mxu0 %v1974
    %2441 = vmatprep.subr.mxu0 %v1979
    %2442 = vmatpush1.msra.mxu0 %v1978
    %2443 = vmatprep.subr.mxu0 %v1983
    %2444 = vmatpush1.msra.mxu0 %v1982
    %2445 = vmatprep.subr.mxu0 %v1987
    %2446 = vmatpush1.msra.mxu0 %v1986
    %2447 = vmatprep.subr.mxu0 %v1991
    %2448 = vmatpush1.msra.mxu0 %v1990
    %2449 = vmatprep.subr.mxu0 %v1995
    %2450 = vmatpush1.msra.mxu0 %v1994
    %2451 = vmatprep.subr.mxu0 %v1999
    %2452 = vmatpush1.msra.mxu0 %v1998
    %2453 = vmatprep.subr.mxu0 %v2003
    %2454 = vmatpush1.msra.mxu0 %v2002
    %2455 = vmatprep.subr.mxu0 %v2007
    %2456 = vmatpush1.msra.mxu0 %v2006
    %2457 = vmatprep.subr.mxu0 %v2011
    %2458 = vmatpush1.msra.mxu0 %v2010
    %2459 = vmatprep.subr.mxu0 %v2015
    %2460 = vmatpush1.msra.mxu0 %v2014
    %2461 = vmatprep.subr.mxu0 %v2019
    %2462 = vmatpush1.msra.mxu0 %v2018
    %2463 = vmatprep.subr.mxu0 %v2023
    %2464 = vmatpush1.msra.mxu0 %v2022
    %2465 = vmatprep.subr.mxu0 %v2027
    %2466 = vmatpush1.msra.mxu0 %v2026
    %2467 = vmatprep.subr.mxu0 %v2031
    %2468 = vmatpush1.msra.mxu0 %v2030
    %2469 = vmatprep.mubr.f32.mxu0 %v2308
    %2470 = vmatmul.mubr.f32.gmra.mrb[0].mxu0 %v2306
    %v2471 = vpop.f32.mrb[0].mxu0
    %v2472 = vadd.f32 %v2401, %v2471
    %v2473 = vpop.f32.mrb[0].mxu0
    %v2474 = vadd.f32 %v2403, %v2473
    %2475 = vdwg.mxu0
    %2476 = vmatprep.subr.mxu0 %v2035
    %2477 = vmatpush1.msra.mxu0 %v2034
    %2478 = vmatprep.subr.mxu0 %v2039
    %2479 = vmatpush1.msra.mxu0 %v2038
    %2480 = vmatprep.subr.mxu0 %v2043
    %2481 = vmatpush1.msra.mxu0 %v2042
    %2482 = vmatprep.subr.mxu0 %v2047
    %2483 = vmatpush1.msra.mxu0 %v2046
    %2484 = vmatprep.subr.mxu0 %v2051
    %2485 = vmatpush1.msra.mxu0 %v2050
    %2486 = vmatprep.subr.mxu0 %v2055
    %2487 = vmatpush1.msra.mxu0 %v2054
    %2488 = vmatprep.subr.mxu0 %v2059
    %2489 = vmatpush1.msra.mxu0 %v2058
    %2490 = vmatprep.subr.mxu0 %v2063
    %2491 = vmatpush1.msra.mxu0 %v2062
    %2492 = vmatprep.subr.mxu0 %v2067
    %2493 = vmatpush1.msra.mxu0 %v2066
    %2494 = vmatprep.subr.mxu0 %v2071
    %2495 = vmatpush1.msra.mxu0 %v2070
    %2496 = vmatprep.subr.mxu0 %v2075
    %2497 = vmatpush1.msra.mxu0 %v2074
    %2498 = vmatprep.subr.mxu0 %v2079
    %2499 = vmatpush1.msra.mxu0 %v2078
    %2500 = vmatprep.subr.mxu0 %v2083
    %2501 = vmatpush1.msra.mxu0 %v2082
    %2502 = vmatprep.subr.mxu0 %v2087
    %2503 = vmatpush1.msra.mxu0 %v2086
    %2504 = vmatprep.subr.mxu0 %v2091
    %2505 = vmatpush1.msra.mxu0 %v2090
    %2506 = vmatprep.subr.mxu0 %v2095
    %2507 = vmatpush1.msra.mxu0 %v2094
    %2508 = vmatprep.subr.mxu0 %v2099
    %2509 = vmatpush1.msra.mxu0 %v2098
    %2510 = vmatprep.subr.mxu0 %v2103
    %2511 = vmatpush1.msra.mxu0 %v2102
    %2512 = vmatprep.subr.mxu0 %v2107
    %2513 = vmatpush1.msra.mxu0 %v2106
    %2514 = vmatprep.subr.mxu0 %v2111
    %2515 = vmatpush1.msra.mxu0 %v2110
    %2516 = vmatprep.subr.mxu0 %v2115
    %2517 = vmatpush1.msra.mxu0 %v2114
    %2518 = vmatprep.subr.mxu0 %v2119
    %2519 = vmatpush1.msra.mxu0 %v2118
    %2520 = vmatprep.subr.mxu0 %v2123
    %2521 = vmatpush1.msra.mxu0 %v2122
    %2522 = vmatprep.subr.mxu0 %v2127
    %2523 = vmatpush1.msra.mxu0 %v2126
    %2524 = vmatprep.subr.mxu0 %v2131
    %2525 = vmatpush1.msra.mxu0 %v2130
    %2526 = vmatprep.subr.mxu0 %v2135
    %2527 = vmatpush1.msra.mxu0 %v2134
    %2528 = vmatprep.subr.mxu0 %v2139
    %2529 = vmatpush1.msra.mxu0 %v2138
    %2530 = vmatprep.subr.mxu0 %v2143
    %2531 = vmatpush1.msra.mxu0 %v2142
    %2532 = vmatprep.subr.mxu0 %v2147
    %2533 = vmatpush1.msra.mxu0 %v2146
    %2534 = vmatprep.subr.mxu0 %v2151
    %2535 = vmatpush1.msra.mxu0 %v2150
    %2536 = vmatprep.subr.mxu0 %v2155
    %2537 = vmatpush1.msra.mxu0 %v2154
    %2538 = vmatprep.subr.mxu0 %v2159
    %2539 = vmatpush1.msra.mxu0 %v2158
    %2540 = vmatprep.mubr.f32.mxu0 %v2324
    %2541 = vmatmul.mubr.f32.gmra.mrb[0].mxu0 %v2316
    %v2542 = vpop.f32.mrb[0].mxu0
    %v2543 = vadd.f32 %v2472, %v2542
    %v2544 = vpop.f32.mrb[0].mxu0
    %v2545 = vadd.f32 %v2474, %v2544
    %2546 = vdwg.mxu0
    %2547 = vmatprep.subr.mxu0 %v2163
    %2548 = vmatpush1.msra.mxu0 %v2162
    %2549 = vmatprep.subr.mxu0 %v2167
    %2550 = vmatpush1.msra.mxu0 %v2166
    %2551 = vmatprep.subr.mxu0 %v2171
    %2552 = vmatpush1.msra.mxu0 %v2170
    %2553 = vmatprep.subr.mxu0 %v2175
    %2554 = vmatpush1.msra.mxu0 %v2174
    %2555 = vmatprep.subr.mxu0 %v2179
    %2556 = vmatpush1.msra.mxu0 %v2178
    %2557 = vmatprep.subr.mxu0 %v2183
    %2558 = vmatpush1.msra.mxu0 %v2182
    %2559 = vmatprep.subr.mxu0 %v2187
    %2560 = vmatpush1.msra.mxu0 %v2186
    %2561 = vmatprep.subr.mxu0 %v2191
    %2562 = vmatpush1.msra.mxu0 %v2190
    %2563 = vmatprep.subr.mxu0 %v2195
    %2564 = vmatpush1.msra.mxu0 %v2194
    %2565 = vmatprep.subr.mxu0 %v2199
    %2566 = vmatpush1.msra.mxu0 %v2198
    %2567 = vmatprep.subr.mxu0 %v2203
    %2568 = vmatpush1.msra.mxu0 %v2202
    %2569 = vmatprep.subr.mxu0 %v2207
    %2570 = vmatpush1.msra.mxu0 %v2206
    %2571 = vmatprep.subr.mxu0 %v2211
    %2572 = vmatpush1.msra.mxu0 %v2210
    %2573 = vmatprep.subr.mxu0 %v2215
    %2574 = vmatpush1.msra.mxu0 %v2214
    %2575 = vmatprep.subr.mxu0 %v2219
    %2576 = vmatpush1.msra.mxu0 %v2218
    %2577 = vmatprep.subr.mxu0 %v2223
    %2578 = vmatpush1.msra.mxu0 %v2222
    %2579 = vmatprep.subr.mxu0 %v2227
    %2580 = vmatpush1.msra.mxu0 %v2226
    %2581 = vmatprep.subr.mxu0 %v2231
    %2582 = vmatpush1.msra.mxu0 %v2230
    %2583 = vmatprep.subr.mxu0 %v2235
    %2584 = vmatpush1.msra.mxu0 %v2234
    %2585 = vmatprep.subr.mxu0 %v2239
    %2586 = vmatpush1.msra.mxu0 %v2238
    %2587 = vmatprep.subr.mxu0 %v2243
    %2588 = vmatpush1.msra.mxu0 %v2242
    %2589 = vmatprep.subr.mxu0 %v2247
    %2590 = vmatpush1.msra.mxu0 %v2246
    %2591 = vmatprep.subr.mxu0 %v2251
    %2592 = vmatpush1.msra.mxu0 %v2250
    %2593 = vmatprep.subr.mxu0 %v2255
    %2594 = vmatpush1.msra.mxu0 %v2254
    %2595 = vmatprep.subr.mxu0 %v2259
    %2596 = vmatpush1.msra.mxu0 %v2258
    %2597 = vmatprep.subr.mxu0 %v2263
    %2598 = vmatpush1.msra.mxu0 %v2262
    %2599 = vmatprep.subr.mxu0 %v2267
    %2600 = vmatpush1.msra.mxu0 %v2266
    %2601 = vmatprep.subr.mxu0 %v2271
    %2602 = vmatpush1.msra.mxu0 %v2270
    %2603 = vmatprep.subr.mxu0 %v2275
    %2604 = vmatpush1.msra.mxu0 %v2274
    %2605 = vmatprep.subr.mxu0 %v2279
    %2606 = vmatpush1.msra.mxu0 %v2278
    %2607 = vmatprep.subr.mxu0 %v2283
    %2608 = vmatpush1.msra.mxu0 %v2282
    %2609 = vmatprep.subr.mxu0 %v2287
    %2610 = vmatpush1.msra.mxu0 %v2286
    %2611 = vmatprep.mubr.f32.mxu0 %v2325
    %2612 = vmatmul.mubr.f32.gmra.mrb[0].mxu0 %v2323
    %v2613 = vpop.f32.mrb[0].mxu0
    %v2614 = vadd.f32 %v2543, %v2613
    %v2615 = vpop.f32.mrb[0].mxu0
    %v2616 = vadd.f32 %v2545, %v2615
    %2617 = vdwg.mxu0
    %2618 = vmatprep.subr.mxu0 %v1781
    %2619 = vmatpush1.msra.mxu0 %v1780
    %2620 = vmatprep.subr.mxu0 %v1785
    %2621 = vmatpush1.msra.mxu0 %v1784
    %2622 = vmatprep.subr.mxu0 %v1789
    %2623 = vmatpush1.msra.mxu0 %v1788
    %2624 = vmatprep.subr.mxu0 %v1793
    %2625 = vmatpush1.msra.mxu0 %v1792
    %2626 = vmatprep.subr.mxu0 %v1797
    %2627 = vmatpush1.msra.mxu0 %v1796
    %2628 = vmatprep.subr.mxu0 %v1801
    %2629 = vmatpush1.msra.mxu0 %v1800
    %2630 = vmatprep.subr.mxu0 %v1805
    %2631 = vmatpush1.msra.mxu0 %v1804
    %2632 = vmatprep.subr.mxu0 %v1809
    %2633 = vmatpush1.msra.mxu0 %v1808
    %2634 = vmatprep.subr.mxu0 %v1813
    %2635 = vmatpush1.msra.mxu0 %v1812
    %2636 = vmatprep.subr.mxu0 %v1817
    %2637 = vmatpush1.msra.mxu0 %v1816
    %2638 = vmatprep.subr.mxu0 %v1821
    %2639 = vmatpush1.msra.mxu0 %v1820
    %2640 = vmatprep.subr.mxu0 %v1825
    %2641 = vmatpush1.msra.mxu0 %v1824
    %2642 = vmatprep.subr.mxu0 %v1829
    %2643 = vmatpush1.msra.mxu0 %v1828
    %2644 = vmatprep.subr.mxu0 %v1833
    %2645 = vmatpush1.msra.mxu0 %v1832
    %2646 = vmatprep.subr.mxu0 %v1837
    %2647 = vmatpush1.msra.mxu0 %v1836
    %2648 = vmatprep.subr.mxu0 %v1841
    %2649 = vmatpush1.msra.mxu0 %v1840
    %2650 = vmatprep.subr.mxu0 %v1845
    %2651 = vmatpush1.msra.mxu0 %v1844
    %2652 = vmatprep.subr.mxu0 %v1849
    %2653 = vmatpush1.msra.mxu0 %v1848
    %2654 = vmatprep.subr.mxu0 %v1853
    %2655 = vmatpush1.msra.mxu0 %v1852
    %2656 = vmatprep.subr.mxu0 %v1857
    %2657 = vmatpush1.msra.mxu0 %v1856
    %2658 = vmatprep.subr.mxu0 %v1861
    %2659 = vmatpush1.msra.mxu0 %v1860
    %2660 = vmatprep.subr.mxu0 %v1865
    %2661 = vmatpush1.msra.mxu0 %v1864
    %2662 = vmatprep.subr.mxu0 %v1869
    %2663 = vmatpush1.msra.mxu0 %v1868
    %2664 = vmatprep.subr.mxu0 %v1873
    %2665 = vmatpush1.msra.mxu0 %v1872
    %2666 = vmatprep.subr.mxu0 %v1877
    %2667 = vmatpush1.msra.mxu0 %v1876
    %2668 = vmatprep.subr.mxu0 %v1881
    %2669 = vmatpush1.msra.mxu0 %v1880
    %2670 = vmatprep.subr.mxu0 %v1885
    %2671 = vmatpush1.msra.mxu0 %v1884
    %2672 = vmatprep.subr.mxu0 %v1889
    %2673 = vmatpush1.msra.mxu0 %v1888
    %2674 = vmatprep.subr.mxu0 %v1893
    %2675 = vmatpush1.msra.mxu0 %v1892
    %2676 = vmatprep.subr.mxu0 %v1897
    %2677 = vmatpush1.msra.mxu0 %v1896
    %2678 = vmatprep.subr.mxu0 %v1901
    %2679 = vmatpush1.msra.mxu0 %v1900
    %2680 = vmatprep.subr.mxu0 %v1905
    %2681 = vmatpush1.msra.mxu0 %v1904
    %2682 = vmatprep.mubr.f32.mxu0 %v2307
    %2683 = vmatmul.mubr.f32.gmra.mrb[0].mxu0 %v2299
    %v2684 = vpop.f32.mrb[0].mxu0
    %v2685 = vadd.f32 0.0, %v2684
    %v2686 = vpop.f32.mrb[0].mxu0
    %v2687 = vadd.f32 0.0, %v2686
    %2688 = vdwg.mxu0
    %2689 = vmatprep.subr.mxu0 %v1909
    %2690 = vmatpush1.msra.mxu0 %v1908
    %2691 = vmatprep.subr.mxu0 %v1913
    %2692 = vmatpush1.msra.mxu0 %v1912
    %2693 = vmatprep.subr.mxu0 %v1917
    %2694 = vmatpush1.msra.mxu0 %v1916
    %2695 = vmatprep.subr.mxu0 %v1921
    %2696 = vmatpush1.msra.mxu0 %v1920
    %2697 = vmatprep.subr.mxu0 %v1925
    %2698 = vmatpush1.msra.mxu0 %v1924
    %2699 = vmatprep.subr.mxu0 %v1929
    %2700 = vmatpush1.msra.mxu0 %v1928
    %2701 = vmatprep.subr.mxu0 %v1933
    %2702 = vmatpush1.msra.mxu0 %v1932
    %2703 = vmatprep.subr.mxu0 %v1937
    %2704 = vmatpush1.msra.mxu0 %v1936
    %2705 = vmatprep.subr.mxu0 %v1941
    %2706 = vmatpush1.msra.mxu0 %v1940
    %2707 = vmatprep.subr.mxu0 %v1945
    %2708 = vmatpush1.msra.mxu0 %v1944
    %2709 = vmatprep.subr.mxu0 %v1949
    %2710 = vmatpush1.msra.mxu0 %v1948
    %2711 = vmatprep.subr.mxu0 %v1953
    %2712 = vmatpush1.msra.mxu0 %v1952
    %2713 = vmatprep.subr.mxu0 %v1957
    %2714 = vmatpush1.msra.mxu0 %v1956
    %2715 = vmatprep.subr.mxu0 %v1961
    %2716 = vmatpush1.msra.mxu0 %v1960
    %2717 = vmatprep.subr.mxu0 %v1965
    %2718 = vmatpush1.msra.mxu0 %v1964
    %2719 = vmatprep.subr.mxu0 %v1969
    %2720 = vmatpush1.msra.mxu0 %v1968
    %2721 = vmatprep.subr.mxu0 %v1973
    %2722 = vmatpush1.msra.mxu0 %v1972
    %2723 = vmatprep.subr.mxu0 %v1977
    %2724 = vmatpush1.msra.mxu0 %v1976
    %2725 = vmatprep.subr.mxu0 %v1981
    %2726 = vmatpush1.msra.mxu0 %v1980
    %2727 = vmatprep.subr.mxu0 %v1985
    %2728 = vmatpush1.msra.mxu0 %v1984
    %2729 = vmatprep.subr.mxu0 %v1989
    %2730 = vmatpush1.msra.mxu0 %v1988
    %2731 = vmatprep.subr.mxu0 %v1993
    %2732 = vmatpush1.msra.mxu0 %v1992
    %2733 = vmatprep.subr.mxu0 %v1997
    %2734 = vmatpush1.msra.mxu0 %v1996
    %2735 = vmatprep.subr.mxu0 %v2001
    %2736 = vmatpush1.msra.mxu0 %v2000
    %2737 = vmatprep.subr.mxu0 %v2005
    %2738 = vmatpush1.msra.mxu0 %v2004
    %2739 = vmatprep.subr.mxu0 %v2009
    %2740 = vmatpush1.msra.mxu0 %v2008
    %2741 = vmatprep.subr.mxu0 %v2013
    %2742 = vmatpush1.msra.mxu0 %v2012
    %2743 = vmatprep.subr.mxu0 %v2017
    %2744 = vmatpush1.msra.mxu0 %v2016
    %2745 = vmatprep.subr.mxu0 %v2021
    %2746 = vmatpush1.msra.mxu0 %v2020
    %2747 = vmatprep.subr.mxu0 %v2025
    %2748 = vmatpush1.msra.mxu0 %v2024
    %2749 = vmatprep.subr.mxu0 %v2029
    %2750 = vmatpush1.msra.mxu0 %v2028
    %2751 = vmatprep.subr.mxu0 %v2033
    %2752 = vmatpush1.msra.mxu0 %v2032
    %2753 = vmatprep.mubr.f32.mxu0 %v2308
    %2754 = vmatmul.mubr.f32.gmra.mrb[0].mxu0 %v2306
    %v2755 = vpop.f32.mrb[0].mxu0
    %v2756 = vadd.f32 %v2685, %v2755
    %v2757 = vpop.f32.mrb[0].mxu0
    %v2758 = vadd.f32 %v2687, %v2757
    %2759 = vdwg.mxu0
    %2760 = vmatprep.subr.mxu0 %v2037
    %2761 = vmatpush1.msra.mxu0 %v2036
    %2762 = vmatprep.subr.mxu0 %v2041
    %2763 = vmatpush1.msra.mxu0 %v2040
    %2764 = vmatprep.subr.mxu0 %v2045
    %2765 = vmatpush1.msra.mxu0 %v2044
    %2766 = vmatprep.subr.mxu0 %v2049
    %2767 = vmatpush1.msra.mxu0 %v2048
    %2768 = vmatprep.subr.mxu0 %v2053
    %2769 = vmatpush1.msra.mxu0 %v2052
    %2770 = vmatprep.subr.mxu0 %v2057
    %2771 = vmatpush1.msra.mxu0 %v2056
    %2772 = vmatprep.subr.mxu0 %v2061
    %2773 = vmatpush1.msra.mxu0 %v2060
    %2774 = vmatprep.subr.mxu0 %v2065
    %2775 = vmatpush1.msra.mxu0 %v2064
    %2776 = vmatprep.subr.mxu0 %v2069
    %2777 = vmatpush1.msra.mxu0 %v2068
    %2778 = vmatprep.subr.mxu0 %v2073
    %2779 = vmatpush1.msra.mxu0 %v2072
    %2780 = vmatprep.subr.mxu0 %v2077
    %2781 = vmatpush1.msra.mxu0 %v2076
    %2782 = vmatprep.subr.mxu0 %v2081
    %2783 = vmatpush1.msra.mxu0 %v2080
    %2784 = vmatprep.subr.mxu0 %v2085
    %2785 = vmatpush1.msra.mxu0 %v2084
    %2786 = vmatprep.subr.mxu0 %v2089
    %2787 = vmatpush1.msra.mxu0 %v2088
    %2788 = vmatprep.subr.mxu0 %v2093
    %2789 = vmatpush1.msra.mxu0 %v2092
    %2790 = vmatprep.subr.mxu0 %v2097
    %2791 = vmatpush1.msra.mxu0 %v2096
    %2792 = vmatprep.subr.mxu0 %v2101
    %2793 = vmatpush1.msra.mxu0 %v2100
    %2794 = vmatprep.subr.mxu0 %v2105
    %2795 = vmatpush1.msra.mxu0 %v2104
    %2796 = vmatprep.subr.mxu0 %v2109
    %2797 = vmatpush1.msra.mxu0 %v2108
    %2798 = vmatprep.subr.mxu0 %v2113
    %2799 = vmatpush1.msra.mxu0 %v2112
    %2800 = vmatprep.subr.mxu0 %v2117
    %2801 = vmatpush1.msra.mxu0 %v2116
    %2802 = vmatprep.subr.mxu0 %v2121
    %2803 = vmatpush1.msra.mxu0 %v2120
    %2804 = vmatprep.subr.mxu0 %v2125
    %2805 = vmatpush1.msra.mxu0 %v2124
    %2806 = vmatprep.subr.mxu0 %v2129
    %2807 = vmatpush1.msra.mxu0 %v2128
    %2808 = vmatprep.subr.mxu0 %v2133
    %2809 = vmatpush1.msra.mxu0 %v2132
    %2810 = vmatprep.subr.mxu0 %v2137
    %2811 = vmatpush1.msra.mxu0 %v2136
    %2812 = vmatprep.subr.mxu0 %v2141
    %2813 = vmatpush1.msra.mxu0 %v2140
    %2814 = vmatprep.subr.mxu0 %v2145
    %2815 = vmatpush1.msra.mxu0 %v2144
    %2816 = vmatprep.subr.mxu0 %v2149
    %2817 = vmatpush1.msra.mxu0 %v2148
    %2818 = vmatprep.subr.mxu0 %v2153
    %2819 = vmatpush1.msra.mxu0 %v2152
    %2820 = vmatprep.subr.mxu0 %v2157
    %2821 = vmatpush1.msra.mxu0 %v2156
    %2822 = vmatprep.subr.mxu0 %v2161
    %2823 = vmatpush1.msra.mxu0 %v2160
    %2824 = vmatprep.mubr.f32.mxu0 %v2324
    %2825 = vmatmul.mubr.f32.gmra.mrb[0].mxu0 %v2316
    %v2826 = vpop.f32.mrb[0].mxu0
    %v2827 = vadd.f32 %v2756, %v2826
    %v2828 = vpop.f32.mrb[0].mxu0
    %v2829 = vadd.f32 %v2758, %v2828
    %2830 = vdwg.mxu0
    %2831 = vmatprep.subr.mxu0 %v2165
    %2832 = vmatpush1.msra.mxu0 %v2164
    %2833 = vmatprep.subr.mxu0 %v2169
    %2834 = vmatpush1.msra.mxu0 %v2168
    %2835 = vmatprep.subr.mxu0 %v2173
    %2836 = vmatpush1.msra.mxu0 %v2172
    %2837 = vmatprep.subr.mxu0 %v2177
    %2838 = vmatpush1.msra.mxu0 %v2176
    %2839 = vmatprep.subr.mxu0 %v2181
    %2840 = vmatpush1.msra.mxu0 %v2180
    %2841 = vmatprep.subr.mxu0 %v2185
    %2842 = vmatpush1.msra.mxu0 %v2184
    %2843 = vmatprep.subr.mxu0 %v2189
    %2844 = vmatpush1.msra.mxu0 %v2188
    %2845 = vmatprep.subr.mxu0 %v2193
    %2846 = vmatpush1.msra.mxu0 %v2192
    %2847 = vmatprep.subr.mxu0 %v2197
    %2848 = vmatpush1.msra.mxu0 %v2196
    %2849 = vmatprep.subr.mxu0 %v2201
    %2850 = vmatpush1.msra.mxu0 %v2200
    %2851 = vmatprep.subr.mxu0 %v2205
    %2852 = vmatpush1.msra.mxu0 %v2204
    %2853 = vmatprep.subr.mxu0 %v2209
    %2854 = vmatpush1.msra.mxu0 %v2208
    %2855 = vmatprep.subr.mxu0 %v2213
    %2856 = vmatpush1.msra.mxu0 %v2212
    %2857 = vmatprep.subr.mxu0 %v2217
    %2858 = vmatpush1.msra.mxu0 %v2216
    %2859 = vmatprep.subr.mxu0 %v2221
    %2860 = vmatpush1.msra.mxu0 %v2220
    %2861 = vmatprep.subr.mxu0 %v2225
    %2862 = vmatpush1.msra.mxu0 %v2224
    %2863 = vmatprep.subr.mxu0 %v2229
    %2864 = vmatpush1.msra.mxu0 %v2228
    %2865 = vmatprep.subr.mxu0 %v2233
    %2866 = vmatpush1.msra.mxu0 %v2232
    %2867 = vmatprep.subr.mxu0 %v2237
    %2868 = vmatpush1.msra.mxu0 %v2236
    %2869 = vmatprep.subr.mxu0 %v2241
    %2870 = vmatpush1.msra.mxu0 %v2240
    %2871 = vmatprep.subr.mxu0 %v2245
    %2872 = vmatpush1.msra.mxu0 %v2244
    %2873 = vmatprep.subr.mxu0 %v2249
    %2874 = vmatpush1.msra.mxu0 %v2248
    %2875 = vmatprep.subr.mxu0 %v2253
    %2876 = vmatpush1.msra.mxu0 %v2252
    %2877 = vmatprep.subr.mxu0 %v2257
    %2878 = vmatpush1.msra.mxu0 %v2256
    %2879 = vmatprep.subr.mxu0 %v2261
    %2880 = vmatpush1.msra.mxu0 %v2260
    %2881 = vmatprep.subr.mxu0 %v2265
    %2882 = vmatpush1.msra.mxu0 %v2264
    %2883 = vmatprep.subr.mxu0 %v2269
    %2884 = vmatpush1.msra.mxu0 %v2268
    %2885 = vmatprep.subr.mxu0 %v2273
    %2886 = vmatpush1.msra.mxu0 %v2272
    %2887 = vmatprep.subr.mxu0 %v2277
    %2888 = vmatpush1.msra.mxu0 %v2276
    %2889 = vmatprep.subr.mxu0 %v2281
    %2890 = vmatpush1.msra.mxu0 %v2280
    %2891 = vmatprep.subr.mxu0 %v2285
    %2892 = vmatpush1.msra.mxu0 %v2284
    %2893 = vmatprep.subr.mxu0 %v2289
    %2894 = vmatpush1.msra.mxu0 %v2288
    %2895 = vmatprep.mubr.f32.mxu0 %v2325
    %2896 = vmatmul.mubr.f32.gmra.mrb[0].mxu0 %v2323
    %v2897 = vpop.f32.mrb[0].mxu0
    %v2898 = vadd.f32 %v2827, %v2897
    %v2899 = vpop.f32.mrb[0].mxu0
    %v2900 = vadd.f32 %v2829, %v2899
    %2901 = vdwg.mxu0
    %v2902 = vld [vmem:[#allocation20] sm:$0xf]
    %v2903 = vld [vmem:[#allocation21] sm:$0xf]
    %vm2904 = vcmask 1041408
    %v2905 = vsel %vm2904, %v2614, 0.0
    %v2906 = vrot.slane %v2905, 4
    %v2907 = vadd.f32 %v2905, %v2906
    %v2908 = vrot.slane %v2907, 2
    %v2909 = vadd.f32 %v2907, %v2908
    %v2910 = vrot.slane %v2909, 1
    %v2911 = vadd.f32 %v2909, %v2910
    %v2912 = vsel %vm2904, %v2616, 0.0
    %v2913 = vrot.slane %v2912, 4
    %v2914 = vadd.f32 %v2912, %v2913
    %v2915 = vrot.slane %v2914, 2
    %v2916 = vadd.f32 %v2914, %v2915
    %v2917 = vrot.slane %v2916, 1
    %v2918 = vadd.f32 %v2916, %v2917
    %v2919 = vsel %vm2904, %v2898, 0.0
    %v2920 = vrot.slane %v2919, 4
    %v2921 = vadd.f32 %v2919, %v2920
    %v2922 = vrot.slane %v2921, 2
    %v2923 = vadd.f32 %v2921, %v2922
    %v2924 = vrot.slane %v2923, 1
    %v2925 = vadd.f32 %v2923, %v2924
    %v2926 = vsel %vm2904, %v2900, 0.0
    %v2927 = vrot.slane %v2926, 4
    %v2928 = vadd.f32 %v2926, %v2927
    %v2929 = vrot.slane %v2928, 2
    %v2930 = vadd.f32 %v2928, %v2929
    %v2931 = vrot.slane %v2930, 1
    %v2932 = vadd.f32 %v2930, %v2931
    %v2933 = vrcp.pop 2.0
    %v2934 = vmul.f32 %v2911, %v2933
    %v2935 = vmul.f32 %v2918, %v2933
    %v2936 = vmul.f32 %v2925, %v2933
    %v2937 = vmul.f32 %v2932, %v2933
    %v2938 = vsub.f32 %v2614, %v2934
    %v2939 = vsub.f32 %v2616, %v2935
    %v2940 = vsub.f32 %v2898, %v2936
    %v2941 = vsub.f32 %v2900, %v2937
    %v2942 = vmul.f32 %v2938, %v2938
    %v2943 = vmul.f32 %v2939, %v2939
    %v2944 = vmul.f32 %v2940, %v2940
    %v2945 = vmul.f32 %v2941, %v2941
    %v2946 = vsel %vm2904, %v2942, 0.0
    %v2947 = vrot.slane %v2946, 4
    %v2948 = vadd.f32 %v2946, %v2947
    %v2949 = vrot.slane %v2948, 2
    %v2950 = vadd.f32 %v2948, %v2949
    %v2951 = vrot.slane %v2950, 1
    %v2952 = vadd.f32 %v2950, %v2951
    %v2953 = vsel %vm2904, %v2943, 0.0
    %v2954 = vrot.slane %v2953, 4
    %v2955 = vadd.f32 %v2953, %v2954
    %v2956 = vrot.slane %v2955, 2
    %v2957 = vadd.f32 %v2955, %v2956
    %v2958 = vrot.slane %v2957, 1
    %v2959 = vadd.f32 %v2957, %v2958
    %v2960 = vsel %vm2904, %v2944, 0.0
    %v2961 = vrot.slane %v2960, 4
    %v2962 = vadd.f32 %v2960, %v2961
    %v2963 = vrot.slane %v2962, 2
    %v2964 = vadd.f32 %v2962, %v2963
    %v2965 = vrot.slane %v2964, 1
    %v2966 = vadd.f32 %v2964, %v2965
    %v2967 = vsel %vm2904, %v2945, 0.0
    %v2968 = vrot.slane %v2967, 4
    %v2969 = vadd.f32 %v2967, %v2968
    %v2970 = vrot.slane %v2969, 2
    %v2971 = vadd.f32 %v2969, %v2970
    %v2972 = vrot.slane %v2971, 1
    %v2973 = vadd.f32 %v2971, %v2972
    %v2974 = vmul.f32 %v2952, %v2933
    %v2975 = vmul.f32 %v2959, %v2933
    %v2976 = vmul.f32 %v2966, %v2933
    %v2977 = vmul.f32 %v2973, %v2933
    %v2978 = vadd.f32 %v2974, 1e-05
    %v2979 = vadd.f32 %v2975, 1e-05
    %v2980 = vadd.f32 %v2976, 1e-05
    %v2981 = vadd.f32 %v2977, 1e-05
    %v2982 = vrsqrt.pop %v2978
    %v2983 = vrsqrt.pop %v2979
    %v2984 = vrsqrt.pop %v2980
    %v2985 = vrsqrt.pop %v2981
    %v2986 = vmul.f32 %v2938, %v2982
    %v2987 = vmul.f32 %v2939, %v2983
    %v2988 = vmul.f32 %v2940, %v2984
    %v2989 = vmul.f32 %v2941, %v2985
    %v2991 = vlaneseq
    %v2992 = vshrl.u32 %v2991, 7
    %v2993 = vsub.s32 0, %v2992
    %v2994 = vrot.slane %v2902, %v2993
    %v2995 = vlaneseq
    %v2996 = vshrl.u32 %v2995, 7
    %v2997 = vsub.s32 1, %v2996
    %v2998 = vrot.slane %v2902, %v2997
    %v2999 = vlaneseq
    %v3000 = vshrl.u32 %v2999, 7
    %v3001 = vsub.s32 2, %v3000
    %v3002 = vrot.slane %v2902, %v3001
    %v3003 = vlaneseq
    %v3004 = vshrl.u32 %v3003, 7
    %v3005 = vsub.s32 3, %v3004
    %v3006 = vrot.slane %v2902, %v3005
    %v3011 = vmul.f32 %v2986, %v2994
    %v3012 = vmul.f32 %v2987, %v2998
    %v3013 = vmul.f32 %v2988, %v3002
    %v3014 = vmul.f32 %v2989, %v3006
    %v3016 = vlaneseq
    %v3017 = vshrl.u32 %v3016, 7
    %v3018 = vsub.s32 0, %v3017
    %v3019 = vrot.slane %v2903, %v3018
    %v3020 = vlaneseq
    %v3021 = vshrl.u32 %v3020, 7
    %v3022 = vsub.s32 1, %v3021
    %v3023 = vrot.slane %v2903, %v3022
    %v3024 = vlaneseq
    %v3025 = vshrl.u32 %v3024, 7
    %v3026 = vsub.s32 2, %v3025
    %v3027 = vrot.slane %v2903, %v3026
    %v3028 = vlaneseq
    %v3029 = vshrl.u32 %v3028, 7
    %v3030 = vsub.s32 3, %v3029
    %v3031 = vrot.slane %v2903, %v3030
    %v3036 = vadd.f32 %v3011, %v3019
    %v3037 = vadd.f32 %v3012, %v3023
    %v3038 = vadd.f32 %v3013, %v3027
    %v3039 = vadd.f32 %v3014, %v3031
    %v3040 = vmax.f32 %v3036, 0.0
    %v3041 = vmax.f32 %v3037, 0.0
    %v3042 = vmax.f32 %v3038, 0.0
    %v3043 = vmax.f32 %v3039, 0.0
    %v3044 = vld [vmem:[#allocation23] sm:$0xff]
    %v3045 = vld [vmem:[#allocation23 + $0x8] sm:$0xff]
    %v3046 = vld [vmem:[#allocation23 + $0x10] sm:$0xff]
    %v3047 = vld [vmem:[#allocation23 + $0x18] sm:$0xff]
    %v3048 = vld [vmem:[#allocation23 + $0x20] sm:$0xff]
    %v3049 = vld [vmem:[#allocation23 + $0x28] sm:$0xff]
    %v3050 = vld [vmem:[#allocation23 + $0x30] sm:$0xff]
    %v3051 = vld [vmem:[#allocation23 + $0x38] sm:$0xff]
    %v3052 = vld [vmem:[#allocation23 + $0x40] sm:$0xff]
    %v3053 = vld [vmem:[#allocation23 + $0x48] sm:$0xff]
    %v3054 = vld [vmem:[#allocation23 + $0x50] sm:$0xff]
    %v3055 = vld [vmem:[#allocation23 + $0x58] sm:$0xff]
    %v3056 = vld [vmem:[#allocation23 + $0x60] sm:$0xff]
    %v3057 = vld [vmem:[#allocation23 + $0x68] sm:$0xff]
    %v3058 = vld [vmem:[#allocation23 + $0x70] sm:$0xff]
    %v3059 = vld [vmem:[#allocation23 + $0x78] sm:$0xff]
    %v3060 = vld [vmem:[#allocation23 + $0x80] sm:$0xff]
    %v3061 = vld [vmem:[#allocation23 + $0x88] sm:$0xff]
    %v3062 = vld [vmem:[#allocation23 + $0x90] sm:$0xff]
    %v3063 = vld [vmem:[#allocation23 + $0x98] sm:$0xff]
    %v3064 = vld [vmem:[#allocation23 + $0xa0] sm:$0xff]
    %v3065 = vld [vmem:[#allocation23 + $0xa8] sm:$0xff]
    %v3066 = vld [vmem:[#allocation23 + $0xb0] sm:$0xff]
    %v3067 = vld [vmem:[#allocation23 + $0xb8] sm:$0xff]
    %v3068 = vld [vmem:[#allocation23 + $0xc0] sm:$0xff]
    %v3069 = vld [vmem:[#allocation23 + $0xc8] sm:$0xff]
    %v3070 = vld [vmem:[#allocation23 + $0xd0] sm:$0xff]
    %v3071 = vld [vmem:[#allocation23 + $0xd8] sm:$0xff]
    %v3072 = vld [vmem:[#allocation23 + $0xe0] sm:$0xff]
    %v3073 = vld [vmem:[#allocation23 + $0xe8] sm:$0xff]
    %v3074 = vld [vmem:[#allocation23 + $0xf0] sm:$0xff]
    %v3075 = vld [vmem:[#allocation23 + $0xf8] sm:$0xff]
    %v3076 = vld [vmem:[#allocation23 + $0x100] sm:$0xff]
    %v3077 = vld [vmem:[#allocation23 + $0x108] sm:$0xff]
    %v3078 = vld [vmem:[#allocation23 + $0x110] sm:$0xff]
    %v3079 = vld [vmem:[#allocation23 + $0x118] sm:$0xff]
    %v3080 = vld [vmem:[#allocation23 + $0x120] sm:$0xff]
    %v3081 = vld [vmem:[#allocation23 + $0x128] sm:$0xff]
    %v3082 = vld [vmem:[#allocation23 + $0x130] sm:$0xff]
    %v3083 = vld [vmem:[#allocation23 + $0x138] sm:$0xff]
    %v3084 = vld [vmem:[#allocation23 + $0x140] sm:$0xff]
    %v3085 = vld [vmem:[#allocation23 + $0x148] sm:$0xff]
    %v3086 = vld [vmem:[#allocation23 + $0x150] sm:$0xff]
    %v3087 = vld [vmem:[#allocation23 + $0x158] sm:$0xff]
    %v3088 = vld [vmem:[#allocation23 + $0x160] sm:$0xff]
    %v3089 = vld [vmem:[#allocation23 + $0x168] sm:$0xff]
    %v3090 = vld [vmem:[#allocation23 + $0x170] sm:$0xff]
    %v3091 = vld [vmem:[#allocation23 + $0x178] sm:$0xff]
    %v3092 = vld [vmem:[#allocation23 + $0x180] sm:$0xff]
    %v3093 = vld [vmem:[#allocation23 + $0x188] sm:$0xff]
    %v3094 = vld [vmem:[#allocation23 + $0x190] sm:$0xff]
    %v3095 = vld [vmem:[#allocation23 + $0x198] sm:$0xff]
    %v3096 = vld [vmem:[#allocation23 + $0x1a0] sm:$0xff]
    %v3097 = vld [vmem:[#allocation23 + $0x1a8] sm:$0xff]
    %v3098 = vld [vmem:[#allocation23 + $0x1b0] sm:$0xff]
    %v3099 = vld [vmem:[#allocation23 + $0x1b8] sm:$0xff]
    %v3100 = vld [vmem:[#allocation23 + $0x1c0] sm:$0xff]
    %v3101 = vld [vmem:[#allocation23 + $0x1c8] sm:$0xff]
    %v3102 = vld [vmem:[#allocation23 + $0x1d0] sm:$0xff]
    %v3103 = vld [vmem:[#allocation23 + $0x1d8] sm:$0xff]
    %v3104 = vld [vmem:[#allocation23 + $0x1e0] sm:$0xff]
    %v3105 = vld [vmem:[#allocation23 + $0x1e8] sm:$0xff]
    %v3106 = vld [vmem:[#allocation23 + $0x1f0] sm:$0xff]
    %v3107 = vld [vmem:[#allocation23 + $0x1f8] sm:$0xff]
    %v3108 = vld [vmem:[#allocation23 + $0x200] sm:$0xff]
    %v3109 = vld [vmem:[#allocation23 + $0x208] sm:$0xff]
    %v3110 = vld [vmem:[#allocation23 + $0x210] sm:$0xff]
    %v3111 = vld [vmem:[#allocation23 + $0x218] sm:$0xff]
    %v3112 = vld [vmem:[#allocation23 + $0x220] sm:$0xff]
    %v3113 = vld [vmem:[#allocation23 + $0x228] sm:$0xff]
    %v3114 = vld [vmem:[#allocation23 + $0x230] sm:$0xff]
    %v3115 = vld [vmem:[#allocation23 + $0x238] sm:$0xff]
    %v3116 = vld [vmem:[#allocation23 + $0x240] sm:$0xff]
    %v3117 = vld [vmem:[#allocation23 + $0x248] sm:$0xff]
    %v3118 = vld [vmem:[#allocation23 + $0x250] sm:$0xff]
    %v3119 = vld [vmem:[#allocation23 + $0x258] sm:$0xff]
    %v3120 = vld [vmem:[#allocation23 + $0x260] sm:$0xff]
    %v3121 = vld [vmem:[#allocation23 + $0x268] sm:$0xff]
    %v3122 = vld [vmem:[#allocation23 + $0x270] sm:$0xff]
    %v3123 = vld [vmem:[#allocation23 + $0x278] sm:$0xff]
    %v3124 = vld [vmem:[#allocation23 + $0x280] sm:$0xff]
    %v3125 = vld [vmem:[#allocation23 + $0x288] sm:$0xff]
    %v3126 = vld [vmem:[#allocation23 + $0x290] sm:$0xff]
    %v3127 = vld [vmem:[#allocation23 + $0x298] sm:$0xff]
    %v3128 = vld [vmem:[#allocation23 + $0x2a0] sm:$0xff]
    %v3129 = vld [vmem:[#allocation23 + $0x2a8] sm:$0xff]
    %v3130 = vld [vmem:[#allocation23 + $0x2b0] sm:$0xff]
    %v3131 = vld [vmem:[#allocation23 + $0x2b8] sm:$0xff]
    %v3132 = vld [vmem:[#allocation23 + $0x2c0] sm:$0xff]
    %v3133 = vld [vmem:[#allocation23 + $0x2c8] sm:$0xff]
    %v3134 = vld [vmem:[#allocation23 + $0x2d0] sm:$0xff]
    %v3135 = vld [vmem:[#allocation23 + $0x2d8] sm:$0xff]
    %v3136 = vld [vmem:[#allocation23 + $0x2e0] sm:$0xff]
    %v3137 = vld [vmem:[#allocation23 + $0x2e8] sm:$0xff]
    %v3138 = vld [vmem:[#allocation23 + $0x2f0] sm:$0xff]
    %v3139 = vld [vmem:[#allocation23 + $0x2f8] sm:$0xff]
    %v3140 = vld [vmem:[#allocation23 + $0x300] sm:$0xff]
    %v3141 = vld [vmem:[#allocation23 + $0x308] sm:$0xff]
    %v3142 = vld [vmem:[#allocation23 + $0x310] sm:$0xff]
    %v3143 = vld [vmem:[#allocation23 + $0x318] sm:$0xff]
    %v3144 = vld [vmem:[#allocation23 + $0x320] sm:$0xff]
    %v3145 = vld [vmem:[#allocation23 + $0x328] sm:$0xff]
    %v3146 = vld [vmem:[#allocation23 + $0x330] sm:$0xff]
    %v3147 = vld [vmem:[#allocation23 + $0x338] sm:$0xff]
    %v3148 = vld [vmem:[#allocation23 + $0x340] sm:$0xff]
    %v3149 = vld [vmem:[#allocation23 + $0x348] sm:$0xff]
    %v3150 = vld [vmem:[#allocation23 + $0x350] sm:$0xff]
    %v3151 = vld [vmem:[#allocation23 + $0x358] sm:$0xff]
    %v3152 = vld [vmem:[#allocation23 + $0x360] sm:$0xff]
    %v3153 = vld [vmem:[#allocation23 + $0x368] sm:$0xff]
    %v3154 = vld [vmem:[#allocation23 + $0x370] sm:$0xff]
    %v3155 = vld [vmem:[#allocation23 + $0x378] sm:$0xff]
    %v3156 = vld [vmem:[#allocation23 + $0x380] sm:$0xff]
    %v3157 = vld [vmem:[#allocation23 + $0x388] sm:$0xff]
    %v3158 = vld [vmem:[#allocation23 + $0x390] sm:$0xff]
    %v3159 = vld [vmem:[#allocation23 + $0x398] sm:$0xff]
    %v3160 = vld [vmem:[#allocation23 + $0x3a0] sm:$0xff]
    %v3161 = vld [vmem:[#allocation23 + $0x3a8] sm:$0xff]
    %v3162 = vld [vmem:[#allocation23 + $0x3b0] sm:$0xff]
    %v3163 = vld [vmem:[#allocation23 + $0x3b8] sm:$0xff]
    %v3164 = vld [vmem:[#allocation23 + $0x3c0] sm:$0xff]
    %v3165 = vld [vmem:[#allocation23 + $0x3c8] sm:$0xff]
    %v3166 = vld [vmem:[#allocation23 + $0x3d0] sm:$0xff]
    %v3167 = vld [vmem:[#allocation23 + $0x3d8] sm:$0xff]
    %v3168 = vld [vmem:[#allocation23 + $0x3e0] sm:$0xff]
    %v3169 = vld [vmem:[#allocation23 + $0x3e8] sm:$0xff]
    %v3170 = vld [vmem:[#allocation23 + $0x3f0] sm:$0xff]
    %v3171 = vld [vmem:[#allocation23 + $0x3f8] sm:$0xff]
    %3172 = vmatprep.subr.mxu0 %v3045
    %3173 = vmatpush1.msra.mxu0 %v3044
    %3174 = vmatprep.subr.mxu0 %v3047
    %3175 = vmatpush1.msra.mxu0 %v3046
    %3176 = vmatprep.subr.mxu0 %v3049
    %3177 = vmatpush1.msra.mxu0 %v3048
    %3178 = vmatprep.subr.mxu0 %v3051
    %3179 = vmatpush1.msra.mxu0 %v3050
    %3180 = vmatprep.subr.mxu0 %v3053
    %3181 = vmatpush1.msra.mxu0 %v3052
    %3182 = vmatprep.subr.mxu0 %v3055
    %3183 = vmatpush1.msra.mxu0 %v3054
    %3184 = vmatprep.subr.mxu0 %v3057
    %3185 = vmatpush1.msra.mxu0 %v3056
    %3186 = vmatprep.subr.mxu0 %v3059
    %3187 = vmatpush1.msra.mxu0 %v3058
    %3188 = vmatprep.subr.mxu0 %v3061
    %3189 = vmatpush1.msra.mxu0 %v3060
    %3190 = vmatprep.subr.mxu0 %v3063
    %3191 = vmatpush1.msra.mxu0 %v3062
    %3192 = vmatprep.subr.mxu0 %v3065
    %3193 = vmatpush1.msra.mxu0 %v3064
    %3194 = vmatprep.subr.mxu0 %v3067
    %3195 = vmatpush1.msra.mxu0 %v3066
    %3196 = vmatprep.subr.mxu0 %v3069
    %3197 = vmatpush1.msra.mxu0 %v3068
    %3198 = vmatprep.subr.mxu0 %v3071
    %3199 = vmatpush1.msra.mxu0 %v3070
    %3200 = vmatprep.subr.mxu0 %v3073
    %3201 = vmatpush1.msra.mxu0 %v3072
    %3202 = vmatprep.subr.mxu0 %v3075
    %3203 = vmatpush1.msra.mxu0 %v3074
    %3204 = vmatprep.subr.mxu0 %v3077
    %3205 = vmatpush1.msra.mxu0 %v3076
    %3206 = vmatprep.subr.mxu0 %v3079
    %3207 = vmatpush1.msra.mxu0 %v3078
    %3208 = vmatprep.subr.mxu0 %v3081
    %3209 = vmatpush1.msra.mxu0 %v3080
    %3210 = vmatprep.subr.mxu0 %v3083
    %3211 = vmatpush1.msra.mxu0 %v3082
    %3212 = vmatprep.subr.mxu0 %v3085
    %3213 = vmatpush1.msra.mxu0 %v3084
    %3214 = vmatprep.subr.mxu0 %v3087
    %3215 = vmatpush1.msra.mxu0 %v3086
    %3216 = vmatprep.subr.mxu0 %v3089
    %3217 = vmatpush1.msra.mxu0 %v3088
    %3218 = vmatprep.subr.mxu0 %v3091
    %3219 = vmatpush1.msra.mxu0 %v3090
    %3220 = vmatprep.subr.mxu0 %v3093
    %3221 = vmatpush1.msra.mxu0 %v3092
    %3222 = vmatprep.subr.mxu0 %v3095
    %3223 = vmatpush1.msra.mxu0 %v3094
    %3224 = vmatprep.subr.mxu0 %v3097
    %3225 = vmatpush1.msra.mxu0 %v3096
    %3226 = vmatprep.subr.mxu0 %v3099
    %3227 = vmatpush1.msra.mxu0 %v3098
    %3228 = vmatprep.subr.mxu0 %v3101
    %3229 = vmatpush1.msra.mxu0 %v3100
    %3230 = vmatprep.subr.mxu0 %v3103
    %3231 = vmatpush1.msra.mxu0 %v3102
    %3232 = vmatprep.subr.mxu0 %v3105
    %3233 = vmatpush1.msra.mxu0 %v3104
    %3234 = vmatprep.subr.mxu0 %v3107
    %3235 = vmatpush1.msra.mxu0 %v3106
    %3236 = vmatprep.mubr.f32.mxu0 %v3041
    %3237 = vmatmul.mubr.f32.gmra.mrb[0].mxu0 %v3040
    %v3238 = vpop.f32.mrb[0].mxu0
    %v3239 = vadd.f32 0.0, %v3238
    %v3240 = vpop.f32.mrb[0].mxu0
    %v3241 = vadd.f32 0.0, %v3240
    %3242 = vdwg.mxu0
    %3243 = vmatprep.subr.mxu0 %v3109
    %3244 = vmatpush1.msra.mxu0 %v3108
    %3245 = vmatprep.subr.mxu0 %v3111
    %3246 = vmatpush1.msra.mxu0 %v3110
    %3247 = vmatprep.subr.mxu0 %v3113
    %3248 = vmatpush1.msra.mxu0 %v3112
    %3249 = vmatprep.subr.mxu0 %v3115
    %3250 = vmatpush1.msra.mxu0 %v3114
    %3251 = vmatprep.subr.mxu0 %v3117
    %3252 = vmatpush1.msra.mxu0 %v3116
    %3253 = vmatprep.subr.mxu0 %v3119
    %3254 = vmatpush1.msra.mxu0 %v3118
    %3255 = vmatprep.subr.mxu0 %v3121
    %3256 = vmatpush1.msra.mxu0 %v3120
    %3257 = vmatprep.subr.mxu0 %v3123
    %3258 = vmatpush1.msra.mxu0 %v3122
    %3259 = vmatprep.subr.mxu0 %v3125
    %3260 = vmatpush1.msra.mxu0 %v3124
    %3261 = vmatprep.subr.mxu0 %v3127
    %3262 = vmatpush1.msra.mxu0 %v3126
    %3263 = vmatprep.subr.mxu0 %v3129
    %3264 = vmatpush1.msra.mxu0 %v3128
    %3265 = vmatprep.subr.mxu0 %v3131
    %3266 = vmatpush1.msra.mxu0 %v3130
    %3267 = vmatprep.subr.mxu0 %v3133
    %3268 = vmatpush1.msra.mxu0 %v3132
    %3269 = vmatprep.subr.mxu0 %v3135
    %3270 = vmatpush1.msra.mxu0 %v3134
    %3271 = vmatprep.subr.mxu0 %v3137
    %3272 = vmatpush1.msra.mxu0 %v3136
    %3273 = vmatprep.subr.mxu0 %v3139
    %3274 = vmatpush1.msra.mxu0 %v3138
    %3275 = vmatprep.subr.mxu0 %v3141
    %3276 = vmatpush1.msra.mxu0 %v3140
    %3277 = vmatprep.subr.mxu0 %v3143
    %3278 = vmatpush1.msra.mxu0 %v3142
    %3279 = vmatprep.subr.mxu0 %v3145
    %3280 = vmatpush1.msra.mxu0 %v3144
    %3281 = vmatprep.subr.mxu0 %v3147
    %3282 = vmatpush1.msra.mxu0 %v3146
    %3283 = vmatprep.subr.mxu0 %v3149
    %3284 = vmatpush1.msra.mxu0 %v3148
    %3285 = vmatprep.subr.mxu0 %v3151
    %3286 = vmatpush1.msra.mxu0 %v3150
    %3287 = vmatprep.subr.mxu0 %v3153
    %3288 = vmatpush1.msra.mxu0 %v3152
    %3289 = vmatprep.subr.mxu0 %v3155
    %3290 = vmatpush1.msra.mxu0 %v3154
    %3291 = vmatprep.subr.mxu0 %v3157
    %3292 = vmatpush1.msra.mxu0 %v3156
    %3293 = vmatprep.subr.mxu0 %v3159
    %3294 = vmatpush1.msra.mxu0 %v3158
    %3295 = vmatprep.subr.mxu0 %v3161
    %3296 = vmatpush1.msra.mxu0 %v3160
    %3297 = vmatprep.subr.mxu0 %v3163
    %3298 = vmatpush1.msra.mxu0 %v3162
    %3299 = vmatprep.subr.mxu0 %v3165
    %3300 = vmatpush1.msra.mxu0 %v3164
    %3301 = vmatprep.subr.mxu0 %v3167
    %3302 = vmatpush1.msra.mxu0 %v3166
    %3303 = vmatprep.subr.mxu0 %v3169
    %3304 = vmatpush1.msra.mxu0 %v3168
    %3305 = vmatprep.subr.mxu0 %v3171
    %3306 = vmatpush1.msra.mxu0 %v3170
    %3307 = vmatprep.mubr.f32.mxu0 %v3043
    %3308 = vmatmul.mubr.f32.gmra.mrb[0].mxu0 %v3042
    %v3309 = vpop.f32.mrb[0].mxu0
    %v3310 = vadd.f32 %v3239, %v3309
    %v3311 = vpop.f32.mrb[0].mxu0
    %v3312 = vadd.f32 %v3241, %v3311
    %3313 = vdwg.mxu0
    %v3314 = vld [vmem:[#allocation24] sm:$0x3]
    %v3315 = vld [vmem:[#allocation26] sm:$0x3]
    %v3316 = vsel %vm2904, %v3310, 0.0
    %v3317 = vrot.slane %v3316, 4
    %v3318 = vadd.f32 %v3316, %v3317
    %v3319 = vrot.slane %v3318, 2
    %v3320 = vadd.f32 %v3318, %v3319
    %v3321 = vrot.slane %v3320, 1
    %v3322 = vadd.f32 %v3320, %v3321
    %v3323 = vsel %vm2904, %v3312, 0.0
    %v3324 = vrot.slane %v3323, 4
    %v3325 = vadd.f32 %v3323, %v3324
    %v3326 = vrot.slane %v3325, 2
    %v3327 = vadd.f32 %v3325, %v3326
    %v3328 = vrot.slane %v3327, 1
    %v3329 = vadd.f32 %v3327, %v3328
    %v3330 = vmul.f32 %v3322, %v2933
    %v3331 = vmul.f32 %v3329, %v2933
    %v3332 = vsub.f32 %v3310, %v3330
    %v3333 = vsub.f32 %v3312, %v3331
    %v3334 = vmul.f32 %v3332, %v3332
    %v3335 = vmul.f32 %v3333, %v3333
    %v3336 = vsel %vm2904, %v3334, 0.0
    %v3337 = vrot.slane %v3336, 4
    %v3338 = vadd.f32 %v3336, %v3337
    %v3339 = vrot.slane %v3338, 2
    %v3340 = vadd.f32 %v3338, %v3339
    %v3341 = vrot.slane %v3340, 1
    %v3342 = vadd.f32 %v3340, %v3341
    %v3343 = vsel %vm2904, %v3335, 0.0
    %v3344 = vrot.slane %v3343, 4
    %v3345 = vadd.f32 %v3343, %v3344
    %v3346 = vrot.slane %v3345, 2
    %v3347 = vadd.f32 %v3345, %v3346
    %v3348 = vrot.slane %v3347, 1
    %v3349 = vadd.f32 %v3347, %v3348
    %v3350 = vmul.f32 %v3342, %v2933
    %v3351 = vmul.f32 %v3349, %v2933
    %v3352 = vadd.f32 %v3350, 1e-05
    %v3353 = vadd.f32 %v3351, 1e-05
    %v3354 = vrsqrt.pop %v3352
    %v3355 = vrsqrt.pop %v3353
    %v3356 = vmul.f32 %v3332, %v3354
    %v3357 = vmul.f32 %v3333, %v3355
    %v3359 = vlaneseq
    %v3360 = vshrl.u32 %v3359, 7
    %v3361 = vsub.s32 0, %v3360
    %v3362 = vrot.slane %v3314, %v3361
    %v3363 = vlaneseq
    %v3364 = vshrl.u32 %v3363, 7
    %v3365 = vsub.s32 1, %v3364
    %v3366 = vrot.slane %v3314, %v3365
    %v3369 = vmul.f32 %v3356, %v3362
    %v3370 = vmul.f32 %v3357, %v3366
    %v3372 = vlaneseq
    %v3373 = vshrl.u32 %v3372, 7
    %v3374 = vsub.s32 0, %v3373
    %v3375 = vrot.slane %v3315, %v3374
    %v3376 = vlaneseq
    %v3377 = vshrl.u32 %v3376, 7
    %v3378 = vsub.s32 1, %v3377
    %v3379 = vrot.slane %v3315, %v3378
    %v3382 = vadd.f32 %v3369, %v3375
    %v3383 = vadd.f32 %v3370, %v3379
    %v3384 = vmax.f32 %v3382, 0.0
    %v3385 = vmax.f32 %v3383, 0.0
    %v3386 = vld [vmem:[%s16] sm:$0xff]
    %v3387 = vld [vmem:[%s16 + $0x8] sm:$0xff]
    %v3388 = vld [vmem:[%s16 + $0x10] sm:$0xff]
    %v3389 = vld [vmem:[%s16 + $0x18] sm:$0xff]
    %v3390 = vld [vmem:[%s16 + $0x20] sm:$0xff]
    %v3391 = vld [vmem:[%s16 + $0x28] sm:$0xff]
    %v3392 = vld [vmem:[%s16 + $0x30] sm:$0xff]
    %v3393 = vld [vmem:[%s16 + $0x38] sm:$0xff]
    %v3394 = vld [vmem:[%s16 + $0x40] sm:$0xff]
    %v3395 = vld [vmem:[%s16 + $0x48] sm:$0xff]
    %v3396 = vld [vmem:[%s16 + $0x50] sm:$0xff]
    %v3397 = vld [vmem:[%s16 + $0x58] sm:$0xff]
    %v3398 = vld [vmem:[%s16 + $0x60] sm:$0xff]
    %v3399 = vld [vmem:[%s16 + $0x68] sm:$0xff]
    %v3400 = vld [vmem:[%s16 + $0x70] sm:$0xff]
    %v3401 = vld [vmem:[%s16 + $0x78] sm:$0xff]
    %v3402 = vld [vmem:[%s16 + $0x80] sm:$0xff]
    %v3403 = vld [vmem:[%s16 + $0x88] sm:$0xff]
    %v3404 = vld [vmem:[%s16 + $0x90] sm:$0xff]
    %v3405 = vld [vmem:[%s16 + $0x98] sm:$0xff]
    %v3406 = vld [vmem:[%s16 + $0xa0] sm:$0xff]
    %v3407 = vld [vmem:[%s16 + $0xa8] sm:$0xff]
    %v3408 = vld [vmem:[%s16 + $0xb0] sm:$0xff]
    %v3409 = vld [vmem:[%s16 + $0xb8] sm:$0xff]
    %v3410 = vld [vmem:[%s16 + $0xc0] sm:$0xff]
    %v3411 = vld [vmem:[%s16 + $0xc8] sm:$0xff]
    %v3412 = vld [vmem:[%s16 + $0xd0] sm:$0xff]
    %v3413 = vld [vmem:[%s16 + $0xd8] sm:$0xff]
    %v3414 = vld [vmem:[%s16 + $0xe0] sm:$0xff]
    %v3415 = vld [vmem:[%s16 + $0xe8] sm:$0xff]
    %v3416 = vld [vmem:[%s16 + $0xf0] sm:$0xff]
    %v3417 = vld [vmem:[%s16 + $0xf8] sm:$0xff]
    %v3418 = vld [vmem:[#allocation27] sm:$0x1]
    %v3420 = vlaneseq
    %v3421 = vshrl.u32 %v3420, 7
    %v3422 = vsub.s32 0, %v3421
    %v3423 = vrot.slane %v3418, %v3422
    %3425 = vmatprep.subr.mxu0 0.0
    %3426 = vmatpush1.msra.mxu0 %v3386
    %3427 = vmatprep.subr.mxu0 0.0
    %3428 = vmatpush1.msra.mxu0 %v3387
    %3429 = vmatprep.subr.mxu0 0.0
    %3430 = vmatpush1.msra.mxu0 %v3388
    %3431 = vmatprep.subr.mxu0 0.0
    %3432 = vmatpush1.msra.mxu0 %v3389
    %3433 = vmatprep.subr.mxu0 0.0
    %3434 = vmatpush1.msra.mxu0 %v3390
    %3435 = vmatprep.subr.mxu0 0.0
    %3436 = vmatpush1.msra.mxu0 %v3391
    %3437 = vmatprep.subr.mxu0 0.0
    %3438 = vmatpush1.msra.mxu0 %v3392
    %3439 = vmatprep.subr.mxu0 0.0
    %3440 = vmatpush1.msra.mxu0 %v3393
    %3441 = vmatprep.subr.mxu0 0.0
    %3442 = vmatpush1.msra.mxu0 %v3394
    %3443 = vmatprep.subr.mxu0 0.0
    %3444 = vmatpush1.msra.mxu0 %v3395
    %3445 = vmatprep.subr.mxu0 0.0
    %3446 = vmatpush1.msra.mxu0 %v3396
    %3447 = vmatprep.subr.mxu0 0.0
    %3448 = vmatpush1.msra.mxu0 %v3397
    %3449 = vmatprep.subr.mxu0 0.0
    %3450 = vmatpush1.msra.mxu0 %v3398
    %3451 = vmatprep.subr.mxu0 0.0
    %3452 = vmatpush1.msra.mxu0 %v3399
    %3453 = vmatprep.subr.mxu0 0.0
    %3454 = vmatpush1.msra.mxu0 %v3400
    %3455 = vmatprep.subr.mxu0 0.0
    %3456 = vmatpush1.msra.mxu0 %v3401
    %3457 = vmatprep.subr.mxu0 0.0
    %3458 = vmatpush1.msra.mxu0 %v3402
    %3459 = vmatprep.subr.mxu0 0.0
    %3460 = vmatpush1.msra.mxu0 %v3403
    %3461 = vmatprep.subr.mxu0 0.0
    %3462 = vmatpush1.msra.mxu0 %v3404
    %3463 = vmatprep.subr.mxu0 0.0
    %3464 = vmatpush1.msra.mxu0 %v3405
    %3465 = vmatprep.subr.mxu0 0.0
    %3466 = vmatpush1.msra.mxu0 %v3406
    %3467 = vmatprep.subr.mxu0 0.0
    %3468 = vmatpush1.msra.mxu0 %v3407
    %3469 = vmatprep.subr.mxu0 0.0
    %3470 = vmatpush1.msra.mxu0 %v3408
    %3471 = vmatprep.subr.mxu0 0.0
    %3472 = vmatpush1.msra.mxu0 %v3409
    %3473 = vmatprep.subr.mxu0 0.0
    %3474 = vmatpush1.msra.mxu0 %v3410
    %3475 = vmatprep.subr.mxu0 0.0
    %3476 = vmatpush1.msra.mxu0 %v3411
    %3477 = vmatprep.subr.mxu0 0.0
    %3478 = vmatpush1.msra.mxu0 %v3412
    %3479 = vmatprep.subr.mxu0 0.0
    %3480 = vmatpush1.msra.mxu0 %v3413
    %3481 = vmatprep.subr.mxu0 0.0
    %3482 = vmatpush1.msra.mxu0 %v3414
    %3483 = vmatprep.subr.mxu0 0.0
    %3484 = vmatpush1.msra.mxu0 %v3415
    %3485 = vmatprep.subr.mxu0 0.0
    %3486 = vmatpush1.msra.mxu0 %v3416
    %3487 = vmatprep.subr.mxu0 0.0
    %3488 = vmatpush1.msra.mxu0 %v3417
    %3489 = vmatprep.mubr.f32.mxu0 %v3385
    %3490 = vmatmul.mubr.f32.gmra.mrb[0].mxu0 %v3384
    %v3491 = vpop.f32.mrb[0].mxu0
    %v3492 = vadd.f32 %v3423, %v3491
    %v3493 = vpop.f32.mrb[0].mxu0
    %3494 = vdwg.mxu0
    %v3495 = vld [vmem:[#allocation29] sm:$0x1]
    %v3497 = vlaneseq
    %v3498 = vshrl.u32 %v3497, 7
    %v3499 = vsub.s32 0, %v3498
    %v3500 = vrot.slane %v3495, %v3499
    %v3502 = vadd.f32 %v3492, %v3500
    %vm3503 = vcmask 66560
    %3504 = vst.msk [vmem:[#allocation30] sm:$0x3] %vm3503, %v3502
    // Predicated region
    $region146: #{tpu_custom_call.1} parent=1 // pred_check
      _
    $region147: #{tpu_custom_call.1} parent=1 // pred_check_branch
      %3506 = sbr.rel (0) target = $region149
    $region148: #{tpu_custom_call.1} parent=1 // pred_region
      %s3508 = ssub.s32 32, 32
      %3509 = vsyncadd [#allocation5], %s3508
      %s3511 = sshll.u32 [#allocation30], 4
      %s3512 = int_to_ptr.vmem [resolvable:$true] %s3511
      %3514 = dma.vmem_to_hbm [thread:$0]  %s3512, 32, %s19, [#allocation5]
    $region149: #{tpu_custom_call.1} parent=1 // pred_fallthru
      _
    // Predicated region
    $region150: #{tpu_custom_call.1} parent=1 // pred_check
      _
    $region151: #{tpu_custom_call.1} parent=1 // pred_check_branch
      %3516 = sbr.rel (0) target = $region153
    $region152: #{tpu_custom_call.1} parent=1 // pred_region
      %3517 = dma.done [#allocation5], 32
    $region153: #{tpu_custom_call.1} parent=1 // pred_fallthru
      _
    %3518 = vsyncpa [#allocation4], 1
    %3519 = vsyncpa [#allocation7], 1
    %3520 = vsyncpa [#allocation10], 1
    %3521 = vsyncpa [#allocation13], 1
    %3522 = vsyncpa [#allocation16], 1
    %3523 = vsyncpa [#allocation19], 1
    %3524 = vsyncpa [#allocation22], 1
    %3525 = vsyncpa [#allocation25], 1
    %3526 = vsyncpa [#allocation28], 1
    %3527 = vsyncpa [#allocation5], 1

</llo_original>
